<compile_context>
chip_gen: v6e
topology: v6e:2x2x1
jax: 0.10.0
libtpu: 0.0.40
codegen_flags: <defaults>
</compile_context>

<pallas_src>
import functools

import jax
import jax.numpy as jnp
from jax.experimental import pallas as pl
from jax.experimental.pallas import tpu as pltpu


# -----------------------------------------------------------------------------
# Fused kernel: conv3x3(im2col) + ReLU + global-avg-pool + concat + fc + dist.
# -----------------------------------------------------------------------------
def _fused_proto_kernel(xp_ref, wconv_ref, bconv_ref, wfc_ref, bfc_ref,
                        proto_ref, o_ref, *, B, H, W, C_in, C_out, K):
    """Whole forward for the (tiny) batch in a single grid step.

    xp_ref   : (2B, H+K-1, W+K-1, C_in)  padded NHWC; MAC rows then MIC rows
    wconv_ref: (K*K*C_in, C_out)         im2col-flattened conv weight
    bconv_ref: (1, C_out)
    wfc_ref  : (2*C_out, n_emb)
    bfc_ref  : (1, n_emb)
    proto_ref: (n_proto, n_emb)
    o_ref    : (n_proto, B)
    """
    B2 = 2 * B
    xp = xp_ref[...]

    # --- im2col: gather the 9 taps once, then ONE matmul of contraction depth
    #     K*K*C_in (=36) instead of 9 tiny depth-4 MXU pushes.
    cols = []
    for kh in range(K):
        for kw in range(K):
            cols.append(xp[:, kh:kh + H, kw:kw + W, :])
    patches = jnp.concatenate(cols, axis=-1)                 # (2B, H, W, K*K*C_in)
    patches = patches.reshape(B2 * H * W, K * K * C_in)      # (2B*H*W, 36)

    act = jnp.dot(patches, wconv_ref[...],
                  preferred_element_type=jnp.float32)        # (2B*H*W, C_out)
    act = jnp.maximum(act + bconv_ref[...], 0.0)

    # --- global average pool in VMEM: the activation map never hits HBM.
    pooled = jnp.mean(act.reshape(B2, H * W, C_out), axis=1)  # (2B, C_out)

    # --- concat MAC / MIC pooled features -> (B, 2*C_out), then linear head.
    feats = jnp.concatenate([pooled[:B], pooled[B:]], axis=1)
    emb = jnp.dot(feats, wfc_ref[...],
                  preferred_element_type=jnp.float32) + bfc_ref[...]   # (B, n_emb)

    # --- -||p - e||_2 via norm expansion: MXU cross term, EUP sqrt, 0-clamp.
    p = proto_ref[...]                                        # (n_proto, n_emb)
    emb_t = jnp.transpose(emb)                                # (n_emb, B)
    cross = jnp.dot(p, emb_t, preferred_element_type=jnp.float32)      # (n_proto, B)
    p_sq = jnp.sum(p * p, axis=-1, keepdims=True)             # (n_proto, 1)
    e_sq = jnp.sum(emb_t * emb_t, axis=0, keepdims=True)      # (1, B)
    d2 = jnp.maximum(p_sq - 2.0 * cross + e_sq, 0.0)          # guard sqrt(negative/0)
    o_ref[...] = -jnp.sqrt(d2)


# -----------------------------------------------------------------------------
# Full forward (PrototypicalNetwork.forward, single=False path)
# -----------------------------------------------------------------------------
def prototypical_forward(MAC_nchw, MIC_nchw, params):
    B, C_in, H, W = MAC_nchw.shape
    K = params["conv_w"].shape[0]
    C_out = params["conv_w"].shape[-1]
    n_emb = params["fc_b"].shape[0]
    n_proto = params["prototypes"].shape[0]
    pad = K // 2

    # Tiny wrapper-side prep (~5 KB, fuses into one XLA op): stack both
    # branches on the batch axis, NCHW -> NHWC, zero-pad the 1-pixel border.
    x = jnp.concatenate([MAC_nchw, MIC_nchw], axis=0)         # (2B, C, H, W)
    x = jnp.transpose(x, (0, 2, 3, 1))                        # (2B, H, W, C)
    xp = jnp.pad(x, ((0, 0), (pad, pad), (pad, pad), (0, 0)))

    # Parameter reshapes (free; done outside the kernel).
    w_flat = params["conv_w"].reshape(K * K * C_in, C_out)    # im2col ordering
    b_conv = params["conv_b"].reshape(1, C_out)
    b_fc = params["fc_b"].reshape(1, n_emb)

    kernel = functools.partial(_fused_proto_kernel, B=B, H=H, W=W,
                               C_in=C_in, C_out=C_out, K=K)
    vmem_spec = pl.BlockSpec(memory_space=pltpu.MemorySpace.VMEM)
    return pl.pallas_call(
        kernel,
        out_shape=jax.ShapeDtypeStruct((n_proto, B), jnp.float32),
        in_specs=[vmem_spec] * 6,
        out_specs=vmem_spec,
    )(xp, w_flat, b_conv, params["fc_w"], b_fc, params["prototypes"])


# -----------------------------------------------------------------------------
# Pure-JAX reference (for correctness check)
# -----------------------------------------------------------------------------
def reference_forward(MAC_nchw, MIC_nchw, params):
    def branch(x_nchw):
        x = jnp.transpose(x_nchw, (0, 2, 3, 1))
        y = jax.lax.conv_general_dilated(
            x, params["conv_w"], window_strides=(1, 1), padding="SAME",
            dimension_numbers=("NHWC", "HWIO", "NHWC"))
        y = jnp.maximum(y + params["conv_b"], 0.0)
        return jnp.mean(y, axis=(1, 2))

    feats = jnp.concatenate([branch(MAC_nchw), branch(MIC_nchw)], axis=-1)
    emb = feats @ params["fc_w"] + params["fc_b"]
    P = params["prototypes"]
    return -jnp.sqrt(jnp.sum((P[:, None, :] - emb[None, :, :]) ** 2, axis=-1))


if __name__ == "__main__":
    # Small shapes consistent with the module.
    B, C, HH, WW = 2, 4, 16, 16
    C_out = 8
    n_emb = 32
    n_proto = 8
    feat_dim = 2 * C_out  # concat of MAC/MIC pooled features

    key = jax.random.PRNGKey(0)
    k = jax.random.split(key, 7)

    params = {
        "conv_w": jax.random.normal(k[0], (3, 3, C, C_out), jnp.float32) * 0.1,
        "conv_b": jax.random.normal(k[1], (C_out,), jnp.float32) * 0.1,
        "fc_w":   jax.random.normal(k[2], (feat_dim, n_emb), jnp.float32) * 0.1,
        "fc_b":   jax.random.normal(k[3], (n_emb,), jnp.float32) * 0.1,
        # matches torch.rand((n_proto, n_emb)) -> uniform [0,1)
        "prototypes": jax.random.uniform(k[4], (n_proto, n_emb), jnp.float32),
    }
    # TODO(synk): cost_matrix D (n_proto x n_proto) is unused in forward; not materialized.

    MAC = jax.random.normal(k[5], (B, C, HH, WW), jnp.float32)
    MIC = jax.random.normal(k[6], (B, C, HH, WW), jnp.float32)

    dist = prototypical_forward(MAC, MIC, params)
    dist = jax.block_until_ready(dist)

    ref = jax.block_until_ready(reference_forward(MAC, MIC, params))
    assert dist.shape == (n_proto, B)
    assert jnp.allclose(dist, ref, atol=1e-4, rtol=1e-4), "mismatch vs reference"

    print("KERNEL_OK")
</pallas_src>

<mosaic_0001>
module attributes {stable_mosaic.version = 11 : i64} {
  func.func @_fused_proto_kernel(%arg0: memref<4x18x18x4xf32, #tpu.memory_space<vmem>>, %arg1: memref<36x8xf32, #tpu.memory_space<vmem>>, %arg2: memref<1x8xf32, #tpu.memory_space<vmem>>, %arg3: memref<16x32xf32, #tpu.memory_space<vmem>>, %arg4: memref<1x32xf32, #tpu.memory_space<vmem>>, %arg5: memref<8x32xf32, #tpu.memory_space<vmem>>, %arg6: memref<8x2xf32, #tpu.memory_space<vmem>>) attributes {dimension_semantics = [], scalar_prefetch = 0 : i64, scratch_operands = 0 : i64, tpu.core_type = #tpu.core_type<tc>} {
    %c0 = arith.constant 0 : index
    %c0_0 = arith.constant 0 : index
    %c0_1 = arith.constant 0 : index
    %c0_2 = arith.constant 0 : index
    %0 = vector.load %arg0[%c0, %c0_0, %c0_1, %c0_2] : memref<4x18x18x4xf32, #tpu.memory_space<vmem>>, vector<4x18x18x4xf32>
    %1 = vector.extract_strided_slice %0 {offsets = [0, 0, 0, 0], sizes = [4, 16, 16, 4], strides = [1, 1, 1, 1]} : vector<4x18x18x4xf32> to vector<4x16x16x4xf32>
    %2 = vector.extract_strided_slice %0 {offsets = [0, 0, 1, 0], sizes = [4, 16, 16, 4], strides = [1, 1, 1, 1]} : vector<4x18x18x4xf32> to vector<4x16x16x4xf32>
    %3 = vector.extract_strided_slice %0 {offsets = [0, 0, 2, 0], sizes = [4, 16, 16, 4], strides = [1, 1, 1, 1]} : vector<4x18x18x4xf32> to vector<4x16x16x4xf32>
    %4 = vector.extract_strided_slice %0 {offsets = [0, 1, 0, 0], sizes = [4, 16, 16, 4], strides = [1, 1, 1, 1]} : vector<4x18x18x4xf32> to vector<4x16x16x4xf32>
    %5 = vector.extract_strided_slice %0 {offsets = [0, 1, 1, 0], sizes = [4, 16, 16, 4], strides = [1, 1, 1, 1]} : vector<4x18x18x4xf32> to vector<4x16x16x4xf32>
    %6 = vector.extract_strided_slice %0 {offsets = [0, 1, 2, 0], sizes = [4, 16, 16, 4], strides = [1, 1, 1, 1]} : vector<4x18x18x4xf32> to vector<4x16x16x4xf32>
    %7 = vector.extract_strided_slice %0 {offsets = [0, 2, 0, 0], sizes = [4, 16, 16, 4], strides = [1, 1, 1, 1]} : vector<4x18x18x4xf32> to vector<4x16x16x4xf32>
    %8 = vector.extract_strided_slice %0 {offsets = [0, 2, 1, 0], sizes = [4, 16, 16, 4], strides = [1, 1, 1, 1]} : vector<4x18x18x4xf32> to vector<4x16x16x4xf32>
    %9 = vector.extract_strided_slice %0 {offsets = [0, 2, 2, 0], sizes = [4, 16, 16, 4], strides = [1, 1, 1, 1]} : vector<4x18x18x4xf32> to vector<4x16x16x4xf32>
    %10 = tpu.concatenate %1, %2, %3, %4, %5, %6, %7, %8, %9 in 3 : vector<4x16x16x4xf32>, vector<4x16x16x4xf32>, vector<4x16x16x4xf32>, vector<4x16x16x4xf32>, vector<4x16x16x4xf32>, vector<4x16x16x4xf32>, vector<4x16x16x4xf32>, vector<4x16x16x4xf32>, vector<4x16x16x4xf32> -> vector<4x16x16x36xf32>
    %11 = vector.shape_cast %10 : vector<4x16x16x36xf32> to vector<1024x36xf32>
    %c0_3 = arith.constant 0 : index
    %c0_4 = arith.constant 0 : index
    %12 = vector.load %arg1[%c0_3, %c0_4] : memref<36x8xf32, #tpu.memory_space<vmem>>, vector<36x8xf32>
    %cst = arith.constant dense<0.000000e+00> : vector<1024x8xf32>
    %13 = tpu.matmul %11, %12, %cst {dimension_numbers = #tpu.dot_dimension_numbers<[1], [0], [0], [1], [0, 0, 1, 1], [], []>} : vector<1024x36xf32>, vector<36x8xf32>, vector<1024x8xf32> -> vector<1024x8xf32>
    %c0_5 = arith.constant 0 : index
    %c0_6 = arith.constant 0 : index
    %14 = vector.load %arg2[%c0_5, %c0_6] : memref<1x8xf32, #tpu.memory_space<vmem>>, vector<1x8xf32>
    %15 = vector.broadcast %14 : vector<1x8xf32> to vector<1024x8xf32>
    %16 = arith.addf %13, %15 : vector<1024x8xf32>
    %cst_7 = arith.constant 0.000000e+00 : f32
    %17 = vector.broadcast %cst_7 : f32 to vector<1024x8xf32>
    %18 = arith.maximumf %16, %17 : vector<1024x8xf32>
    %19 = vector.shape_cast %18 : vector<1024x8xf32> to vector<4x256x8xf32>
    %cst_8 = arith.constant dense<0.000000e+00> : vector<4x8xf32>
    %20 = vector.multi_reduction <add>, %19, %cst_8 [1] : vector<4x256x8xf32> to vector<4x8xf32>
    %cst_9 = arith.constant 2.560000e+02 : f32
    %21 = vector.broadcast %cst_9 : f32 to vector<4x8xf32>
    %22 = arith.divf %20, %21 : vector<4x8xf32>
    %23 = vector.extract_strided_slice %22 {offsets = [0, 0], sizes = [2, 8], strides = [1, 1]} : vector<4x8xf32> to vector<2x8xf32>
    %24 = vector.extract_strided_slice %22 {offsets = [2, 0], sizes = [2, 8], strides = [1, 1]} : vector<4x8xf32> to vector<2x8xf32>
    %25 = tpu.concatenate %23, %24 in 1 : vector<2x8xf32>, vector<2x8xf32> -> vector<2x16xf32>
    %c0_10 = arith.constant 0 : index
    %c0_11 = arith.constant 0 : index
    %26 = vector.load %arg3[%c0_10, %c0_11] : memref<16x32xf32, #tpu.memory_space<vmem>>, vector<16x32xf32>
    %cst_12 = arith.constant dense<0.000000e+00> : vector<2x32xf32>
    %27 = tpu.matmul %25, %26, %cst_12 {dimension_numbers = #tpu.dot_dimension_numbers<[1], [0], [0], [1], [0, 0, 1, 1], [], []>} : vector<2x16xf32>, vector<16x32xf32>, vector<2x32xf32> -> vector<2x32xf32>
    %c0_13 = arith.constant 0 : index
    %c0_14 = arith.constant 0 : index
    %28 = vector.load %arg4[%c0_13, %c0_14] : memref<1x32xf32, #tpu.memory_space<vmem>>, vector<1x32xf32>
    %29 = vector.broadcast %28 : vector<1x32xf32> to vector<2x32xf32>
    %30 = arith.addf %27, %29 : vector<2x32xf32>
    %c0_15 = arith.constant 0 : index
    %c0_16 = arith.constant 0 : index
    %31 = vector.load %arg5[%c0_15, %c0_16] : memref<8x32xf32, #tpu.memory_space<vmem>>, vector<8x32xf32>
    %32 = tpu.transpose %30, [1, 0] : vector<2x32xf32> -> vector<32x2xf32>
    %cst_17 = arith.constant dense<0.000000e+00> : vector<8x2xf32>
    %33 = tpu.matmul %31, %32, %cst_17 {dimension_numbers = #tpu.dot_dimension_numbers<[1], [0], [0], [1], [0, 0, 1, 1], [], []>} : vector<8x32xf32>, vector<32x2xf32>, vector<8x2xf32> -> vector<8x2xf32>
    %34 = arith.mulf %31, %31 : vector<8x32xf32>
    %cst_18 = arith.constant dense<0.000000e+00> : vector<8xf32>
    %35 = vector.multi_reduction <add>, %34, %cst_18 [1] : vector<8x32xf32> to vector<8xf32>
    %36 = vector.shape_cast %35 : vector<8xf32> to vector<8x1xf32>
    %37 = arith.mulf %32, %32 : vector<32x2xf32>
    %cst_19 = arith.constant dense<0.000000e+00> : vector<2xf32>
    %38 = vector.multi_reduction <add>, %37, %cst_19 [0] : vector<32x2xf32> to vector<2xf32>
    %39 = vector.shape_cast %38 : vector<2xf32> to vector<1x2xf32>
    %cst_20 = arith.constant 2.000000e+00 : f32
    %40 = vector.broadcast %cst_20 : f32 to vector<8x2xf32>
    %41 = arith.mulf %40, %33 : vector<8x2xf32>
    %42 = vector.broadcast %36 : vector<8x1xf32> to vector<8x2xf32>
    %43 = arith.subf %42, %41 : vector<8x2xf32>
    %44 = vector.broadcast %39 : vector<1x2xf32> to vector<8x2xf32>
    %45 = arith.addf %43, %44 : vector<8x2xf32>
    %cst_21 = arith.constant 0.000000e+00 : f32
    %46 = vector.broadcast %cst_21 : f32 to vector<8x2xf32>
    %47 = arith.maximumf %45, %46 : vector<8x2xf32>
    %48 = math.sqrt %47 : vector<8x2xf32>
    %cst_22 = arith.constant 0.000000e+00 : f32
    %49 = vector.broadcast %cst_22 : f32 to vector<8x2xf32>
    %50 = arith.subf %49, %48 : vector<8x2xf32>
    %c0_23 = arith.constant 0 : index
    %c0_24 = arith.constant 0 : index
    %51 = vector.load %arg6[%c0_23, %c0_24] : memref<8x2xf32, #tpu.memory_space<vmem>>, vector<8x2xf32>
    tpu.vector_store %arg6[%c0_23, %c0_24], %50 {strides = array<i32>} : memref<8x2xf32, #tpu.memory_space<vmem>>, vector<8x2xf32>,
    return
  }
}

</mosaic_0001>

<llo_original>
// kernel: tpu_custom_call.1
$region0: #{tpu_custom_call.1}
  #allocation0 [shape = 'u32[]', space=smem, size = 0x4, offset = 0x4, fixed_abs, tag = 'smem constant byte address 0x4 - core index']
  #allocation1 [shape = 'u32[144,128]{1,0:T(1,128)}', space=vmem, size = 0x12000, scoped, tag = 'internal scratch']
  %s0 = inlined_call_operand.vmem [shape: f32[4,18,18,4], index: 0, kind: input, shape index: {}]
  %s1 = inlined_call_operand.vmem [shape: f32[36,8], index: 1, kind: input, shape index: {}]
  %s2 = inlined_call_operand.vmem [shape: f32[1,8], index: 2, kind: input, shape index: {}]
  %s3 = inlined_call_operand.vmem [shape: f32[16,32], index: 3, kind: input, shape index: {}]
  %s4 = inlined_call_operand.vmem [shape: f32[1,32], index: 4, kind: input, shape index: {}]
  %s5 = inlined_call_operand.vmem [shape: f32[8,32], index: 5, kind: input, shape index: {}]
  %s6 = inlined_call_operand.vmem [shape: f32[8,2], index: 6, kind: output, shape index: {}]
  %s7 = sld [smem:[#allocation0]]
  $region34: #{tpu_custom_call.1} parent=0
    _
  %s9 = ssub.s32 1, %s7
  %s10 = scalar_select 0, %s9, %s7
  // Predicated region
  $region2: #{tpu_custom_call.1} parent=0 // pred_check
    _
  $region3: #{tpu_custom_call.1} parent=0 // pred_check_branch
    %12 = sbr.rel (0) target = $region5
  $region4: #{tpu_custom_call.1} parent=0 // pred_region
    _
  $region5: #{tpu_custom_call.1} parent=0 // pred_fallthru
    _
  // Predicated region
  $region6: #{tpu_custom_call.1} parent=0 // pred_check
    _
  $region7: #{tpu_custom_call.1} parent=0 // pred_check_branch
    %14 = sbr.rel (0) target = $region9
  $region8: #{tpu_custom_call.1} parent=0 // pred_region
    _
  $region9: #{tpu_custom_call.1} parent=0 // pred_fallthru
    _
  // Predicated region
  $region10: #{tpu_custom_call.1} parent=0 // pred_check
    _
  $region11: #{tpu_custom_call.1} parent=0 // pred_check_branch
    %16 = sbr.rel (0) target = $region13
  $region12: #{tpu_custom_call.1} parent=0 // pred_region
    _
  $region13: #{tpu_custom_call.1} parent=0 // pred_fallthru
    _
  // Predicated region
  $region14: #{tpu_custom_call.1} parent=0 // pred_check
    _
  $region15: #{tpu_custom_call.1} parent=0 // pred_check_branch
    %18 = sbr.rel (0) target = $region17
  $region16: #{tpu_custom_call.1} parent=0 // pred_region
    _
  $region17: #{tpu_custom_call.1} parent=0 // pred_fallthru
    _
  // Predicated region
  $region18: #{tpu_custom_call.1} parent=0 // pred_check
    _
  $region19: #{tpu_custom_call.1} parent=0 // pred_check_branch
    %20 = sbr.rel (0) target = $region21
  $region20: #{tpu_custom_call.1} parent=0 // pred_region
    _
  $region21: #{tpu_custom_call.1} parent=0 // pred_fallthru
    _
  // Predicated region
  $region22: #{tpu_custom_call.1} parent=0 // pred_check
    _
  $region23: #{tpu_custom_call.1} parent=0 // pred_check_branch
    %22 = sbr.rel (0) target = $region25
  $region24: #{tpu_custom_call.1} parent=0 // pred_region
    _
  $region25: #{tpu_custom_call.1} parent=0 // pred_fallthru
    _
  %v23 = vld [vmem:[%s0] sm:$0xff]
  %v24 = vld [vmem:[%s0 + $0x8] sm:$0xff]
  %v25 = vld [vmem:[%s0 + $0x10] sm:$0x3]
  %v26 = vld [vmem:[%s0 + $0x18] sm:$0xff]
  %v27 = vld [vmem:[%s0 + $0x20] sm:$0xff]
  %v28 = vld [vmem:[%s0 + $0x28] sm:$0x3]
  %v29 = vld [vmem:[%s0 + $0x30] sm:$0xff]
  %v30 = vld [vmem:[%s0 + $0x38] sm:$0xff]
  %v31 = vld [vmem:[%s0 + $0x40] sm:$0x3]
  %v32 = vld [vmem:[%s0 + $0x48] sm:$0xff]
  %v33 = vld [vmem:[%s0 + $0x50] sm:$0xff]
  %v34 = vld [vmem:[%s0 + $0x58] sm:$0x3]
  %v35 = vld [vmem:[%s0 + $0x60] sm:$0xff]
  %v36 = vld [vmem:[%s0 + $0x68] sm:$0xff]
  %v37 = vld [vmem:[%s0 + $0x70] sm:$0x3]
  %v38 = vld [vmem:[%s0 + $0x78] sm:$0xff]
  %v39 = vld [vmem:[%s0 + $0x80] sm:$0xff]
  %v40 = vld [vmem:[%s0 + $0x88] sm:$0x3]
  %v41 = vld [vmem:[%s0 + $0x90] sm:$0xff]
  %v42 = vld [vmem:[%s0 + $0x98] sm:$0xff]
  %v43 = vld [vmem:[%s0 + $0xa0] sm:$0x3]
  %v44 = vld [vmem:[%s0 + $0xa8] sm:$0xff]
  %v45 = vld [vmem:[%s0 + $0xb0] sm:$0xff]
  %v46 = vld [vmem:[%s0 + $0xb8] sm:$0x3]
  %v47 = vld [vmem:[%s0 + $0xc0] sm:$0xff]
  %v48 = vld [vmem:[%s0 + $0xc8] sm:$0xff]
  %v49 = vld [vmem:[%s0 + $0xd0] sm:$0x3]
  %v50 = vld [vmem:[%s0 + $0xd8] sm:$0xff]
  %v51 = vld [vmem:[%s0 + $0xe0] sm:$0xff]
  %v52 = vld [vmem:[%s0 + $0xe8] sm:$0x3]
  %v53 = vld [vmem:[%s0 + $0xf0] sm:$0xff]
  %v54 = vld [vmem:[%s0 + $0xf8] sm:$0xff]
  %v55 = vld [vmem:[%s0 + $0x100] sm:$0x3]
  %v56 = vld [vmem:[%s0 + $0x108] sm:$0xff]
  %v57 = vld [vmem:[%s0 + $0x110] sm:$0xff]
  %v58 = vld [vmem:[%s0 + $0x118] sm:$0x3]
  %v59 = vld [vmem:[%s0 + $0x120] sm:$0xff]
  %v60 = vld [vmem:[%s0 + $0x128] sm:$0xff]
  %v61 = vld [vmem:[%s0 + $0x130] sm:$0x3]
  %v62 = vld [vmem:[%s0 + $0x138] sm:$0xff]
  %v63 = vld [vmem:[%s0 + $0x140] sm:$0xff]
  %v64 = vld [vmem:[%s0 + $0x148] sm:$0x3]
  %v65 = vld [vmem:[%s0 + $0x150] sm:$0xff]
  %v66 = vld [vmem:[%s0 + $0x158] sm:$0xff]
  %v67 = vld [vmem:[%s0 + $0x160] sm:$0x3]
  %v68 = vld [vmem:[%s0 + $0x168] sm:$0xff]
  %v69 = vld [vmem:[%s0 + $0x170] sm:$0xff]
  %v70 = vld [vmem:[%s0 + $0x178] sm:$0x3]
  %v71 = vld [vmem:[%s0 + $0x180] sm:$0xff]
  %v72 = vld [vmem:[%s0 + $0x188] sm:$0xff]
  %v73 = vld [vmem:[%s0 + $0x190] sm:$0x3]
  %v74 = vld [vmem:[%s0 + $0x198] sm:$0xff]
  %v75 = vld [vmem:[%s0 + $0x1a0] sm:$0xff]
  %v76 = vld [vmem:[%s0 + $0x1a8] sm:$0x3]
  %v77 = vld [vmem:[%s0 + $0x1b0] sm:$0xff]
  %v78 = vld [vmem:[%s0 + $0x1b8] sm:$0xff]
  %v79 = vld [vmem:[%s0 + $0x1c0] sm:$0x3]
  %v80 = vld [vmem:[%s0 + $0x1c8] sm:$0xff]
  %v81 = vld [vmem:[%s0 + $0x1d0] sm:$0xff]
  %v82 = vld [vmem:[%s0 + $0x1d8] sm:$0x3]
  %v83 = vld [vmem:[%s0 + $0x1e0] sm:$0xff]
  %v84 = vld [vmem:[%s0 + $0x1e8] sm:$0xff]
  %v85 = vld [vmem:[%s0 + $0x1f0] sm:$0x3]
  %v86 = vld [vmem:[%s0 + $0x1f8] sm:$0xff]
  %v87 = vld [vmem:[%s0 + $0x200] sm:$0xff]
  %v88 = vld [vmem:[%s0 + $0x208] sm:$0x3]
  %v89 = vld [vmem:[%s0 + $0x210] sm:$0xff]
  %v90 = vld [vmem:[%s0 + $0x218] sm:$0xff]
  %v91 = vld [vmem:[%s0 + $0x220] sm:$0x3]
  %v92 = vld [vmem:[%s0 + $0x228] sm:$0xff]
  %v93 = vld [vmem:[%s0 + $0x230] sm:$0xff]
  %v94 = vld [vmem:[%s0 + $0x238] sm:$0x3]
  %v95 = vld [vmem:[%s0 + $0x240] sm:$0xff]
  %v96 = vld [vmem:[%s0 + $0x248] sm:$0xff]
  %v97 = vld [vmem:[%s0 + $0x250] sm:$0x3]
  %v98 = vld [vmem:[%s0 + $0x258] sm:$0xff]
  %v99 = vld [vmem:[%s0 + $0x260] sm:$0xff]
  %v100 = vld [vmem:[%s0 + $0x268] sm:$0x3]
  %v101 = vld [vmem:[%s0 + $0x270] sm:$0xff]
  %v102 = vld [vmem:[%s0 + $0x278] sm:$0xff]
  %v103 = vld [vmem:[%s0 + $0x280] sm:$0x3]
  %v104 = vld [vmem:[%s0 + $0x288] sm:$0xff]
  %v105 = vld [vmem:[%s0 + $0x290] sm:$0xff]
  %v106 = vld [vmem:[%s0 + $0x298] sm:$0x3]
  %v107 = vld [vmem:[%s0 + $0x2a0] sm:$0xff]
  %v108 = vld [vmem:[%s0 + $0x2a8] sm:$0xff]
  %v109 = vld [vmem:[%s0 + $0x2b0] sm:$0x3]
  %v110 = vld [vmem:[%s0 + $0x2b8] sm:$0xff]
  %v111 = vld [vmem:[%s0 + $0x2c0] sm:$0xff]
  %v112 = vld [vmem:[%s0 + $0x2c8] sm:$0x3]
  %v113 = vld [vmem:[%s0 + $0x2d0] sm:$0xff]
  %v114 = vld [vmem:[%s0 + $0x2d8] sm:$0xff]
  %v115 = vld [vmem:[%s0 + $0x2e0] sm:$0x3]
  %v116 = vld [vmem:[%s0 + $0x2e8] sm:$0xff]
  %v117 = vld [vmem:[%s0 + $0x2f0] sm:$0xff]
  %v118 = vld [vmem:[%s0 + $0x2f8] sm:$0x3]
  %v119 = vld [vmem:[%s0 + $0x300] sm:$0xff]
  %v120 = vld [vmem:[%s0 + $0x308] sm:$0xff]
  %v121 = vld [vmem:[%s0 + $0x310] sm:$0x3]
  %v122 = vld [vmem:[%s0 + $0x318] sm:$0xff]
  %v123 = vld [vmem:[%s0 + $0x320] sm:$0xff]
  %v124 = vld [vmem:[%s0 + $0x328] sm:$0x3]
  %v125 = vld [vmem:[%s0 + $0x330] sm:$0xff]
  %v126 = vld [vmem:[%s0 + $0x338] sm:$0xff]
  %v127 = vld [vmem:[%s0 + $0x340] sm:$0x3]
  %v128 = vld [vmem:[%s0 + $0x348] sm:$0xff]
  %v129 = vld [vmem:[%s0 + $0x350] sm:$0xff]
  %v130 = vld [vmem:[%s0 + $0x358] sm:$0x3]
  %v131 = vld [vmem:[%s0 + $0x360] sm:$0xff]
  %v132 = vld [vmem:[%s0 + $0x368] sm:$0xff]
  %v133 = vld [vmem:[%s0 + $0x370] sm:$0x3]
  %v134 = vld [vmem:[%s0 + $0x378] sm:$0xff]
  %v135 = vld [vmem:[%s0 + $0x380] sm:$0xff]
  %v136 = vld [vmem:[%s0 + $0x388] sm:$0x3]
  %v137 = vld [vmem:[%s0 + $0x390] sm:$0xff]
  %v138 = vld [vmem:[%s0 + $0x398] sm:$0xff]
  %v139 = vld [vmem:[%s0 + $0x3a0] sm:$0x3]
  %v140 = vld [vmem:[%s0 + $0x3a8] sm:$0xff]
  %v141 = vld [vmem:[%s0 + $0x3b0] sm:$0xff]
  %v142 = vld [vmem:[%s0 + $0x3b8] sm:$0x3]
  %v143 = vld [vmem:[%s0 + $0x3c0] sm:$0xff]
  %v144 = vld [vmem:[%s0 + $0x3c8] sm:$0xff]
  %v145 = vld [vmem:[%s0 + $0x3d0] sm:$0x3]
  %v146 = vld [vmem:[%s0 + $0x3d8] sm:$0xff]
  %v147 = vld [vmem:[%s0 + $0x3e0] sm:$0xff]
  %v148 = vld [vmem:[%s0 + $0x3e8] sm:$0x3]
  %v149 = vld [vmem:[%s0 + $0x3f0] sm:$0xff]
  %v150 = vld [vmem:[%s0 + $0x3f8] sm:$0xff]
  %v151 = vld [vmem:[%s0 + $0x400] sm:$0x3]
  %v152 = vld [vmem:[%s0 + $0x408] sm:$0xff]
  %v153 = vld [vmem:[%s0 + $0x410] sm:$0xff]
  %v154 = vld [vmem:[%s0 + $0x418] sm:$0x3]
  %v155 = vld [vmem:[%s0 + $0x420] sm:$0xff]
  %v156 = vld [vmem:[%s0 + $0x428] sm:$0xff]
  %v157 = vld [vmem:[%s0 + $0x430] sm:$0x3]
  %v158 = vld [vmem:[%s0 + $0x438] sm:$0xff]
  %v159 = vld [vmem:[%s0 + $0x440] sm:$0xff]
  %v160 = vld [vmem:[%s0 + $0x448] sm:$0x3]
  %v161 = vld [vmem:[%s0 + $0x450] sm:$0xff]
  %v162 = vld [vmem:[%s0 + $0x458] sm:$0xff]
  %v163 = vld [vmem:[%s0 + $0x460] sm:$0x3]
  %v164 = vld [vmem:[%s0 + $0x468] sm:$0xff]
  %v165 = vld [vmem:[%s0 + $0x470] sm:$0xff]
  %v166 = vld [vmem:[%s0 + $0x478] sm:$0x3]
  %v167 = vld [vmem:[%s0 + $0x480] sm:$0xff]
  %v168 = vld [vmem:[%s0 + $0x488] sm:$0xff]
  %v169 = vld [vmem:[%s0 + $0x490] sm:$0x3]
  %v170 = vld [vmem:[%s0 + $0x498] sm:$0xff]
  %v171 = vld [vmem:[%s0 + $0x4a0] sm:$0xff]
  %v172 = vld [vmem:[%s0 + $0x4a8] sm:$0x3]
  %v173 = vld [vmem:[%s0 + $0x4b0] sm:$0xff]
  %v174 = vld [vmem:[%s0 + $0x4b8] sm:$0xff]
  %v175 = vld [vmem:[%s0 + $0x4c0] sm:$0x3]
  %v176 = vld [vmem:[%s0 + $0x4c8] sm:$0xff]
  %v177 = vld [vmem:[%s0 + $0x4d0] sm:$0xff]
  %v178 = vld [vmem:[%s0 + $0x4d8] sm:$0x3]
  %v179 = vld [vmem:[%s0 + $0x4e0] sm:$0xff]
  %v180 = vld [vmem:[%s0 + $0x4e8] sm:$0xff]
  %v181 = vld [vmem:[%s0 + $0x4f0] sm:$0x3]
  %v182 = vld [vmem:[%s0 + $0x4f8] sm:$0xff]
  %v183 = vld [vmem:[%s0 + $0x500] sm:$0xff]
  %v184 = vld [vmem:[%s0 + $0x508] sm:$0x3]
  %v185 = vld [vmem:[%s0 + $0x510] sm:$0xff]
  %v186 = vld [vmem:[%s0 + $0x518] sm:$0xff]
  %v187 = vld [vmem:[%s0 + $0x520] sm:$0x3]
  %v188 = vld [vmem:[%s0 + $0x528] sm:$0xff]
  %v189 = vld [vmem:[%s0 + $0x530] sm:$0xff]
  %v190 = vld [vmem:[%s0 + $0x538] sm:$0x3]
  %v191 = vld [vmem:[%s0 + $0x540] sm:$0xff]
  %v192 = vld [vmem:[%s0 + $0x548] sm:$0xff]
  %v193 = vld [vmem:[%s0 + $0x550] sm:$0x3]
  %v194 = vld [vmem:[%s0 + $0x558] sm:$0xff]
  %v195 = vld [vmem:[%s0 + $0x560] sm:$0xff]
  %v196 = vld [vmem:[%s0 + $0x568] sm:$0x3]
  %v197 = vld [vmem:[%s0 + $0x570] sm:$0xff]
  %v198 = vld [vmem:[%s0 + $0x578] sm:$0xff]
  %v199 = vld [vmem:[%s0 + $0x580] sm:$0x3]
  %v200 = vld [vmem:[%s0 + $0x588] sm:$0xff]
  %v201 = vld [vmem:[%s0 + $0x590] sm:$0xff]
  %v202 = vld [vmem:[%s0 + $0x598] sm:$0x3]
  %v203 = vld [vmem:[%s0 + $0x5a0] sm:$0xff]
  %v204 = vld [vmem:[%s0 + $0x5a8] sm:$0xff]
  %v205 = vld [vmem:[%s0 + $0x5b0] sm:$0x3]
  %v206 = vld [vmem:[%s0 + $0x5b8] sm:$0xff]
  %v207 = vld [vmem:[%s0 + $0x5c0] sm:$0xff]
  %v208 = vld [vmem:[%s0 + $0x5c8] sm:$0x3]
  %v209 = vld [vmem:[%s0 + $0x5d0] sm:$0xff]
  %v210 = vld [vmem:[%s0 + $0x5d8] sm:$0xff]
  %v211 = vld [vmem:[%s0 + $0x5e0] sm:$0x3]
  %v212 = vld [vmem:[%s0 + $0x5e8] sm:$0xff]
  %v213 = vld [vmem:[%s0 + $0x5f0] sm:$0xff]
  %v214 = vld [vmem:[%s0 + $0x5f8] sm:$0x3]
  %v215 = vld [vmem:[%s0 + $0x600] sm:$0xff]
  %v216 = vld [vmem:[%s0 + $0x608] sm:$0xff]
  %v217 = vld [vmem:[%s0 + $0x610] sm:$0x3]
  %v218 = vld [vmem:[%s0 + $0x618] sm:$0xff]
  %v219 = vld [vmem:[%s0 + $0x620] sm:$0xff]
  %v220 = vld [vmem:[%s0 + $0x628] sm:$0x3]
  %v221 = vld [vmem:[%s0 + $0x630] sm:$0xff]
  %v222 = vld [vmem:[%s0 + $0x638] sm:$0xff]
  %v223 = vld [vmem:[%s0 + $0x640] sm:$0x3]
  %v224 = vld [vmem:[%s0 + $0x648] sm:$0xff]
  %v225 = vld [vmem:[%s0 + $0x650] sm:$0xff]
  %v226 = vld [vmem:[%s0 + $0x658] sm:$0x3]
  %v227 = vld [vmem:[%s0 + $0x660] sm:$0xff]
  %v228 = vld [vmem:[%s0 + $0x668] sm:$0xff]
  %v229 = vld [vmem:[%s0 + $0x670] sm:$0x3]
  %v230 = vld [vmem:[%s0 + $0x678] sm:$0xff]
  %v231 = vld [vmem:[%s0 + $0x680] sm:$0xff]
  %v232 = vld [vmem:[%s0 + $0x688] sm:$0x3]
  %v233 = vld [vmem:[%s0 + $0x690] sm:$0xff]
  %v234 = vld [vmem:[%s0 + $0x698] sm:$0xff]
  %v235 = vld [vmem:[%s0 + $0x6a0] sm:$0x3]
  %v236 = vld [vmem:[%s0 + $0x6a8] sm:$0xff]
  %v237 = vld [vmem:[%s0 + $0x6b0] sm:$0xff]
  %v238 = vld [vmem:[%s0 + $0x6b8] sm:$0x3]
  %vm431 = vcmask 1046528
  %v432 = vrot.slane %v23, 1
  %v433 = vrot.slane %v24, 1
  %v434 = vsel %vm431, %v432, %v433
  %v435 = vrot.slane %v25, 1
  %v436 = vsel %vm431, %v433, %v435
  %v437 = vrot.slane %v26, 1
  %v438 = vrot.slane %v27, 1
  %v439 = vsel %vm431, %v437, %v438
  %v440 = vrot.slane %v28, 1
  %v441 = vsel %vm431, %v438, %v440
  %v442 = vrot.slane %v29, 1
  %v443 = vrot.slane %v30, 1
  %v444 = vsel %vm431, %v442, %v443
  %v445 = vrot.slane %v31, 1
  %v446 = vsel %vm431, %v443, %v445
  %v447 = vrot.slane %v32, 1
  %v448 = vrot.slane %v33, 1
  %v449 = vsel %vm431, %v447, %v448
  %v450 = vrot.slane %v34, 1
  %v451 = vsel %vm431, %v448, %v450
  %v452 = vrot.slane %v35, 1
  %v453 = vrot.slane %v36, 1
  %v454 = vsel %vm431, %v452, %v453
  %v455 = vrot.slane %v37, 1
  %v456 = vsel %vm431, %v453, %v455
  %v457 = vrot.slane %v38, 1
  %v458 = vrot.slane %v39, 1
  %v459 = vsel %vm431, %v457, %v458
  %v460 = vrot.slane %v40, 1
  %v461 = vsel %vm431, %v458, %v460
  %v462 = vrot.slane %v41, 1
  %v463 = vrot.slane %v42, 1
  %v464 = vsel %vm431, %v462, %v463
  %v465 = vrot.slane %v43, 1
  %v466 = vsel %vm431, %v463, %v465
  %v467 = vrot.slane %v44, 1
  %v468 = vrot.slane %v45, 1
  %v469 = vsel %vm431, %v467, %v468
  %v470 = vrot.slane %v46, 1
  %v471 = vsel %vm431, %v468, %v470
  %v472 = vrot.slane %v47, 1
  %v473 = vrot.slane %v48, 1
  %v474 = vsel %vm431, %v472, %v473
  %v475 = vrot.slane %v49, 1
  %v476 = vsel %vm431, %v473, %v475
  %v477 = vrot.slane %v50, 1
  %v478 = vrot.slane %v51, 1
  %v479 = vsel %vm431, %v477, %v478
  %v480 = vrot.slane %v52, 1
  %v481 = vsel %vm431, %v478, %v480
  %v482 = vrot.slane %v53, 1
  %v483 = vrot.slane %v54, 1
  %v484 = vsel %vm431, %v482, %v483
  %v485 = vrot.slane %v55, 1
  %v486 = vsel %vm431, %v483, %v485
  %v487 = vrot.slane %v56, 1
  %v488 = vrot.slane %v57, 1
  %v489 = vsel %vm431, %v487, %v488
  %v490 = vrot.slane %v58, 1
  %v491 = vsel %vm431, %v488, %v490
  %v492 = vrot.slane %v59, 1
  %v493 = vrot.slane %v60, 1
  %v494 = vsel %vm431, %v492, %v493
  %v495 = vrot.slane %v61, 1
  %v496 = vsel %vm431, %v493, %v495
  %v497 = vrot.slane %v62, 1
  %v498 = vrot.slane %v63, 1
  %v499 = vsel %vm431, %v497, %v498
  %v500 = vrot.slane %v64, 1
  %v501 = vsel %vm431, %v498, %v500
  %v502 = vrot.slane %v65, 1
  %v503 = vrot.slane %v66, 1
  %v504 = vsel %vm431, %v502, %v503
  %v505 = vrot.slane %v67, 1
  %v506 = vsel %vm431, %v503, %v505
  %v507 = vrot.slane %v68, 1
  %v508 = vrot.slane %v69, 1
  %v509 = vsel %vm431, %v507, %v508
  %v510 = vrot.slane %v70, 1
  %v511 = vsel %vm431, %v508, %v510
  %v512 = vrot.slane %v77, 1
  %v513 = vrot.slane %v78, 1
  %v514 = vsel %vm431, %v512, %v513
  %v515 = vrot.slane %v79, 1
  %v516 = vsel %vm431, %v513, %v515
  %v517 = vrot.slane %v80, 1
  %v518 = vrot.slane %v81, 1
  %v519 = vsel %vm431, %v517, %v518
  %v520 = vrot.slane %v82, 1
  %v521 = vsel %vm431, %v518, %v520
  %v522 = vrot.slane %v83, 1
  %v523 = vrot.slane %v84, 1
  %v524 = vsel %vm431, %v522, %v523
  %v525 = vrot.slane %v85, 1
  %v526 = vsel %vm431, %v523, %v525
  %v527 = vrot.slane %v86, 1
  %v528 = vrot.slane %v87, 1
  %v529 = vsel %vm431, %v527, %v528
  %v530 = vrot.slane %v88, 1
  %v531 = vsel %vm431, %v528, %v530
  %v532 = vrot.slane %v89, 1
  %v533 = vrot.slane %v90, 1
  %v534 = vsel %vm431, %v532, %v533
  %v535 = vrot.slane %v91, 1
  %v536 = vsel %vm431, %v533, %v535
  %v537 = vrot.slane %v92, 1
  %v538 = vrot.slane %v93, 1
  %v539 = vsel %vm431, %v537, %v538
  %v540 = vrot.slane %v94, 1
  %v541 = vsel %vm431, %v538, %v540
  %v542 = vrot.slane %v95, 1
  %v543 = vrot.slane %v96, 1
  %v544 = vsel %vm431, %v542, %v543
  %v545 = vrot.slane %v97, 1
  %v546 = vsel %vm431, %v543, %v545
  %v547 = vrot.slane %v98, 1
  %v548 = vrot.slane %v99, 1
  %v549 = vsel %vm431, %v547, %v548
  %v550 = vrot.slane %v100, 1
  %v551 = vsel %vm431, %v548, %v550
  %v552 = vrot.slane %v101, 1
  %v553 = vrot.slane %v102, 1
  %v554 = vsel %vm431, %v552, %v553
  %v555 = vrot.slane %v103, 1
  %v556 = vsel %vm431, %v553, %v555
  %v557 = vrot.slane %v104, 1
  %v558 = vrot.slane %v105, 1
  %v559 = vsel %vm431, %v557, %v558
  %v560 = vrot.slane %v106, 1
  %v561 = vsel %vm431, %v558, %v560
  %v562 = vrot.slane %v107, 1
  %v563 = vrot.slane %v108, 1
  %v564 = vsel %vm431, %v562, %v563
  %v565 = vrot.slane %v109, 1
  %v566 = vsel %vm431, %v563, %v565
  %v567 = vrot.slane %v110, 1
  %v568 = vrot.slane %v111, 1
  %v569 = vsel %vm431, %v567, %v568
  %v570 = vrot.slane %v112, 1
  %v571 = vsel %vm431, %v568, %v570
  %v572 = vrot.slane %v113, 1
  %v573 = vrot.slane %v114, 1
  %v574 = vsel %vm431, %v572, %v573
  %v575 = vrot.slane %v115, 1
  %v576 = vsel %vm431, %v573, %v575
  %v577 = vrot.slane %v116, 1
  %v578 = vrot.slane %v117, 1
  %v579 = vsel %vm431, %v577, %v578
  %v580 = vrot.slane %v118, 1
  %v581 = vsel %vm431, %v578, %v580
  %v582 = vrot.slane %v119, 1
  %v583 = vrot.slane %v120, 1
  %v584 = vsel %vm431, %v582, %v583
  %v585 = vrot.slane %v121, 1
  %v586 = vsel %vm431, %v583, %v585
  %v587 = vrot.slane %v122, 1
  %v588 = vrot.slane %v123, 1
  %v589 = vsel %vm431, %v587, %v588
  %v590 = vrot.slane %v124, 1
  %v591 = vsel %vm431, %v588, %v590
  %v592 = vrot.slane %v131, 1
  %v593 = vrot.slane %v132, 1
  %v594 = vsel %vm431, %v592, %v593
  %v595 = vrot.slane %v133, 1
  %v596 = vsel %vm431, %v593, %v595
  %v597 = vrot.slane %v134, 1
  %v598 = vrot.slane %v135, 1
  %v599 = vsel %vm431, %v597, %v598
  %v600 = vrot.slane %v136, 1
  %v601 = vsel %vm431, %v598, %v600
  %v602 = vrot.slane %v137, 1
  %v603 = vrot.slane %v138, 1
  %v604 = vsel %vm431, %v602, %v603
  %v605 = vrot.slane %v139, 1
  %v606 = vsel %vm431, %v603, %v605
  %v607 = vrot.slane %v140, 1
  %v608 = vrot.slane %v141, 1
  %v609 = vsel %vm431, %v607, %v608
  %v610 = vrot.slane %v142, 1
  %v611 = vsel %vm431, %v608, %v610
  %v612 = vrot.slane %v143, 1
  %v613 = vrot.slane %v144, 1
  %v614 = vsel %vm431, %v612, %v613
  %v615 = vrot.slane %v145, 1
  %v616 = vsel %vm431, %v613, %v615
  %v617 = vrot.slane %v146, 1
  %v618 = vrot.slane %v147, 1
  %v619 = vsel %vm431, %v617, %v618
  %v620 = vrot.slane %v148, 1
  %v621 = vsel %vm431, %v618, %v620
  %v622 = vrot.slane %v149, 1
  %v623 = vrot.slane %v150, 1
  %v624 = vsel %vm431, %v622, %v623
  %v625 = vrot.slane %v151, 1
  %v626 = vsel %vm431, %v623, %v625
  %v627 = vrot.slane %v152, 1
  %v628 = vrot.slane %v153, 1
  %v629 = vsel %vm431, %v627, %v628
  %v630 = vrot.slane %v154, 1
  %v631 = vsel %vm431, %v628, %v630
  %v632 = vrot.slane %v155, 1
  %v633 = vrot.slane %v156, 1
  %v634 = vsel %vm431, %v632, %v633
  %v635 = vrot.slane %v157, 1
  %v636 = vsel %vm431, %v633, %v635
  %v637 = vrot.slane %v158, 1
  %v638 = vrot.slane %v159, 1
  %v639 = vsel %vm431, %v637, %v638
  %v640 = vrot.slane %v160, 1
  %v641 = vsel %vm431, %v638, %v640
  %v642 = vrot.slane %v161, 1
  %v643 = vrot.slane %v162, 1
  %v644 = vsel %vm431, %v642, %v643
  %v645 = vrot.slane %v163, 1
  %v646 = vsel %vm431, %v643, %v645
  %v647 = vrot.slane %v164, 1
  %v648 = vrot.slane %v165, 1
  %v649 = vsel %vm431, %v647, %v648
  %v650 = vrot.slane %v166, 1
  %v651 = vsel %vm431, %v648, %v650
  %v652 = vrot.slane %v167, 1
  %v653 = vrot.slane %v168, 1
  %v654 = vsel %vm431, %v652, %v653
  %v655 = vrot.slane %v169, 1
  %v656 = vsel %vm431, %v653, %v655
  %v657 = vrot.slane %v170, 1
  %v658 = vrot.slane %v171, 1
  %v659 = vsel %vm431, %v657, %v658
  %v660 = vrot.slane %v172, 1
  %v661 = vsel %vm431, %v658, %v660
  %v662 = vrot.slane %v173, 1
  %v663 = vrot.slane %v174, 1
  %v664 = vsel %vm431, %v662, %v663
  %v665 = vrot.slane %v175, 1
  %v666 = vsel %vm431, %v663, %v665
  %v667 = vrot.slane %v176, 1
  %v668 = vrot.slane %v177, 1
  %v669 = vsel %vm431, %v667, %v668
  %v670 = vrot.slane %v178, 1
  %v671 = vsel %vm431, %v668, %v670
  %v672 = vrot.slane %v185, 1
  %v673 = vrot.slane %v186, 1
  %v674 = vsel %vm431, %v672, %v673
  %v675 = vrot.slane %v187, 1
  %v676 = vsel %vm431, %v673, %v675
  %v677 = vrot.slane %v188, 1
  %v678 = vrot.slane %v189, 1
  %v679 = vsel %vm431, %v677, %v678
  %v680 = vrot.slane %v190, 1
  %v681 = vsel %vm431, %v678, %v680
  %v682 = vrot.slane %v191, 1
  %v683 = vrot.slane %v192, 1
  %v684 = vsel %vm431, %v682, %v683
  %v685 = vrot.slane %v193, 1
  %v686 = vsel %vm431, %v683, %v685
  %v687 = vrot.slane %v194, 1
  %v688 = vrot.slane %v195, 1
  %v689 = vsel %vm431, %v687, %v688
  %v690 = vrot.slane %v196, 1
  %v691 = vsel %vm431, %v688, %v690
  %v692 = vrot.slane %v197, 1
  %v693 = vrot.slane %v198, 1
  %v694 = vsel %vm431, %v692, %v693
  %v695 = vrot.slane %v199, 1
  %v696 = vsel %vm431, %v693, %v695
  %v697 = vrot.slane %v200, 1
  %v698 = vrot.slane %v201, 1
  %v699 = vsel %vm431, %v697, %v698
  %v700 = vrot.slane %v202, 1
  %v701 = vsel %vm431, %v698, %v700
  %v702 = vrot.slane %v203, 1
  %v703 = vrot.slane %v204, 1
  %v704 = vsel %vm431, %v702, %v703
  %v705 = vrot.slane %v205, 1
  %v706 = vsel %vm431, %v703, %v705
  %v707 = vrot.slane %v206, 1
  %v708 = vrot.slane %v207, 1
  %v709 = vsel %vm431, %v707, %v708
  %v710 = vrot.slane %v208, 1
  %v711 = vsel %vm431, %v708, %v710
  %v712 = vrot.slane %v209, 1
  %v713 = vrot.slane %v210, 1
  %v714 = vsel %vm431, %v712, %v713
  %v715 = vrot.slane %v211, 1
  %v716 = vsel %vm431, %v713, %v715
  %v717 = vrot.slane %v212, 1
  %v718 = vrot.slane %v213, 1
  %v719 = vsel %vm431, %v717, %v718
  %v720 = vrot.slane %v214, 1
  %v721 = vsel %vm431, %v718, %v720
  %v722 = vrot.slane %v215, 1
  %v723 = vrot.slane %v216, 1
  %v724 = vsel %vm431, %v722, %v723
  %v725 = vrot.slane %v217, 1
  %v726 = vsel %vm431, %v723, %v725
  %v727 = vrot.slane %v218, 1
  %v728 = vrot.slane %v219, 1
  %v729 = vsel %vm431, %v727, %v728
  %v730 = vrot.slane %v220, 1
  %v731 = vsel %vm431, %v728, %v730
  %v732 = vrot.slane %v221, 1
  %v733 = vrot.slane %v222, 1
  %v734 = vsel %vm431, %v732, %v733
  %v735 = vrot.slane %v223, 1
  %v736 = vsel %vm431, %v733, %v735
  %v737 = vrot.slane %v224, 1
  %v738 = vrot.slane %v225, 1
  %v739 = vsel %vm431, %v737, %v738
  %v740 = vrot.slane %v226, 1
  %v741 = vsel %vm431, %v738, %v740
  %v742 = vrot.slane %v227, 1
  %v743 = vrot.slane %v228, 1
  %v744 = vsel %vm431, %v742, %v743
  %v745 = vrot.slane %v229, 1
  %v746 = vsel %vm431, %v743, %v745
  %v747 = vrot.slane %v230, 1
  %v748 = vrot.slane %v231, 1
  %v749 = vsel %vm431, %v747, %v748
  %v750 = vrot.slane %v232, 1
  %v751 = vsel %vm431, %v748, %v750
  %752 = vrot.lane.b32.xlu0 %v434, 4
  %v753 = vpop.permute.xlu0 %752
  %754 = vrot.lane.b32.xlu0 %v436, 4
  %v755 = vpop.permute.xlu0 %754
  %756 = vrot.lane.b32.xlu0 %v439, 4
  %v757 = vpop.permute.xlu0 %756
  %758 = vrot.lane.b32.xlu0 %v441, 4
  %v759 = vpop.permute.xlu0 %758
  %760 = vrot.lane.b32.xlu0 %v444, 4
  %v761 = vpop.permute.xlu0 %760
  %762 = vrot.lane.b32.xlu0 %v446, 4
  %v763 = vpop.permute.xlu0 %762
  %764 = vrot.lane.b32.xlu0 %v449, 4
  %v765 = vpop.permute.xlu0 %764
  %766 = vrot.lane.b32.xlu0 %v451, 4
  %v767 = vpop.permute.xlu0 %766
  %768 = vrot.lane.b32.xlu0 %v454, 4
  %v769 = vpop.permute.xlu0 %768
  %770 = vrot.lane.b32.xlu0 %v456, 4
  %v771 = vpop.permute.xlu0 %770
  %772 = vrot.lane.b32.xlu0 %v459, 4
  %v773 = vpop.permute.xlu0 %772
  %774 = vrot.lane.b32.xlu0 %v461, 4
  %v775 = vpop.permute.xlu0 %774
  %776 = vrot.lane.b32.xlu0 %v464, 4
  %v777 = vpop.permute.xlu0 %776
  %778 = vrot.lane.b32.xlu0 %v466, 4
  %v779 = vpop.permute.xlu0 %778
  %780 = vrot.lane.b32.xlu0 %v469, 4
  %v781 = vpop.permute.xlu0 %780
  %782 = vrot.lane.b32.xlu0 %v471, 4
  %v783 = vpop.permute.xlu0 %782
  %784 = vrot.lane.b32.xlu0 %v474, 4
  %v785 = vpop.permute.xlu0 %784
  %786 = vrot.lane.b32.xlu0 %v476, 4
  %v787 = vpop.permute.xlu0 %786
  %788 = vrot.lane.b32.xlu0 %v479, 4
  %v789 = vpop.permute.xlu0 %788
  %790 = vrot.lane.b32.xlu0 %v481, 4
  %v791 = vpop.permute.xlu0 %790
  %792 = vrot.lane.b32.xlu0 %v484, 4
  %v793 = vpop.permute.xlu0 %792
  %794 = vrot.lane.b32.xlu0 %v486, 4
  %v795 = vpop.permute.xlu0 %794
  %796 = vrot.lane.b32.xlu0 %v489, 4
  %v797 = vpop.permute.xlu0 %796
  %798 = vrot.lane.b32.xlu0 %v491, 4
  %v799 = vpop.permute.xlu0 %798
  %800 = vrot.lane.b32.xlu0 %v494, 4
  %v801 = vpop.permute.xlu0 %800
  %802 = vrot.lane.b32.xlu0 %v496, 4
  %v803 = vpop.permute.xlu0 %802
  %804 = vrot.lane.b32.xlu0 %v499, 4
  %v805 = vpop.permute.xlu0 %804
  %806 = vrot.lane.b32.xlu0 %v501, 4
  %v807 = vpop.permute.xlu0 %806
  %808 = vrot.lane.b32.xlu0 %v504, 4
  %v809 = vpop.permute.xlu0 %808
  %810 = vrot.lane.b32.xlu0 %v506, 4
  %v811 = vpop.permute.xlu0 %810
  %812 = vrot.lane.b32.xlu0 %v509, 4
  %v813 = vpop.permute.xlu0 %812
  %814 = vrot.lane.b32.xlu0 %v511, 4
  %v815 = vpop.permute.xlu0 %814
  %816 = vrot.lane.b32.xlu0 %v514, 4
  %v817 = vpop.permute.xlu0 %816
  %818 = vrot.lane.b32.xlu0 %v516, 4
  %v819 = vpop.permute.xlu0 %818
  %820 = vrot.lane.b32.xlu0 %v519, 4
  %v821 = vpop.permute.xlu0 %820
  %822 = vrot.lane.b32.xlu0 %v521, 4
  %v823 = vpop.permute.xlu0 %822
  %824 = vrot.lane.b32.xlu0 %v524, 4
  %v825 = vpop.permute.xlu0 %824
  %826 = vrot.lane.b32.xlu0 %v526, 4
  %v827 = vpop.permute.xlu0 %826
  %828 = vrot.lane.b32.xlu0 %v529, 4
  %v829 = vpop.permute.xlu0 %828
  %830 = vrot.lane.b32.xlu0 %v531, 4
  %v831 = vpop.permute.xlu0 %830
  %832 = vrot.lane.b32.xlu0 %v534, 4
  %v833 = vpop.permute.xlu0 %832
  %834 = vrot.lane.b32.xlu0 %v536, 4
  %v835 = vpop.permute.xlu0 %834
  %836 = vrot.lane.b32.xlu0 %v539, 4
  %v837 = vpop.permute.xlu0 %836
  %838 = vrot.lane.b32.xlu0 %v541, 4
  %v839 = vpop.permute.xlu0 %838
  %840 = vrot.lane.b32.xlu0 %v544, 4
  %v841 = vpop.permute.xlu0 %840
  %842 = vrot.lane.b32.xlu0 %v546, 4
  %v843 = vpop.permute.xlu0 %842
  %844 = vrot.lane.b32.xlu0 %v549, 4
  %v845 = vpop.permute.xlu0 %844
  %846 = vrot.lane.b32.xlu0 %v551, 4
  %v847 = vpop.permute.xlu0 %846
  %848 = vrot.lane.b32.xlu0 %v554, 4
  %v849 = vpop.permute.xlu0 %848
  %850 = vrot.lane.b32.xlu0 %v556, 4
  %v851 = vpop.permute.xlu0 %850
  %852 = vrot.lane.b32.xlu0 %v559, 4
  %v853 = vpop.permute.xlu0 %852
  %854 = vrot.lane.b32.xlu0 %v561, 4
  %v855 = vpop.permute.xlu0 %854
  %856 = vrot.lane.b32.xlu0 %v564, 4
  %v857 = vpop.permute.xlu0 %856
  %858 = vrot.lane.b32.xlu0 %v566, 4
  %v859 = vpop.permute.xlu0 %858
  %860 = vrot.lane.b32.xlu0 %v569, 4
  %v861 = vpop.permute.xlu0 %860
  %862 = vrot.lane.b32.xlu0 %v571, 4
  %v863 = vpop.permute.xlu0 %862
  %864 = vrot.lane.b32.xlu0 %v574, 4
  %v865 = vpop.permute.xlu0 %864
  %866 = vrot.lane.b32.xlu0 %v576, 4
  %v867 = vpop.permute.xlu0 %866
  %868 = vrot.lane.b32.xlu0 %v579, 4
  %v869 = vpop.permute.xlu0 %868
  %870 = vrot.lane.b32.xlu0 %v581, 4
  %v871 = vpop.permute.xlu0 %870
  %872 = vrot.lane.b32.xlu0 %v584, 4
  %v873 = vpop.permute.xlu0 %872
  %874 = vrot.lane.b32.xlu0 %v586, 4
  %v875 = vpop.permute.xlu0 %874
  %876 = vrot.lane.b32.xlu0 %v589, 4
  %v877 = vpop.permute.xlu0 %876
  %878 = vrot.lane.b32.xlu0 %v591, 4
  %v879 = vpop.permute.xlu0 %878
  %880 = vrot.lane.b32.xlu0 %v594, 4
  %v881 = vpop.permute.xlu0 %880
  %882 = vrot.lane.b32.xlu0 %v596, 4
  %v883 = vpop.permute.xlu0 %882
  %884 = vrot.lane.b32.xlu0 %v599, 4
  %v885 = vpop.permute.xlu0 %884
  %886 = vrot.lane.b32.xlu0 %v601, 4
  %v887 = vpop.permute.xlu0 %886
  %888 = vrot.lane.b32.xlu0 %v604, 4
  %v889 = vpop.permute.xlu0 %888
  %890 = vrot.lane.b32.xlu0 %v606, 4
  %v891 = vpop.permute.xlu0 %890
  %892 = vrot.lane.b32.xlu0 %v609, 4
  %v893 = vpop.permute.xlu0 %892
  %894 = vrot.lane.b32.xlu0 %v611, 4
  %v895 = vpop.permute.xlu0 %894
  %896 = vrot.lane.b32.xlu0 %v614, 4
  %v897 = vpop.permute.xlu0 %896
  %898 = vrot.lane.b32.xlu0 %v616, 4
  %v899 = vpop.permute.xlu0 %898
  %900 = vrot.lane.b32.xlu0 %v619, 4
  %v901 = vpop.permute.xlu0 %900
  %902 = vrot.lane.b32.xlu0 %v621, 4
  %v903 = vpop.permute.xlu0 %902
  %904 = vrot.lane.b32.xlu0 %v624, 4
  %v905 = vpop.permute.xlu0 %904
  %906 = vrot.lane.b32.xlu0 %v626, 4
  %v907 = vpop.permute.xlu0 %906
  %908 = vrot.lane.b32.xlu0 %v629, 4
  %v909 = vpop.permute.xlu0 %908
  %910 = vrot.lane.b32.xlu0 %v631, 4
  %v911 = vpop.permute.xlu0 %910
  %912 = vrot.lane.b32.xlu0 %v634, 4
  %v913 = vpop.permute.xlu0 %912
  %914 = vrot.lane.b32.xlu0 %v636, 4
  %v915 = vpop.permute.xlu0 %914
  %916 = vrot.lane.b32.xlu0 %v639, 4
  %v917 = vpop.permute.xlu0 %916
  %918 = vrot.lane.b32.xlu0 %v641, 4
  %v919 = vpop.permute.xlu0 %918
  %920 = vrot.lane.b32.xlu0 %v644, 4
  %v921 = vpop.permute.xlu0 %920
  %922 = vrot.lane.b32.xlu0 %v646, 4
  %v923 = vpop.permute.xlu0 %922
  %924 = vrot.lane.b32.xlu0 %v649, 4
  %v925 = vpop.permute.xlu0 %924
  %926 = vrot.lane.b32.xlu0 %v651, 4
  %v927 = vpop.permute.xlu0 %926
  %928 = vrot.lane.b32.xlu0 %v654, 4
  %v929 = vpop.permute.xlu0 %928
  %930 = vrot.lane.b32.xlu0 %v656, 4
  %v931 = vpop.permute.xlu0 %930
  %932 = vrot.lane.b32.xlu0 %v659, 4
  %v933 = vpop.permute.xlu0 %932
  %934 = vrot.lane.b32.xlu0 %v661, 4
  %v935 = vpop.permute.xlu0 %934
  %936 = vrot.lane.b32.xlu0 %v664, 4
  %v937 = vpop.permute.xlu0 %936
  %938 = vrot.lane.b32.xlu0 %v666, 4
  %v939 = vpop.permute.xlu0 %938
  %940 = vrot.lane.b32.xlu0 %v669, 4
  %v941 = vpop.permute.xlu0 %940
  %942 = vrot.lane.b32.xlu0 %v671, 4
  %v943 = vpop.permute.xlu0 %942
  %944 = vrot.lane.b32.xlu0 %v674, 4
  %v945 = vpop.permute.xlu0 %944
  %946 = vrot.lane.b32.xlu0 %v676, 4
  %v947 = vpop.permute.xlu0 %946
  %948 = vrot.lane.b32.xlu0 %v679, 4
  %v949 = vpop.permute.xlu0 %948
  %950 = vrot.lane.b32.xlu0 %v681, 4
  %v951 = vpop.permute.xlu0 %950
  %952 = vrot.lane.b32.xlu0 %v684, 4
  %v953 = vpop.permute.xlu0 %952
  %954 = vrot.lane.b32.xlu0 %v686, 4
  %v955 = vpop.permute.xlu0 %954
  %956 = vrot.lane.b32.xlu0 %v689, 4
  %v957 = vpop.permute.xlu0 %956
  %958 = vrot.lane.b32.xlu0 %v691, 4
  %v959 = vpop.permute.xlu0 %958
  %960 = vrot.lane.b32.xlu0 %v694, 4
  %v961 = vpop.permute.xlu0 %960
  %962 = vrot.lane.b32.xlu0 %v696, 4
  %v963 = vpop.permute.xlu0 %962
  %964 = vrot.lane.b32.xlu0 %v699, 4
  %v965 = vpop.permute.xlu0 %964
  %966 = vrot.lane.b32.xlu0 %v701, 4
  %v967 = vpop.permute.xlu0 %966
  %968 = vrot.lane.b32.xlu0 %v704, 4
  %v969 = vpop.permute.xlu0 %968
  %970 = vrot.lane.b32.xlu0 %v706, 4
  %v971 = vpop.permute.xlu0 %970
  %972 = vrot.lane.b32.xlu0 %v709, 4
  %v973 = vpop.permute.xlu0 %972
  %974 = vrot.lane.b32.xlu0 %v711, 4
  %v975 = vpop.permute.xlu0 %974
  %976 = vrot.lane.b32.xlu0 %v714, 4
  %v977 = vpop.permute.xlu0 %976
  %978 = vrot.lane.b32.xlu0 %v716, 4
  %v979 = vpop.permute.xlu0 %978
  %980 = vrot.lane.b32.xlu0 %v719, 4
  %v981 = vpop.permute.xlu0 %980
  %982 = vrot.lane.b32.xlu0 %v721, 4
  %v983 = vpop.permute.xlu0 %982
  %984 = vrot.lane.b32.xlu0 %v724, 4
  %v985 = vpop.permute.xlu0 %984
  %986 = vrot.lane.b32.xlu0 %v726, 4
  %v987 = vpop.permute.xlu0 %986
  %988 = vrot.lane.b32.xlu0 %v729, 4
  %v989 = vpop.permute.xlu0 %988
  %990 = vrot.lane.b32.xlu0 %v731, 4
  %v991 = vpop.permute.xlu0 %990
  %992 = vrot.lane.b32.xlu0 %v734, 4
  %v993 = vpop.permute.xlu0 %992
  %994 = vrot.lane.b32.xlu0 %v736, 4
  %v995 = vpop.permute.xlu0 %994
  %996 = vrot.lane.b32.xlu0 %v739, 4
  %v997 = vpop.permute.xlu0 %996
  %998 = vrot.lane.b32.xlu0 %v741, 4
  %v999 = vpop.permute.xlu0 %998
  %1000 = vrot.lane.b32.xlu0 %v744, 4
  %v1001 = vpop.permute.xlu0 %1000
  %1002 = vrot.lane.b32.xlu0 %v746, 4
  %v1003 = vpop.permute.xlu0 %1002
  %1004 = vrot.lane.b32.xlu0 %v749, 4
  %v1005 = vpop.permute.xlu0 %1004
  %1006 = vrot.lane.b32.xlu0 %v751, 4
  %v1007 = vpop.permute.xlu0 %1006
  %vm1136 = vcmask 1045504
  %v1137 = vrot.slane %v23, 2
  %v1138 = vrot.slane %v24, 2
  %v1139 = vsel %vm1136, %v1137, %v1138
  %v1140 = vrot.slane %v25, 2
  %v1141 = vsel %vm1136, %v1138, %v1140
  %v1142 = vrot.slane %v26, 2
  %v1143 = vrot.slane %v27, 2
  %v1144 = vsel %vm1136, %v1142, %v1143
  %v1145 = vrot.slane %v28, 2
  %v1146 = vsel %vm1136, %v1143, %v1145
  %v1147 = vrot.slane %v29, 2
  %v1148 = vrot.slane %v30, 2
  %v1149 = vsel %vm1136, %v1147, %v1148
  %v1150 = vrot.slane %v31, 2
  %v1151 = vsel %vm1136, %v1148, %v1150
  %v1152 = vrot.slane %v32, 2
  %v1153 = vrot.slane %v33, 2
  %v1154 = vsel %vm1136, %v1152, %v1153
  %v1155 = vrot.slane %v34, 2
  %v1156 = vsel %vm1136, %v1153, %v1155
  %v1157 = vrot.slane %v35, 2
  %v1158 = vrot.slane %v36, 2
  %v1159 = vsel %vm1136, %v1157, %v1158
  %v1160 = vrot.slane %v37, 2
  %v1161 = vsel %vm1136, %v1158, %v1160
  %v1162 = vrot.slane %v38, 2
  %v1163 = vrot.slane %v39, 2
  %v1164 = vsel %vm1136, %v1162, %v1163
  %v1165 = vrot.slane %v40, 2
  %v1166 = vsel %vm1136, %v1163, %v1165
  %v1167 = vrot.slane %v41, 2
  %v1168 = vrot.slane %v42, 2
  %v1169 = vsel %vm1136, %v1167, %v1168
  %v1170 = vrot.slane %v43, 2
  %v1171 = vsel %vm1136, %v1168, %v1170
  %v1172 = vrot.slane %v44, 2
  %v1173 = vrot.slane %v45, 2
  %v1174 = vsel %vm1136, %v1172, %v1173
  %v1175 = vrot.slane %v46, 2
  %v1176 = vsel %vm1136, %v1173, %v1175
  %v1177 = vrot.slane %v47, 2
  %v1178 = vrot.slane %v48, 2
  %v1179 = vsel %vm1136, %v1177, %v1178
  %v1180 = vrot.slane %v49, 2
  %v1181 = vsel %vm1136, %v1178, %v1180
  %v1182 = vrot.slane %v50, 2
  %v1183 = vrot.slane %v51, 2
  %v1184 = vsel %vm1136, %v1182, %v1183
  %v1185 = vrot.slane %v52, 2
  %v1186 = vsel %vm1136, %v1183, %v1185
  %v1187 = vrot.slane %v53, 2
  %v1188 = vrot.slane %v54, 2
  %v1189 = vsel %vm1136, %v1187, %v1188
  %v1190 = vrot.slane %v55, 2
  %v1191 = vsel %vm1136, %v1188, %v1190
  %v1192 = vrot.slane %v56, 2
  %v1193 = vrot.slane %v57, 2
  %v1194 = vsel %vm1136, %v1192, %v1193
  %v1195 = vrot.slane %v58, 2
  %v1196 = vsel %vm1136, %v1193, %v1195
  %v1197 = vrot.slane %v59, 2
  %v1198 = vrot.slane %v60, 2
  %v1199 = vsel %vm1136, %v1197, %v1198
  %v1200 = vrot.slane %v61, 2
  %v1201 = vsel %vm1136, %v1198, %v1200
  %v1202 = vrot.slane %v62, 2
  %v1203 = vrot.slane %v63, 2
  %v1204 = vsel %vm1136, %v1202, %v1203
  %v1205 = vrot.slane %v64, 2
  %v1206 = vsel %vm1136, %v1203, %v1205
  %v1207 = vrot.slane %v65, 2
  %v1208 = vrot.slane %v66, 2
  %v1209 = vsel %vm1136, %v1207, %v1208
  %v1210 = vrot.slane %v67, 2
  %v1211 = vsel %vm1136, %v1208, %v1210
  %v1212 = vrot.slane %v68, 2
  %v1213 = vrot.slane %v69, 2
  %v1214 = vsel %vm1136, %v1212, %v1213
  %v1215 = vrot.slane %v70, 2
  %v1216 = vsel %vm1136, %v1213, %v1215
  %v1217 = vrot.slane %v77, 2
  %v1218 = vrot.slane %v78, 2
  %v1219 = vsel %vm1136, %v1217, %v1218
  %v1220 = vrot.slane %v79, 2
  %v1221 = vsel %vm1136, %v1218, %v1220
  %v1222 = vrot.slane %v80, 2
  %v1223 = vrot.slane %v81, 2
  %v1224 = vsel %vm1136, %v1222, %v1223
  %v1225 = vrot.slane %v82, 2
  %v1226 = vsel %vm1136, %v1223, %v1225
  %v1227 = vrot.slane %v83, 2
  %v1228 = vrot.slane %v84, 2
  %v1229 = vsel %vm1136, %v1227, %v1228
  %v1230 = vrot.slane %v85, 2
  %v1231 = vsel %vm1136, %v1228, %v1230
  %v1232 = vrot.slane %v86, 2
  %v1233 = vrot.slane %v87, 2
  %v1234 = vsel %vm1136, %v1232, %v1233
  %v1235 = vrot.slane %v88, 2
  %v1236 = vsel %vm1136, %v1233, %v1235
  %v1237 = vrot.slane %v89, 2
  %v1238 = vrot.slane %v90, 2
  %v1239 = vsel %vm1136, %v1237, %v1238
  %v1240 = vrot.slane %v91, 2
  %v1241 = vsel %vm1136, %v1238, %v1240
  %v1242 = vrot.slane %v92, 2
  %v1243 = vrot.slane %v93, 2
  %v1244 = vsel %vm1136, %v1242, %v1243
  %v1245 = vrot.slane %v94, 2
  %v1246 = vsel %vm1136, %v1243, %v1245
  %v1247 = vrot.slane %v95, 2
  %v1248 = vrot.slane %v96, 2
  %v1249 = vsel %vm1136, %v1247, %v1248
  %v1250 = vrot.slane %v97, 2
  %v1251 = vsel %vm1136, %v1248, %v1250
  %v1252 = vrot.slane %v98, 2
  %v1253 = vrot.slane %v99, 2
  %v1254 = vsel %vm1136, %v1252, %v1253
  %v1255 = vrot.slane %v100, 2
  %v1256 = vsel %vm1136, %v1253, %v1255
  %v1257 = vrot.slane %v101, 2
  %v1258 = vrot.slane %v102, 2
  %v1259 = vsel %vm1136, %v1257, %v1258
  %v1260 = vrot.slane %v103, 2
  %v1261 = vsel %vm1136, %v1258, %v1260
  %v1262 = vrot.slane %v104, 2
  %v1263 = vrot.slane %v105, 2
  %v1264 = vsel %vm1136, %v1262, %v1263
  %v1265 = vrot.slane %v106, 2
  %v1266 = vsel %vm1136, %v1263, %v1265
  %v1267 = vrot.slane %v107, 2
  %v1268 = vrot.slane %v108, 2
  %v1269 = vsel %vm1136, %v1267, %v1268
  %v1270 = vrot.slane %v109, 2
  %v1271 = vsel %vm1136, %v1268, %v1270
  %v1272 = vrot.slane %v110, 2
  %v1273 = vrot.slane %v111, 2
  %v1274 = vsel %vm1136, %v1272, %v1273
  %v1275 = vrot.slane %v112, 2
  %v1276 = vsel %vm1136, %v1273, %v1275
  %v1277 = vrot.slane %v113, 2
  %v1278 = vrot.slane %v114, 2
  %v1279 = vsel %vm1136, %v1277, %v1278
  %v1280 = vrot.slane %v115, 2
  %v1281 = vsel %vm1136, %v1278, %v1280
  %v1282 = vrot.slane %v116, 2
  %v1283 = vrot.slane %v117, 2
  %v1284 = vsel %vm1136, %v1282, %v1283
  %v1285 = vrot.slane %v118, 2
  %v1286 = vsel %vm1136, %v1283, %v1285
  %v1287 = vrot.slane %v119, 2
  %v1288 = vrot.slane %v120, 2
  %v1289 = vsel %vm1136, %v1287, %v1288
  %v1290 = vrot.slane %v121, 2
  %v1291 = vsel %vm1136, %v1288, %v1290
  %v1292 = vrot.slane %v122, 2
  %v1293 = vrot.slane %v123, 2
  %v1294 = vsel %vm1136, %v1292, %v1293
  %v1295 = vrot.slane %v124, 2
  %v1296 = vsel %vm1136, %v1293, %v1295
  %v1297 = vrot.slane %v131, 2
  %v1298 = vrot.slane %v132, 2
  %v1299 = vsel %vm1136, %v1297, %v1298
  %v1300 = vrot.slane %v133, 2
  %v1301 = vsel %vm1136, %v1298, %v1300
  %v1302 = vrot.slane %v134, 2
  %v1303 = vrot.slane %v135, 2
  %v1304 = vsel %vm1136, %v1302, %v1303
  %v1305 = vrot.slane %v136, 2
  %v1306 = vsel %vm1136, %v1303, %v1305
  %v1307 = vrot.slane %v137, 2
  %v1308 = vrot.slane %v138, 2
  %v1309 = vsel %vm1136, %v1307, %v1308
  %v1310 = vrot.slane %v139, 2
  %v1311 = vsel %vm1136, %v1308, %v1310
  %v1312 = vrot.slane %v140, 2
  %v1313 = vrot.slane %v141, 2
  %v1314 = vsel %vm1136, %v1312, %v1313
  %v1315 = vrot.slane %v142, 2
  %v1316 = vsel %vm1136, %v1313, %v1315
  %v1317 = vrot.slane %v143, 2
  %v1318 = vrot.slane %v144, 2
  %v1319 = vsel %vm1136, %v1317, %v1318
  %v1320 = vrot.slane %v145, 2
  %v1321 = vsel %vm1136, %v1318, %v1320
  %v1322 = vrot.slane %v146, 2
  %v1323 = vrot.slane %v147, 2
  %v1324 = vsel %vm1136, %v1322, %v1323
  %v1325 = vrot.slane %v148, 2
  %v1326 = vsel %vm1136, %v1323, %v1325
  %v1327 = vrot.slane %v149, 2
  %v1328 = vrot.slane %v150, 2
  %v1329 = vsel %vm1136, %v1327, %v1328
  %v1330 = vrot.slane %v151, 2
  %v1331 = vsel %vm1136, %v1328, %v1330
  %v1332 = vrot.slane %v152, 2
  %v1333 = vrot.slane %v153, 2
  %v1334 = vsel %vm1136, %v1332, %v1333
  %v1335 = vrot.slane %v154, 2
  %v1336 = vsel %vm1136, %v1333, %v1335
  %v1337 = vrot.slane %v155, 2
  %v1338 = vrot.slane %v156, 2
  %v1339 = vsel %vm1136, %v1337, %v1338
  %v1340 = vrot.slane %v157, 2
  %v1341 = vsel %vm1136, %v1338, %v1340
  %v1342 = vrot.slane %v158, 2
  %v1343 = vrot.slane %v159, 2
  %v1344 = vsel %vm1136, %v1342, %v1343
  %v1345 = vrot.slane %v160, 2
  %v1346 = vsel %vm1136, %v1343, %v1345
  %v1347 = vrot.slane %v161, 2
  %v1348 = vrot.slane %v162, 2
  %v1349 = vsel %vm1136, %v1347, %v1348
  %v1350 = vrot.slane %v163, 2
  %v1351 = vsel %vm1136, %v1348, %v1350
  %v1352 = vrot.slane %v164, 2
  %v1353 = vrot.slane %v165, 2
  %v1354 = vsel %vm1136, %v1352, %v1353
  %v1355 = vrot.slane %v166, 2
  %v1356 = vsel %vm1136, %v1353, %v1355
  %v1357 = vrot.slane %v167, 2
  %v1358 = vrot.slane %v168, 2
  %v1359 = vsel %vm1136, %v1357, %v1358
  %v1360 = vrot.slane %v169, 2
  %v1361 = vsel %vm1136, %v1358, %v1360
  %v1362 = vrot.slane %v170, 2
  %v1363 = vrot.slane %v171, 2
  %v1364 = vsel %vm1136, %v1362, %v1363
  %v1365 = vrot.slane %v172, 2
  %v1366 = vsel %vm1136, %v1363, %v1365
  %v1367 = vrot.slane %v173, 2
  %v1368 = vrot.slane %v174, 2
  %v1369 = vsel %vm1136, %v1367, %v1368
  %v1370 = vrot.slane %v175, 2
  %v1371 = vsel %vm1136, %v1368, %v1370
  %v1372 = vrot.slane %v176, 2
  %v1373 = vrot.slane %v177, 2
  %v1374 = vsel %vm1136, %v1372, %v1373
  %v1375 = vrot.slane %v178, 2
  %v1376 = vsel %vm1136, %v1373, %v1375
  %v1377 = vrot.slane %v185, 2
  %v1378 = vrot.slane %v186, 2
  %v1379 = vsel %vm1136, %v1377, %v1378
  %v1380 = vrot.slane %v187, 2
  %v1381 = vsel %vm1136, %v1378, %v1380
  %v1382 = vrot.slane %v188, 2
  %v1383 = vrot.slane %v189, 2
  %v1384 = vsel %vm1136, %v1382, %v1383
  %v1385 = vrot.slane %v190, 2
  %v1386 = vsel %vm1136, %v1383, %v1385
  %v1387 = vrot.slane %v191, 2
  %v1388 = vrot.slane %v192, 2
  %v1389 = vsel %vm1136, %v1387, %v1388
  %v1390 = vrot.slane %v193, 2
  %v1391 = vsel %vm1136, %v1388, %v1390
  %v1392 = vrot.slane %v194, 2
  %v1393 = vrot.slane %v195, 2
  %v1394 = vsel %vm1136, %v1392, %v1393
  %v1395 = vrot.slane %v196, 2
  %v1396 = vsel %vm1136, %v1393, %v1395
  %v1397 = vrot.slane %v197, 2
  %v1398 = vrot.slane %v198, 2
  %v1399 = vsel %vm1136, %v1397, %v1398
  %v1400 = vrot.slane %v199, 2
  %v1401 = vsel %vm1136, %v1398, %v1400
  %v1402 = vrot.slane %v200, 2
  %v1403 = vrot.slane %v201, 2
  %v1404 = vsel %vm1136, %v1402, %v1403
  %v1405 = vrot.slane %v202, 2
  %v1406 = vsel %vm1136, %v1403, %v1405
  %v1407 = vrot.slane %v203, 2
  %v1408 = vrot.slane %v204, 2
  %v1409 = vsel %vm1136, %v1407, %v1408
  %v1410 = vrot.slane %v205, 2
  %v1411 = vsel %vm1136, %v1408, %v1410
  %v1412 = vrot.slane %v206, 2
  %v1413 = vrot.slane %v207, 2
  %v1414 = vsel %vm1136, %v1412, %v1413
  %v1415 = vrot.slane %v208, 2
  %v1416 = vsel %vm1136, %v1413, %v1415
  %v1417 = vrot.slane %v209, 2
  %v1418 = vrot.slane %v210, 2
  %v1419 = vsel %vm1136, %v1417, %v1418
  %v1420 = vrot.slane %v211, 2
  %v1421 = vsel %vm1136, %v1418, %v1420
  %v1422 = vrot.slane %v212, 2
  %v1423 = vrot.slane %v213, 2
  %v1424 = vsel %vm1136, %v1422, %v1423
  %v1425 = vrot.slane %v214, 2
  %v1426 = vsel %vm1136, %v1423, %v1425
  %v1427 = vrot.slane %v215, 2
  %v1428 = vrot.slane %v216, 2
  %v1429 = vsel %vm1136, %v1427, %v1428
  %v1430 = vrot.slane %v217, 2
  %v1431 = vsel %vm1136, %v1428, %v1430
  %v1432 = vrot.slane %v218, 2
  %v1433 = vrot.slane %v219, 2
  %v1434 = vsel %vm1136, %v1432, %v1433
  %v1435 = vrot.slane %v220, 2
  %v1436 = vsel %vm1136, %v1433, %v1435
  %v1437 = vrot.slane %v221, 2
  %v1438 = vrot.slane %v222, 2
  %v1439 = vsel %vm1136, %v1437, %v1438
  %v1440 = vrot.slane %v223, 2
  %v1441 = vsel %vm1136, %v1438, %v1440
  %v1442 = vrot.slane %v224, 2
  %v1443 = vrot.slane %v225, 2
  %v1444 = vsel %vm1136, %v1442, %v1443
  %v1445 = vrot.slane %v226, 2
  %v1446 = vsel %vm1136, %v1443, %v1445
  %v1447 = vrot.slane %v227, 2
  %v1448 = vrot.slane %v228, 2
  %v1449 = vsel %vm1136, %v1447, %v1448
  %v1450 = vrot.slane %v229, 2
  %v1451 = vsel %vm1136, %v1448, %v1450
  %v1452 = vrot.slane %v230, 2
  %v1453 = vrot.slane %v231, 2
  %v1454 = vsel %vm1136, %v1452, %v1453
  %v1455 = vrot.slane %v232, 2
  %v1456 = vsel %vm1136, %v1453, %v1455
  %1457 = vrot.lane.b32.xlu0 %v1139, 8
  %v1458 = vpop.permute.xlu0 %1457
  %1459 = vrot.lane.b32.xlu0 %v1141, 8
  %v1460 = vpop.permute.xlu0 %1459
  %1461 = vrot.lane.b32.xlu0 %v1144, 8
  %v1462 = vpop.permute.xlu0 %1461
  %1463 = vrot.lane.b32.xlu0 %v1146, 8
  %v1464 = vpop.permute.xlu0 %1463
  %1465 = vrot.lane.b32.xlu0 %v1149, 8
  %v1466 = vpop.permute.xlu0 %1465
  %1467 = vrot.lane.b32.xlu0 %v1151, 8
  %v1468 = vpop.permute.xlu0 %1467
  %1469 = vrot.lane.b32.xlu0 %v1154, 8
  %v1470 = vpop.permute.xlu0 %1469
  %1471 = vrot.lane.b32.xlu0 %v1156, 8
  %v1472 = vpop.permute.xlu0 %1471
  %1473 = vrot.lane.b32.xlu0 %v1159, 8
  %v1474 = vpop.permute.xlu0 %1473
  %1475 = vrot.lane.b32.xlu0 %v1161, 8
  %v1476 = vpop.permute.xlu0 %1475
  %1477 = vrot.lane.b32.xlu0 %v1164, 8
  %v1478 = vpop.permute.xlu0 %1477
  %1479 = vrot.lane.b32.xlu0 %v1166, 8
  %v1480 = vpop.permute.xlu0 %1479
  %1481 = vrot.lane.b32.xlu0 %v1169, 8
  %v1482 = vpop.permute.xlu0 %1481
  %1483 = vrot.lane.b32.xlu0 %v1171, 8
  %v1484 = vpop.permute.xlu0 %1483
  %1485 = vrot.lane.b32.xlu0 %v1174, 8
  %v1486 = vpop.permute.xlu0 %1485
  %1487 = vrot.lane.b32.xlu0 %v1176, 8
  %v1488 = vpop.permute.xlu0 %1487
  %1489 = vrot.lane.b32.xlu0 %v1179, 8
  %v1490 = vpop.permute.xlu0 %1489
  %1491 = vrot.lane.b32.xlu0 %v1181, 8
  %v1492 = vpop.permute.xlu0 %1491
  %1493 = vrot.lane.b32.xlu0 %v1184, 8
  %v1494 = vpop.permute.xlu0 %1493
  %1495 = vrot.lane.b32.xlu0 %v1186, 8
  %v1496 = vpop.permute.xlu0 %1495
  %1497 = vrot.lane.b32.xlu0 %v1189, 8
  %v1498 = vpop.permute.xlu0 %1497
  %1499 = vrot.lane.b32.xlu0 %v1191, 8
  %v1500 = vpop.permute.xlu0 %1499
  %1501 = vrot.lane.b32.xlu0 %v1194, 8
  %v1502 = vpop.permute.xlu0 %1501
  %1503 = vrot.lane.b32.xlu0 %v1196, 8
  %v1504 = vpop.permute.xlu0 %1503
  %1505 = vrot.lane.b32.xlu0 %v1199, 8
  %v1506 = vpop.permute.xlu0 %1505
  %1507 = vrot.lane.b32.xlu0 %v1201, 8
  %v1508 = vpop.permute.xlu0 %1507
  %1509 = vrot.lane.b32.xlu0 %v1204, 8
  %v1510 = vpop.permute.xlu0 %1509
  %1511 = vrot.lane.b32.xlu0 %v1206, 8
  %v1512 = vpop.permute.xlu0 %1511
  %1513 = vrot.lane.b32.xlu0 %v1209, 8
  %v1514 = vpop.permute.xlu0 %1513
  %1515 = vrot.lane.b32.xlu0 %v1211, 8
  %v1516 = vpop.permute.xlu0 %1515
  %1517 = vrot.lane.b32.xlu0 %v1214, 8
  %v1518 = vpop.permute.xlu0 %1517
  %1519 = vrot.lane.b32.xlu0 %v1216, 8
  %v1520 = vpop.permute.xlu0 %1519
  %1521 = vrot.lane.b32.xlu0 %v1219, 8
  %v1522 = vpop.permute.xlu0 %1521
  %1523 = vrot.lane.b32.xlu0 %v1221, 8
  %v1524 = vpop.permute.xlu0 %1523
  %1525 = vrot.lane.b32.xlu0 %v1224, 8
  %v1526 = vpop.permute.xlu0 %1525
  %1527 = vrot.lane.b32.xlu0 %v1226, 8
  %v1528 = vpop.permute.xlu0 %1527
  %1529 = vrot.lane.b32.xlu0 %v1229, 8
  %v1530 = vpop.permute.xlu0 %1529
  %1531 = vrot.lane.b32.xlu0 %v1231, 8
  %v1532 = vpop.permute.xlu0 %1531
  %1533 = vrot.lane.b32.xlu0 %v1234, 8
  %v1534 = vpop.permute.xlu0 %1533
  %1535 = vrot.lane.b32.xlu0 %v1236, 8
  %v1536 = vpop.permute.xlu0 %1535
  %1537 = vrot.lane.b32.xlu0 %v1239, 8
  %v1538 = vpop.permute.xlu0 %1537
  %1539 = vrot.lane.b32.xlu0 %v1241, 8
  %v1540 = vpop.permute.xlu0 %1539
  %1541 = vrot.lane.b32.xlu0 %v1244, 8
  %v1542 = vpop.permute.xlu0 %1541
  %1543 = vrot.lane.b32.xlu0 %v1246, 8
  %v1544 = vpop.permute.xlu0 %1543
  %1545 = vrot.lane.b32.xlu0 %v1249, 8
  %v1546 = vpop.permute.xlu0 %1545
  %1547 = vrot.lane.b32.xlu0 %v1251, 8
  %v1548 = vpop.permute.xlu0 %1547
  %1549 = vrot.lane.b32.xlu0 %v1254, 8
  %v1550 = vpop.permute.xlu0 %1549
  %1551 = vrot.lane.b32.xlu0 %v1256, 8
  %v1552 = vpop.permute.xlu0 %1551
  %1553 = vrot.lane.b32.xlu0 %v1259, 8
  %v1554 = vpop.permute.xlu0 %1553
  %1555 = vrot.lane.b32.xlu0 %v1261, 8
  %v1556 = vpop.permute.xlu0 %1555
  %1557 = vrot.lane.b32.xlu0 %v1264, 8
  %v1558 = vpop.permute.xlu0 %1557
  %1559 = vrot.lane.b32.xlu0 %v1266, 8
  %v1560 = vpop.permute.xlu0 %1559
  %1561 = vrot.lane.b32.xlu0 %v1269, 8
  %v1562 = vpop.permute.xlu0 %1561
  %1563 = vrot.lane.b32.xlu0 %v1271, 8
  %v1564 = vpop.permute.xlu0 %1563
  %1565 = vrot.lane.b32.xlu0 %v1274, 8
  %v1566 = vpop.permute.xlu0 %1565
  %1567 = vrot.lane.b32.xlu0 %v1276, 8
  %v1568 = vpop.permute.xlu0 %1567
  %1569 = vrot.lane.b32.xlu0 %v1279, 8
  %v1570 = vpop.permute.xlu0 %1569
  %1571 = vrot.lane.b32.xlu0 %v1281, 8
  %v1572 = vpop.permute.xlu0 %1571
  %1573 = vrot.lane.b32.xlu0 %v1284, 8
  %v1574 = vpop.permute.xlu0 %1573
  %1575 = vrot.lane.b32.xlu0 %v1286, 8
  %v1576 = vpop.permute.xlu0 %1575
  %1577 = vrot.lane.b32.xlu0 %v1289, 8
  %v1578 = vpop.permute.xlu0 %1577
  %1579 = vrot.lane.b32.xlu0 %v1291, 8
  %v1580 = vpop.permute.xlu0 %1579
  %1581 = vrot.lane.b32.xlu0 %v1294, 8
  %v1582 = vpop.permute.xlu0 %1581
  %1583 = vrot.lane.b32.xlu0 %v1296, 8
  %v1584 = vpop.permute.xlu0 %1583
  %1585 = vrot.lane.b32.xlu0 %v1299, 8
  %v1586 = vpop.permute.xlu0 %1585
  %1587 = vrot.lane.b32.xlu0 %v1301, 8
  %v1588 = vpop.permute.xlu0 %1587
  %1589 = vrot.lane.b32.xlu0 %v1304, 8
  %v1590 = vpop.permute.xlu0 %1589
  %1591 = vrot.lane.b32.xlu0 %v1306, 8
  %v1592 = vpop.permute.xlu0 %1591
  %1593 = vrot.lane.b32.xlu0 %v1309, 8
  %v1594 = vpop.permute.xlu0 %1593
  %1595 = vrot.lane.b32.xlu0 %v1311, 8
  %v1596 = vpop.permute.xlu0 %1595
  %1597 = vrot.lane.b32.xlu0 %v1314, 8
  %v1598 = vpop.permute.xlu0 %1597
  %1599 = vrot.lane.b32.xlu0 %v1316, 8
  %v1600 = vpop.permute.xlu0 %1599
  %1601 = vrot.lane.b32.xlu0 %v1319, 8
  %v1602 = vpop.permute.xlu0 %1601
  %1603 = vrot.lane.b32.xlu0 %v1321, 8
  %v1604 = vpop.permute.xlu0 %1603
  %1605 = vrot.lane.b32.xlu0 %v1324, 8
  %v1606 = vpop.permute.xlu0 %1605
  %1607 = vrot.lane.b32.xlu0 %v1326, 8
  %v1608 = vpop.permute.xlu0 %1607
  %1609 = vrot.lane.b32.xlu0 %v1329, 8
  %v1610 = vpop.permute.xlu0 %1609
  %1611 = vrot.lane.b32.xlu0 %v1331, 8
  %v1612 = vpop.permute.xlu0 %1611
  %1613 = vrot.lane.b32.xlu0 %v1334, 8
  %v1614 = vpop.permute.xlu0 %1613
  %1615 = vrot.lane.b32.xlu0 %v1336, 8
  %v1616 = vpop.permute.xlu0 %1615
  %1617 = vrot.lane.b32.xlu0 %v1339, 8
  %v1618 = vpop.permute.xlu0 %1617
  %1619 = vrot.lane.b32.xlu0 %v1341, 8
  %v1620 = vpop.permute.xlu0 %1619
  %1621 = vrot.lane.b32.xlu0 %v1344, 8
  %v1622 = vpop.permute.xlu0 %1621
  %1623 = vrot.lane.b32.xlu0 %v1346, 8
  %v1624 = vpop.permute.xlu0 %1623
  %1625 = vrot.lane.b32.xlu0 %v1349, 8
  %v1626 = vpop.permute.xlu0 %1625
  %1627 = vrot.lane.b32.xlu0 %v1351, 8
  %v1628 = vpop.permute.xlu0 %1627
  %1629 = vrot.lane.b32.xlu0 %v1354, 8
  %v1630 = vpop.permute.xlu0 %1629
  %1631 = vrot.lane.b32.xlu0 %v1356, 8
  %v1632 = vpop.permute.xlu0 %1631
  %1633 = vrot.lane.b32.xlu0 %v1359, 8
  %v1634 = vpop.permute.xlu0 %1633
  %1635 = vrot.lane.b32.xlu0 %v1361, 8
  %v1636 = vpop.permute.xlu0 %1635
  %1637 = vrot.lane.b32.xlu0 %v1364, 8
  %v1638 = vpop.permute.xlu0 %1637
  %1639 = vrot.lane.b32.xlu0 %v1366, 8
  %v1640 = vpop.permute.xlu0 %1639
  %1641 = vrot.lane.b32.xlu0 %v1369, 8
  %v1642 = vpop.permute.xlu0 %1641
  %1643 = vrot.lane.b32.xlu0 %v1371, 8
  %v1644 = vpop.permute.xlu0 %1643
  %1645 = vrot.lane.b32.xlu0 %v1374, 8
  %v1646 = vpop.permute.xlu0 %1645
  %1647 = vrot.lane.b32.xlu0 %v1376, 8
  %v1648 = vpop.permute.xlu0 %1647
  %1649 = vrot.lane.b32.xlu0 %v1379, 8
  %v1650 = vpop.permute.xlu0 %1649
  %1651 = vrot.lane.b32.xlu0 %v1381, 8
  %v1652 = vpop.permute.xlu0 %1651
  %1653 = vrot.lane.b32.xlu0 %v1384, 8
  %v1654 = vpop.permute.xlu0 %1653
  %1655 = vrot.lane.b32.xlu0 %v1386, 8
  %v1656 = vpop.permute.xlu0 %1655
  %1657 = vrot.lane.b32.xlu0 %v1389, 8
  %v1658 = vpop.permute.xlu0 %1657
  %1659 = vrot.lane.b32.xlu0 %v1391, 8
  %v1660 = vpop.permute.xlu0 %1659
  %1661 = vrot.lane.b32.xlu0 %v1394, 8
  %v1662 = vpop.permute.xlu0 %1661
  %1663 = vrot.lane.b32.xlu0 %v1396, 8
  %v1664 = vpop.permute.xlu0 %1663
  %1665 = vrot.lane.b32.xlu0 %v1399, 8
  %v1666 = vpop.permute.xlu0 %1665
  %1667 = vrot.lane.b32.xlu0 %v1401, 8
  %v1668 = vpop.permute.xlu0 %1667
  %1669 = vrot.lane.b32.xlu0 %v1404, 8
  %v1670 = vpop.permute.xlu0 %1669
  %1671 = vrot.lane.b32.xlu0 %v1406, 8
  %v1672 = vpop.permute.xlu0 %1671
  %1673 = vrot.lane.b32.xlu0 %v1409, 8
  %v1674 = vpop.permute.xlu0 %1673
  %1675 = vrot.lane.b32.xlu0 %v1411, 8
  %v1676 = vpop.permute.xlu0 %1675
  %1677 = vrot.lane.b32.xlu0 %v1414, 8
  %v1678 = vpop.permute.xlu0 %1677
  %1679 = vrot.lane.b32.xlu0 %v1416, 8
  %v1680 = vpop.permute.xlu0 %1679
  %1681 = vrot.lane.b32.xlu0 %v1419, 8
  %v1682 = vpop.permute.xlu0 %1681
  %1683 = vrot.lane.b32.xlu0 %v1421, 8
  %v1684 = vpop.permute.xlu0 %1683
  %1685 = vrot.lane.b32.xlu0 %v1424, 8
  %v1686 = vpop.permute.xlu0 %1685
  %1687 = vrot.lane.b32.xlu0 %v1426, 8
  %v1688 = vpop.permute.xlu0 %1687
  %1689 = vrot.lane.b32.xlu0 %v1429, 8
  %v1690 = vpop.permute.xlu0 %1689
  %1691 = vrot.lane.b32.xlu0 %v1431, 8
  %v1692 = vpop.permute.xlu0 %1691
  %1693 = vrot.lane.b32.xlu0 %v1434, 8
  %v1694 = vpop.permute.xlu0 %1693
  %1695 = vrot.lane.b32.xlu0 %v1436, 8
  %v1696 = vpop.permute.xlu0 %1695
  %1697 = vrot.lane.b32.xlu0 %v1439, 8
  %v1698 = vpop.permute.xlu0 %1697
  %1699 = vrot.lane.b32.xlu0 %v1441, 8
  %v1700 = vpop.permute.xlu0 %1699
  %1701 = vrot.lane.b32.xlu0 %v1444, 8
  %v1702 = vpop.permute.xlu0 %1701
  %1703 = vrot.lane.b32.xlu0 %v1446, 8
  %v1704 = vpop.permute.xlu0 %1703
  %1705 = vrot.lane.b32.xlu0 %v1449, 8
  %v1706 = vpop.permute.xlu0 %1705
  %1707 = vrot.lane.b32.xlu0 %v1451, 8
  %v1708 = vpop.permute.xlu0 %1707
  %1709 = vrot.lane.b32.xlu0 %v1454, 8
  %v1710 = vpop.permute.xlu0 %1709
  %1711 = vrot.lane.b32.xlu0 %v1456, 8
  %v1712 = vpop.permute.xlu0 %1711
  %1849 = vrot.lane.b32.xlu0 %v26, 12
  %v1850 = vpop.permute.xlu0 %1849
  %1851 = vrot.lane.b32.xlu0 %v27, 12
  %v1852 = vpop.permute.xlu0 %1851
  %1853 = vrot.lane.b32.xlu0 %v29, 12
  %v1854 = vpop.permute.xlu0 %1853
  %1855 = vrot.lane.b32.xlu0 %v30, 12
  %v1856 = vpop.permute.xlu0 %1855
  %1857 = vrot.lane.b32.xlu0 %v32, 12
  %v1858 = vpop.permute.xlu0 %1857
  %1859 = vrot.lane.b32.xlu0 %v33, 12
  %v1860 = vpop.permute.xlu0 %1859
  %1861 = vrot.lane.b32.xlu0 %v35, 12
  %v1862 = vpop.permute.xlu0 %1861
  %1863 = vrot.lane.b32.xlu0 %v36, 12
  %v1864 = vpop.permute.xlu0 %1863
  %1865 = vrot.lane.b32.xlu0 %v38, 12
  %v1866 = vpop.permute.xlu0 %1865
  %1867 = vrot.lane.b32.xlu0 %v39, 12
  %v1868 = vpop.permute.xlu0 %1867
  %1869 = vrot.lane.b32.xlu0 %v41, 12
  %v1870 = vpop.permute.xlu0 %1869
  %1871 = vrot.lane.b32.xlu0 %v42, 12
  %v1872 = vpop.permute.xlu0 %1871
  %1873 = vrot.lane.b32.xlu0 %v44, 12
  %v1874 = vpop.permute.xlu0 %1873
  %1875 = vrot.lane.b32.xlu0 %v45, 12
  %v1876 = vpop.permute.xlu0 %1875
  %1877 = vrot.lane.b32.xlu0 %v47, 12
  %v1878 = vpop.permute.xlu0 %1877
  %1879 = vrot.lane.b32.xlu0 %v48, 12
  %v1880 = vpop.permute.xlu0 %1879
  %1881 = vrot.lane.b32.xlu0 %v50, 12
  %v1882 = vpop.permute.xlu0 %1881
  %1883 = vrot.lane.b32.xlu0 %v51, 12
  %v1884 = vpop.permute.xlu0 %1883
  %1885 = vrot.lane.b32.xlu0 %v53, 12
  %v1886 = vpop.permute.xlu0 %1885
  %1887 = vrot.lane.b32.xlu0 %v54, 12
  %v1888 = vpop.permute.xlu0 %1887
  %1889 = vrot.lane.b32.xlu0 %v56, 12
  %v1890 = vpop.permute.xlu0 %1889
  %1891 = vrot.lane.b32.xlu0 %v57, 12
  %v1892 = vpop.permute.xlu0 %1891
  %1893 = vrot.lane.b32.xlu0 %v59, 12
  %v1894 = vpop.permute.xlu0 %1893
  %1895 = vrot.lane.b32.xlu0 %v60, 12
  %v1896 = vpop.permute.xlu0 %1895
  %1897 = vrot.lane.b32.xlu0 %v62, 12
  %v1898 = vpop.permute.xlu0 %1897
  %1899 = vrot.lane.b32.xlu0 %v63, 12
  %v1900 = vpop.permute.xlu0 %1899
  %1901 = vrot.lane.b32.xlu0 %v65, 12
  %v1902 = vpop.permute.xlu0 %1901
  %1903 = vrot.lane.b32.xlu0 %v66, 12
  %v1904 = vpop.permute.xlu0 %1903
  %1905 = vrot.lane.b32.xlu0 %v68, 12
  %v1906 = vpop.permute.xlu0 %1905
  %1907 = vrot.lane.b32.xlu0 %v69, 12
  %v1908 = vpop.permute.xlu0 %1907
  %1909 = vrot.lane.b32.xlu0 %v71, 12
  %v1910 = vpop.permute.xlu0 %1909
  %1911 = vrot.lane.b32.xlu0 %v72, 12
  %v1912 = vpop.permute.xlu0 %1911
  %1913 = vrot.lane.b32.xlu0 %v80, 12
  %v1914 = vpop.permute.xlu0 %1913
  %1915 = vrot.lane.b32.xlu0 %v81, 12
  %v1916 = vpop.permute.xlu0 %1915
  %1917 = vrot.lane.b32.xlu0 %v83, 12
  %v1918 = vpop.permute.xlu0 %1917
  %1919 = vrot.lane.b32.xlu0 %v84, 12
  %v1920 = vpop.permute.xlu0 %1919
  %1921 = vrot.lane.b32.xlu0 %v86, 12
  %v1922 = vpop.permute.xlu0 %1921
  %1923 = vrot.lane.b32.xlu0 %v87, 12
  %v1924 = vpop.permute.xlu0 %1923
  %1925 = vrot.lane.b32.xlu0 %v89, 12
  %v1926 = vpop.permute.xlu0 %1925
  %1927 = vrot.lane.b32.xlu0 %v90, 12
  %v1928 = vpop.permute.xlu0 %1927
  %1929 = vrot.lane.b32.xlu0 %v92, 12
  %v1930 = vpop.permute.xlu0 %1929
  %1931 = vrot.lane.b32.xlu0 %v93, 12
  %v1932 = vpop.permute.xlu0 %1931
  %1933 = vrot.lane.b32.xlu0 %v95, 12
  %v1934 = vpop.permute.xlu0 %1933
  %1935 = vrot.lane.b32.xlu0 %v96, 12
  %v1936 = vpop.permute.xlu0 %1935
  %1937 = vrot.lane.b32.xlu0 %v98, 12
  %v1938 = vpop.permute.xlu0 %1937
  %1939 = vrot.lane.b32.xlu0 %v99, 12
  %v1940 = vpop.permute.xlu0 %1939
  %1941 = vrot.lane.b32.xlu0 %v101, 12
  %v1942 = vpop.permute.xlu0 %1941
  %1943 = vrot.lane.b32.xlu0 %v102, 12
  %v1944 = vpop.permute.xlu0 %1943
  %1945 = vrot.lane.b32.xlu0 %v104, 12
  %v1946 = vpop.permute.xlu0 %1945
  %1947 = vrot.lane.b32.xlu0 %v105, 12
  %v1948 = vpop.permute.xlu0 %1947
  %1949 = vrot.lane.b32.xlu0 %v107, 12
  %v1950 = vpop.permute.xlu0 %1949
  %1951 = vrot.lane.b32.xlu0 %v108, 12
  %v1952 = vpop.permute.xlu0 %1951
  %1953 = vrot.lane.b32.xlu0 %v110, 12
  %v1954 = vpop.permute.xlu0 %1953
  %1955 = vrot.lane.b32.xlu0 %v111, 12
  %v1956 = vpop.permute.xlu0 %1955
  %1957 = vrot.lane.b32.xlu0 %v113, 12
  %v1958 = vpop.permute.xlu0 %1957
  %1959 = vrot.lane.b32.xlu0 %v114, 12
  %v1960 = vpop.permute.xlu0 %1959
  %1961 = vrot.lane.b32.xlu0 %v116, 12
  %v1962 = vpop.permute.xlu0 %1961
  %1963 = vrot.lane.b32.xlu0 %v117, 12
  %v1964 = vpop.permute.xlu0 %1963
  %1965 = vrot.lane.b32.xlu0 %v119, 12
  %v1966 = vpop.permute.xlu0 %1965
  %1967 = vrot.lane.b32.xlu0 %v120, 12
  %v1968 = vpop.permute.xlu0 %1967
  %1969 = vrot.lane.b32.xlu0 %v122, 12
  %v1970 = vpop.permute.xlu0 %1969
  %1971 = vrot.lane.b32.xlu0 %v123, 12
  %v1972 = vpop.permute.xlu0 %1971
  %1973 = vrot.lane.b32.xlu0 %v125, 12
  %v1974 = vpop.permute.xlu0 %1973
  %1975 = vrot.lane.b32.xlu0 %v126, 12
  %v1976 = vpop.permute.xlu0 %1975
  %1977 = vrot.lane.b32.xlu0 %v134, 12
  %v1978 = vpop.permute.xlu0 %1977
  %1979 = vrot.lane.b32.xlu0 %v135, 12
  %v1980 = vpop.permute.xlu0 %1979
  %1981 = vrot.lane.b32.xlu0 %v137, 12
  %v1982 = vpop.permute.xlu0 %1981
  %1983 = vrot.lane.b32.xlu0 %v138, 12
  %v1984 = vpop.permute.xlu0 %1983
  %1985 = vrot.lane.b32.xlu0 %v140, 12
  %v1986 = vpop.permute.xlu0 %1985
  %1987 = vrot.lane.b32.xlu0 %v141, 12
  %v1988 = vpop.permute.xlu0 %1987
  %1989 = vrot.lane.b32.xlu0 %v143, 12
  %v1990 = vpop.permute.xlu0 %1989
  %1991 = vrot.lane.b32.xlu0 %v144, 12
  %v1992 = vpop.permute.xlu0 %1991
  %1993 = vrot.lane.b32.xlu0 %v146, 12
  %v1994 = vpop.permute.xlu0 %1993
  %1995 = vrot.lane.b32.xlu0 %v147, 12
  %v1996 = vpop.permute.xlu0 %1995
  %1997 = vrot.lane.b32.xlu0 %v149, 12
  %v1998 = vpop.permute.xlu0 %1997
  %1999 = vrot.lane.b32.xlu0 %v150, 12
  %v2000 = vpop.permute.xlu0 %1999
  %2001 = vrot.lane.b32.xlu0 %v152, 12
  %v2002 = vpop.permute.xlu0 %2001
  %2003 = vrot.lane.b32.xlu0 %v153, 12
  %v2004 = vpop.permute.xlu0 %2003
  %2005 = vrot.lane.b32.xlu0 %v155, 12
  %v2006 = vpop.permute.xlu0 %2005
  %2007 = vrot.lane.b32.xlu0 %v156, 12
  %v2008 = vpop.permute.xlu0 %2007
  %2009 = vrot.lane.b32.xlu0 %v158, 12
  %v2010 = vpop.permute.xlu0 %2009
  %2011 = vrot.lane.b32.xlu0 %v159, 12
  %v2012 = vpop.permute.xlu0 %2011
  %2013 = vrot.lane.b32.xlu0 %v161, 12
  %v2014 = vpop.permute.xlu0 %2013
  %2015 = vrot.lane.b32.xlu0 %v162, 12
  %v2016 = vpop.permute.xlu0 %2015
  %2017 = vrot.lane.b32.xlu0 %v164, 12
  %v2018 = vpop.permute.xlu0 %2017
  %2019 = vrot.lane.b32.xlu0 %v165, 12
  %v2020 = vpop.permute.xlu0 %2019
  %2021 = vrot.lane.b32.xlu0 %v167, 12
  %v2022 = vpop.permute.xlu0 %2021
  %2023 = vrot.lane.b32.xlu0 %v168, 12
  %v2024 = vpop.permute.xlu0 %2023
  %2025 = vrot.lane.b32.xlu0 %v170, 12
  %v2026 = vpop.permute.xlu0 %2025
  %2027 = vrot.lane.b32.xlu0 %v171, 12
  %v2028 = vpop.permute.xlu0 %2027
  %2029 = vrot.lane.b32.xlu0 %v173, 12
  %v2030 = vpop.permute.xlu0 %2029
  %2031 = vrot.lane.b32.xlu0 %v174, 12
  %v2032 = vpop.permute.xlu0 %2031
  %2033 = vrot.lane.b32.xlu0 %v176, 12
  %v2034 = vpop.permute.xlu0 %2033
  %2035 = vrot.lane.b32.xlu0 %v177, 12
  %v2036 = vpop.permute.xlu0 %2035
  %2037 = vrot.lane.b32.xlu0 %v179, 12
  %v2038 = vpop.permute.xlu0 %2037
  %2039 = vrot.lane.b32.xlu0 %v180, 12
  %v2040 = vpop.permute.xlu0 %2039
  %2041 = vrot.lane.b32.xlu0 %v188, 12
  %v2042 = vpop.permute.xlu0 %2041
  %2043 = vrot.lane.b32.xlu0 %v189, 12
  %v2044 = vpop.permute.xlu0 %2043
  %2045 = vrot.lane.b32.xlu0 %v191, 12
  %v2046 = vpop.permute.xlu0 %2045
  %2047 = vrot.lane.b32.xlu0 %v192, 12
  %v2048 = vpop.permute.xlu0 %2047
  %2049 = vrot.lane.b32.xlu0 %v194, 12
  %v2050 = vpop.permute.xlu0 %2049
  %2051 = vrot.lane.b32.xlu0 %v195, 12
  %v2052 = vpop.permute.xlu0 %2051
  %2053 = vrot.lane.b32.xlu0 %v197, 12
  %v2054 = vpop.permute.xlu0 %2053
  %2055 = vrot.lane.b32.xlu0 %v198, 12
  %v2056 = vpop.permute.xlu0 %2055
  %2057 = vrot.lane.b32.xlu0 %v200, 12
  %v2058 = vpop.permute.xlu0 %2057
  %2059 = vrot.lane.b32.xlu0 %v201, 12
  %v2060 = vpop.permute.xlu0 %2059
  %2061 = vrot.lane.b32.xlu0 %v203, 12
  %v2062 = vpop.permute.xlu0 %2061
  %2063 = vrot.lane.b32.xlu0 %v204, 12
  %v2064 = vpop.permute.xlu0 %2063
  %2065 = vrot.lane.b32.xlu0 %v206, 12
  %v2066 = vpop.permute.xlu0 %2065
  %2067 = vrot.lane.b32.xlu0 %v207, 12
  %v2068 = vpop.permute.xlu0 %2067
  %2069 = vrot.lane.b32.xlu0 %v209, 12
  %v2070 = vpop.permute.xlu0 %2069
  %2071 = vrot.lane.b32.xlu0 %v210, 12
  %v2072 = vpop.permute.xlu0 %2071
  %2073 = vrot.lane.b32.xlu0 %v212, 12
  %v2074 = vpop.permute.xlu0 %2073
  %2075 = vrot.lane.b32.xlu0 %v213, 12
  %v2076 = vpop.permute.xlu0 %2075
  %2077 = vrot.lane.b32.xlu0 %v215, 12
  %v2078 = vpop.permute.xlu0 %2077
  %2079 = vrot.lane.b32.xlu0 %v216, 12
  %v2080 = vpop.permute.xlu0 %2079
  %2081 = vrot.lane.b32.xlu0 %v218, 12
  %v2082 = vpop.permute.xlu0 %2081
  %2083 = vrot.lane.b32.xlu0 %v219, 12
  %v2084 = vpop.permute.xlu0 %2083
  %2085 = vrot.lane.b32.xlu0 %v221, 12
  %v2086 = vpop.permute.xlu0 %2085
  %2087 = vrot.lane.b32.xlu0 %v222, 12
  %v2088 = vpop.permute.xlu0 %2087
  %2089 = vrot.lane.b32.xlu0 %v224, 12
  %v2090 = vpop.permute.xlu0 %2089
  %2091 = vrot.lane.b32.xlu0 %v225, 12
  %v2092 = vpop.permute.xlu0 %2091
  %2093 = vrot.lane.b32.xlu0 %v227, 12
  %v2094 = vpop.permute.xlu0 %2093
  %2095 = vrot.lane.b32.xlu0 %v228, 12
  %v2096 = vpop.permute.xlu0 %2095
  %2097 = vrot.lane.b32.xlu0 %v230, 12
  %v2098 = vpop.permute.xlu0 %2097
  %2099 = vrot.lane.b32.xlu0 %v231, 12
  %v2100 = vpop.permute.xlu0 %2099
  %2101 = vrot.lane.b32.xlu0 %v233, 12
  %v2102 = vpop.permute.xlu0 %2101
  %2103 = vrot.lane.b32.xlu0 %v234, 12
  %v2104 = vpop.permute.xlu0 %2103
  %v2237 = vrot.slane %v71, 1
  %v2238 = vrot.slane %v72, 1
  %v2239 = vsel %vm431, %v2237, %v2238
  %v2240 = vrot.slane %v73, 1
  %v2241 = vsel %vm431, %v2238, %v2240
  %v2242 = vrot.slane %v125, 1
  %v2243 = vrot.slane %v126, 1
  %v2244 = vsel %vm431, %v2242, %v2243
  %v2245 = vrot.slane %v127, 1
  %v2246 = vsel %vm431, %v2243, %v2245
  %v2247 = vrot.slane %v179, 1
  %v2248 = vrot.slane %v180, 1
  %v2249 = vsel %vm431, %v2247, %v2248
  %v2250 = vrot.slane %v181, 1
  %v2251 = vsel %vm431, %v2248, %v2250
  %v2252 = vrot.slane %v233, 1
  %v2253 = vrot.slane %v234, 1
  %v2254 = vsel %vm431, %v2252, %v2253
  %v2255 = vrot.slane %v235, 1
  %v2256 = vsel %vm431, %v2253, %v2255
  %2257 = vrot.lane.b32.xlu0 %v439, 16
  %v2258 = vpop.permute.xlu0 %2257
  %2259 = vrot.lane.b32.xlu0 %v441, 16
  %v2260 = vpop.permute.xlu0 %2259
  %2261 = vrot.lane.b32.xlu0 %v444, 16
  %v2262 = vpop.permute.xlu0 %2261
  %2263 = vrot.lane.b32.xlu0 %v446, 16
  %v2264 = vpop.permute.xlu0 %2263
  %2265 = vrot.lane.b32.xlu0 %v449, 16
  %v2266 = vpop.permute.xlu0 %2265
  %2267 = vrot.lane.b32.xlu0 %v451, 16
  %v2268 = vpop.permute.xlu0 %2267
  %2269 = vrot.lane.b32.xlu0 %v454, 16
  %v2270 = vpop.permute.xlu0 %2269
  %2271 = vrot.lane.b32.xlu0 %v456, 16
  %v2272 = vpop.permute.xlu0 %2271
  %2273 = vrot.lane.b32.xlu0 %v459, 16
  %v2274 = vpop.permute.xlu0 %2273
  %2275 = vrot.lane.b32.xlu0 %v461, 16
  %v2276 = vpop.permute.xlu0 %2275
  %2277 = vrot.lane.b32.xlu0 %v464, 16
  %v2278 = vpop.permute.xlu0 %2277
  %2279 = vrot.lane.b32.xlu0 %v466, 16
  %v2280 = vpop.permute.xlu0 %2279
  %2281 = vrot.lane.b32.xlu0 %v469, 16
  %v2282 = vpop.permute.xlu0 %2281
  %2283 = vrot.lane.b32.xlu0 %v471, 16
  %v2284 = vpop.permute.xlu0 %2283
  %2285 = vrot.lane.b32.xlu0 %v474, 16
  %v2286 = vpop.permute.xlu0 %2285
  %2287 = vrot.lane.b32.xlu0 %v476, 16
  %v2288 = vpop.permute.xlu0 %2287
  %2289 = vrot.lane.b32.xlu0 %v479, 16
  %v2290 = vpop.permute.xlu0 %2289
  %2291 = vrot.lane.b32.xlu0 %v481, 16
  %v2292 = vpop.permute.xlu0 %2291
  %2293 = vrot.lane.b32.xlu0 %v484, 16
  %v2294 = vpop.permute.xlu0 %2293
  %2295 = vrot.lane.b32.xlu0 %v486, 16
  %v2296 = vpop.permute.xlu0 %2295
  %2297 = vrot.lane.b32.xlu0 %v489, 16
  %v2298 = vpop.permute.xlu0 %2297
  %2299 = vrot.lane.b32.xlu0 %v491, 16
  %v2300 = vpop.permute.xlu0 %2299
  %2301 = vrot.lane.b32.xlu0 %v494, 16
  %v2302 = vpop.permute.xlu0 %2301
  %2303 = vrot.lane.b32.xlu0 %v496, 16
  %v2304 = vpop.permute.xlu0 %2303
  %2305 = vrot.lane.b32.xlu0 %v499, 16
  %v2306 = vpop.permute.xlu0 %2305
  %2307 = vrot.lane.b32.xlu0 %v501, 16
  %v2308 = vpop.permute.xlu0 %2307
  %2309 = vrot.lane.b32.xlu0 %v504, 16
  %v2310 = vpop.permute.xlu0 %2309
  %2311 = vrot.lane.b32.xlu0 %v506, 16
  %v2312 = vpop.permute.xlu0 %2311
  %2313 = vrot.lane.b32.xlu0 %v509, 16
  %v2314 = vpop.permute.xlu0 %2313
  %2315 = vrot.lane.b32.xlu0 %v511, 16
  %v2316 = vpop.permute.xlu0 %2315
  %2317 = vrot.lane.b32.xlu0 %v2239, 16
  %v2318 = vpop.permute.xlu0 %2317
  %2319 = vrot.lane.b32.xlu0 %v2241, 16
  %v2320 = vpop.permute.xlu0 %2319
  %2321 = vrot.lane.b32.xlu0 %v519, 16
  %v2322 = vpop.permute.xlu0 %2321
  %2323 = vrot.lane.b32.xlu0 %v521, 16
  %v2324 = vpop.permute.xlu0 %2323
  %2325 = vrot.lane.b32.xlu0 %v524, 16
  %v2326 = vpop.permute.xlu0 %2325
  %2327 = vrot.lane.b32.xlu0 %v526, 16
  %v2328 = vpop.permute.xlu0 %2327
  %2329 = vrot.lane.b32.xlu0 %v529, 16
  %v2330 = vpop.permute.xlu0 %2329
  %2331 = vrot.lane.b32.xlu0 %v531, 16
  %v2332 = vpop.permute.xlu0 %2331
  %2333 = vrot.lane.b32.xlu0 %v534, 16
  %v2334 = vpop.permute.xlu0 %2333
  %2335 = vrot.lane.b32.xlu0 %v536, 16
  %v2336 = vpop.permute.xlu0 %2335
  %2337 = vrot.lane.b32.xlu0 %v539, 16
  %v2338 = vpop.permute.xlu0 %2337
  %2339 = vrot.lane.b32.xlu0 %v541, 16
  %v2340 = vpop.permute.xlu0 %2339
  %2341 = vrot.lane.b32.xlu0 %v544, 16
  %v2342 = vpop.permute.xlu0 %2341
  %2343 = vrot.lane.b32.xlu0 %v546, 16
  %v2344 = vpop.permute.xlu0 %2343
  %2345 = vrot.lane.b32.xlu0 %v549, 16
  %v2346 = vpop.permute.xlu0 %2345
  %2347 = vrot.lane.b32.xlu0 %v551, 16
  %v2348 = vpop.permute.xlu0 %2347
  %2349 = vrot.lane.b32.xlu0 %v554, 16
  %v2350 = vpop.permute.xlu0 %2349
  %2351 = vrot.lane.b32.xlu0 %v556, 16
  %v2352 = vpop.permute.xlu0 %2351
  %2353 = vrot.lane.b32.xlu0 %v559, 16
  %v2354 = vpop.permute.xlu0 %2353
  %2355 = vrot.lane.b32.xlu0 %v561, 16
  %v2356 = vpop.permute.xlu0 %2355
  %2357 = vrot.lane.b32.xlu0 %v564, 16
  %v2358 = vpop.permute.xlu0 %2357
  %2359 = vrot.lane.b32.xlu0 %v566, 16
  %v2360 = vpop.permute.xlu0 %2359
  %2361 = vrot.lane.b32.xlu0 %v569, 16
  %v2362 = vpop.permute.xlu0 %2361
  %2363 = vrot.lane.b32.xlu0 %v571, 16
  %v2364 = vpop.permute.xlu0 %2363
  %2365 = vrot.lane.b32.xlu0 %v574, 16
  %v2366 = vpop.permute.xlu0 %2365
  %2367 = vrot.lane.b32.xlu0 %v576, 16
  %v2368 = vpop.permute.xlu0 %2367
  %2369 = vrot.lane.b32.xlu0 %v579, 16
  %v2370 = vpop.permute.xlu0 %2369
  %2371 = vrot.lane.b32.xlu0 %v581, 16
  %v2372 = vpop.permute.xlu0 %2371
  %2373 = vrot.lane.b32.xlu0 %v584, 16
  %v2374 = vpop.permute.xlu0 %2373
  %2375 = vrot.lane.b32.xlu0 %v586, 16
  %v2376 = vpop.permute.xlu0 %2375
  %2377 = vrot.lane.b32.xlu0 %v589, 16
  %v2378 = vpop.permute.xlu0 %2377
  %2379 = vrot.lane.b32.xlu0 %v591, 16
  %v2380 = vpop.permute.xlu0 %2379
  %2381 = vrot.lane.b32.xlu0 %v2244, 16
  %v2382 = vpop.permute.xlu0 %2381
  %2383 = vrot.lane.b32.xlu0 %v2246, 16
  %v2384 = vpop.permute.xlu0 %2383
  %2385 = vrot.lane.b32.xlu0 %v599, 16
  %v2386 = vpop.permute.xlu0 %2385
  %2387 = vrot.lane.b32.xlu0 %v601, 16
  %v2388 = vpop.permute.xlu0 %2387
  %2389 = vrot.lane.b32.xlu0 %v604, 16
  %v2390 = vpop.permute.xlu0 %2389
  %2391 = vrot.lane.b32.xlu0 %v606, 16
  %v2392 = vpop.permute.xlu0 %2391
  %2393 = vrot.lane.b32.xlu0 %v609, 16
  %v2394 = vpop.permute.xlu0 %2393
  %2395 = vrot.lane.b32.xlu0 %v611, 16
  %v2396 = vpop.permute.xlu0 %2395
  %2397 = vrot.lane.b32.xlu0 %v614, 16
  %v2398 = vpop.permute.xlu0 %2397
  %2399 = vrot.lane.b32.xlu0 %v616, 16
  %v2400 = vpop.permute.xlu0 %2399
  %2401 = vrot.lane.b32.xlu0 %v619, 16
  %v2402 = vpop.permute.xlu0 %2401
  %2403 = vrot.lane.b32.xlu0 %v621, 16
  %v2404 = vpop.permute.xlu0 %2403
  %2405 = vrot.lane.b32.xlu0 %v624, 16
  %v2406 = vpop.permute.xlu0 %2405
  %2407 = vrot.lane.b32.xlu0 %v626, 16
  %v2408 = vpop.permute.xlu0 %2407
  %2409 = vrot.lane.b32.xlu0 %v629, 16
  %v2410 = vpop.permute.xlu0 %2409
  %2411 = vrot.lane.b32.xlu0 %v631, 16
  %v2412 = vpop.permute.xlu0 %2411
  %2413 = vrot.lane.b32.xlu0 %v634, 16
  %v2414 = vpop.permute.xlu0 %2413
  %2415 = vrot.lane.b32.xlu0 %v636, 16
  %v2416 = vpop.permute.xlu0 %2415
  %2417 = vrot.lane.b32.xlu0 %v639, 16
  %v2418 = vpop.permute.xlu0 %2417
  %2419 = vrot.lane.b32.xlu0 %v641, 16
  %v2420 = vpop.permute.xlu0 %2419
  %2421 = vrot.lane.b32.xlu0 %v644, 16
  %v2422 = vpop.permute.xlu0 %2421
  %2423 = vrot.lane.b32.xlu0 %v646, 16
  %v2424 = vpop.permute.xlu0 %2423
  %2425 = vrot.lane.b32.xlu0 %v649, 16
  %v2426 = vpop.permute.xlu0 %2425
  %2427 = vrot.lane.b32.xlu0 %v651, 16
  %v2428 = vpop.permute.xlu0 %2427
  %2429 = vrot.lane.b32.xlu0 %v654, 16
  %v2430 = vpop.permute.xlu0 %2429
  %2431 = vrot.lane.b32.xlu0 %v656, 16
  %v2432 = vpop.permute.xlu0 %2431
  %2433 = vrot.lane.b32.xlu0 %v659, 16
  %v2434 = vpop.permute.xlu0 %2433
  %2435 = vrot.lane.b32.xlu0 %v661, 16
  %v2436 = vpop.permute.xlu0 %2435
  %2437 = vrot.lane.b32.xlu0 %v664, 16
  %v2438 = vpop.permute.xlu0 %2437
  %2439 = vrot.lane.b32.xlu0 %v666, 16
  %v2440 = vpop.permute.xlu0 %2439
  %2441 = vrot.lane.b32.xlu0 %v669, 16
  %v2442 = vpop.permute.xlu0 %2441
  %2443 = vrot.lane.b32.xlu0 %v671, 16
  %v2444 = vpop.permute.xlu0 %2443
  %2445 = vrot.lane.b32.xlu0 %v2249, 16
  %v2446 = vpop.permute.xlu0 %2445
  %2447 = vrot.lane.b32.xlu0 %v2251, 16
  %v2448 = vpop.permute.xlu0 %2447
  %2449 = vrot.lane.b32.xlu0 %v679, 16
  %v2450 = vpop.permute.xlu0 %2449
  %2451 = vrot.lane.b32.xlu0 %v681, 16
  %v2452 = vpop.permute.xlu0 %2451
  %2453 = vrot.lane.b32.xlu0 %v684, 16
  %v2454 = vpop.permute.xlu0 %2453
  %2455 = vrot.lane.b32.xlu0 %v686, 16
  %v2456 = vpop.permute.xlu0 %2455
  %2457 = vrot.lane.b32.xlu0 %v689, 16
  %v2458 = vpop.permute.xlu0 %2457
  %2459 = vrot.lane.b32.xlu0 %v691, 16
  %v2460 = vpop.permute.xlu0 %2459
  %2461 = vrot.lane.b32.xlu0 %v694, 16
  %v2462 = vpop.permute.xlu0 %2461
  %2463 = vrot.lane.b32.xlu0 %v696, 16
  %v2464 = vpop.permute.xlu0 %2463
  %2465 = vrot.lane.b32.xlu0 %v699, 16
  %v2466 = vpop.permute.xlu0 %2465
  %2467 = vrot.lane.b32.xlu0 %v701, 16
  %v2468 = vpop.permute.xlu0 %2467
  %2469 = vrot.lane.b32.xlu0 %v704, 16
  %v2470 = vpop.permute.xlu0 %2469
  %2471 = vrot.lane.b32.xlu0 %v706, 16
  %v2472 = vpop.permute.xlu0 %2471
  %2473 = vrot.lane.b32.xlu0 %v709, 16
  %v2474 = vpop.permute.xlu0 %2473
  %2475 = vrot.lane.b32.xlu0 %v711, 16
  %v2476 = vpop.permute.xlu0 %2475
  %2477 = vrot.lane.b32.xlu0 %v714, 16
  %v2478 = vpop.permute.xlu0 %2477
  %2479 = vrot.lane.b32.xlu0 %v716, 16
  %v2480 = vpop.permute.xlu0 %2479
  %2481 = vrot.lane.b32.xlu0 %v719, 16
  %v2482 = vpop.permute.xlu0 %2481
  %2483 = vrot.lane.b32.xlu0 %v721, 16
  %v2484 = vpop.permute.xlu0 %2483
  %2485 = vrot.lane.b32.xlu0 %v724, 16
  %v2486 = vpop.permute.xlu0 %2485
  %2487 = vrot.lane.b32.xlu0 %v726, 16
  %v2488 = vpop.permute.xlu0 %2487
  %2489 = vrot.lane.b32.xlu0 %v729, 16
  %v2490 = vpop.permute.xlu0 %2489
  %2491 = vrot.lane.b32.xlu0 %v731, 16
  %v2492 = vpop.permute.xlu0 %2491
  %2493 = vrot.lane.b32.xlu0 %v734, 16
  %v2494 = vpop.permute.xlu0 %2493
  %2495 = vrot.lane.b32.xlu0 %v736, 16
  %v2496 = vpop.permute.xlu0 %2495
  %2497 = vrot.lane.b32.xlu0 %v739, 16
  %v2498 = vpop.permute.xlu0 %2497
  %2499 = vrot.lane.b32.xlu0 %v741, 16
  %v2500 = vpop.permute.xlu0 %2499
  %2501 = vrot.lane.b32.xlu0 %v744, 16
  %v2502 = vpop.permute.xlu0 %2501
  %2503 = vrot.lane.b32.xlu0 %v746, 16
  %v2504 = vpop.permute.xlu0 %2503
  %2505 = vrot.lane.b32.xlu0 %v749, 16
  %v2506 = vpop.permute.xlu0 %2505
  %2507 = vrot.lane.b32.xlu0 %v751, 16
  %v2508 = vpop.permute.xlu0 %2507
  %2509 = vrot.lane.b32.xlu0 %v2254, 16
  %v2510 = vpop.permute.xlu0 %2509
  %2511 = vrot.lane.b32.xlu0 %v2256, 16
  %v2512 = vpop.permute.xlu0 %2511
  %v2641 = vrot.slane %v71, 2
  %v2642 = vrot.slane %v72, 2
  %v2643 = vsel %vm1136, %v2641, %v2642
  %v2644 = vrot.slane %v73, 2
  %v2645 = vsel %vm1136, %v2642, %v2644
  %v2646 = vrot.slane %v125, 2
  %v2647 = vrot.slane %v126, 2
  %v2648 = vsel %vm1136, %v2646, %v2647
  %v2649 = vrot.slane %v127, 2
  %v2650 = vsel %vm1136, %v2647, %v2649
  %v2651 = vrot.slane %v179, 2
  %v2652 = vrot.slane %v180, 2
  %v2653 = vsel %vm1136, %v2651, %v2652
  %v2654 = vrot.slane %v181, 2
  %v2655 = vsel %vm1136, %v2652, %v2654
  %v2656 = vrot.slane %v233, 2
  %v2657 = vrot.slane %v234, 2
  %v2658 = vsel %vm1136, %v2656, %v2657
  %v2659 = vrot.slane %v235, 2
  %v2660 = vsel %vm1136, %v2657, %v2659
  %2661 = vrot.lane.b32.xlu0 %v1144, 20
  %v2662 = vpop.permute.xlu0 %2661
  %2663 = vrot.lane.b32.xlu0 %v1146, 20
  %v2664 = vpop.permute.xlu0 %2663
  %2665 = vrot.lane.b32.xlu0 %v1149, 20
  %v2666 = vpop.permute.xlu0 %2665
  %2667 = vrot.lane.b32.xlu0 %v1151, 20
  %v2668 = vpop.permute.xlu0 %2667
  %2669 = vrot.lane.b32.xlu0 %v1154, 20
  %v2670 = vpop.permute.xlu0 %2669
  %2671 = vrot.lane.b32.xlu0 %v1156, 20
  %v2672 = vpop.permute.xlu0 %2671
  %2673 = vrot.lane.b32.xlu0 %v1159, 20
  %v2674 = vpop.permute.xlu0 %2673
  %2675 = vrot.lane.b32.xlu0 %v1161, 20
  %v2676 = vpop.permute.xlu0 %2675
  %2677 = vrot.lane.b32.xlu0 %v1164, 20
  %v2678 = vpop.permute.xlu0 %2677
  %2679 = vrot.lane.b32.xlu0 %v1166, 20
  %v2680 = vpop.permute.xlu0 %2679
  %2681 = vrot.lane.b32.xlu0 %v1169, 20
  %v2682 = vpop.permute.xlu0 %2681
  %2683 = vrot.lane.b32.xlu0 %v1171, 20
  %v2684 = vpop.permute.xlu0 %2683
  %2685 = vrot.lane.b32.xlu0 %v1174, 20
  %v2686 = vpop.permute.xlu0 %2685
  %2687 = vrot.lane.b32.xlu0 %v1176, 20
  %v2688 = vpop.permute.xlu0 %2687
  %2689 = vrot.lane.b32.xlu0 %v1179, 20
  %v2690 = vpop.permute.xlu0 %2689
  %2691 = vrot.lane.b32.xlu0 %v1181, 20
  %v2692 = vpop.permute.xlu0 %2691
  %2693 = vrot.lane.b32.xlu0 %v1184, 20
  %v2694 = vpop.permute.xlu0 %2693
  %2695 = vrot.lane.b32.xlu0 %v1186, 20
  %v2696 = vpop.permute.xlu0 %2695
  %2697 = vrot.lane.b32.xlu0 %v1189, 20
  %v2698 = vpop.permute.xlu0 %2697
  %2699 = vrot.lane.b32.xlu0 %v1191, 20
  %v2700 = vpop.permute.xlu0 %2699
  %2701 = vrot.lane.b32.xlu0 %v1194, 20
  %v2702 = vpop.permute.xlu0 %2701
  %2703 = vrot.lane.b32.xlu0 %v1196, 20
  %v2704 = vpop.permute.xlu0 %2703
  %2705 = vrot.lane.b32.xlu0 %v1199, 20
  %v2706 = vpop.permute.xlu0 %2705
  %2707 = vrot.lane.b32.xlu0 %v1201, 20
  %v2708 = vpop.permute.xlu0 %2707
  %2709 = vrot.lane.b32.xlu0 %v1204, 20
  %v2710 = vpop.permute.xlu0 %2709
  %2711 = vrot.lane.b32.xlu0 %v1206, 20
  %v2712 = vpop.permute.xlu0 %2711
  %2713 = vrot.lane.b32.xlu0 %v1209, 20
  %v2714 = vpop.permute.xlu0 %2713
  %2715 = vrot.lane.b32.xlu0 %v1211, 20
  %v2716 = vpop.permute.xlu0 %2715
  %2717 = vrot.lane.b32.xlu0 %v1214, 20
  %v2718 = vpop.permute.xlu0 %2717
  %2719 = vrot.lane.b32.xlu0 %v1216, 20
  %v2720 = vpop.permute.xlu0 %2719
  %2721 = vrot.lane.b32.xlu0 %v2643, 20
  %v2722 = vpop.permute.xlu0 %2721
  %2723 = vrot.lane.b32.xlu0 %v2645, 20
  %v2724 = vpop.permute.xlu0 %2723
  %2725 = vrot.lane.b32.xlu0 %v1224, 20
  %v2726 = vpop.permute.xlu0 %2725
  %2727 = vrot.lane.b32.xlu0 %v1226, 20
  %v2728 = vpop.permute.xlu0 %2727
  %2729 = vrot.lane.b32.xlu0 %v1229, 20
  %v2730 = vpop.permute.xlu0 %2729
  %2731 = vrot.lane.b32.xlu0 %v1231, 20
  %v2732 = vpop.permute.xlu0 %2731
  %2733 = vrot.lane.b32.xlu0 %v1234, 20
  %v2734 = vpop.permute.xlu0 %2733
  %2735 = vrot.lane.b32.xlu0 %v1236, 20
  %v2736 = vpop.permute.xlu0 %2735
  %2737 = vrot.lane.b32.xlu0 %v1239, 20
  %v2738 = vpop.permute.xlu0 %2737
  %2739 = vrot.lane.b32.xlu0 %v1241, 20
  %v2740 = vpop.permute.xlu0 %2739
  %2741 = vrot.lane.b32.xlu0 %v1244, 20
  %v2742 = vpop.permute.xlu0 %2741
  %2743 = vrot.lane.b32.xlu0 %v1246, 20
  %v2744 = vpop.permute.xlu0 %2743
  %2745 = vrot.lane.b32.xlu0 %v1249, 20
  %v2746 = vpop.permute.xlu0 %2745
  %2747 = vrot.lane.b32.xlu0 %v1251, 20
  %v2748 = vpop.permute.xlu0 %2747
  %2749 = vrot.lane.b32.xlu0 %v1254, 20
  %v2750 = vpop.permute.xlu0 %2749
  %2751 = vrot.lane.b32.xlu0 %v1256, 20
  %v2752 = vpop.permute.xlu0 %2751
  %2753 = vrot.lane.b32.xlu0 %v1259, 20
  %v2754 = vpop.permute.xlu0 %2753
  %2755 = vrot.lane.b32.xlu0 %v1261, 20
  %v2756 = vpop.permute.xlu0 %2755
  %2757 = vrot.lane.b32.xlu0 %v1264, 20
  %v2758 = vpop.permute.xlu0 %2757
  %2759 = vrot.lane.b32.xlu0 %v1266, 20
  %v2760 = vpop.permute.xlu0 %2759
  %2761 = vrot.lane.b32.xlu0 %v1269, 20
  %v2762 = vpop.permute.xlu0 %2761
  %2763 = vrot.lane.b32.xlu0 %v1271, 20
  %v2764 = vpop.permute.xlu0 %2763
  %2765 = vrot.lane.b32.xlu0 %v1274, 20
  %v2766 = vpop.permute.xlu0 %2765
  %2767 = vrot.lane.b32.xlu0 %v1276, 20
  %v2768 = vpop.permute.xlu0 %2767
  %2769 = vrot.lane.b32.xlu0 %v1279, 20
  %v2770 = vpop.permute.xlu0 %2769
  %2771 = vrot.lane.b32.xlu0 %v1281, 20
  %v2772 = vpop.permute.xlu0 %2771
  %2773 = vrot.lane.b32.xlu0 %v1284, 20
  %v2774 = vpop.permute.xlu0 %2773
  %2775 = vrot.lane.b32.xlu0 %v1286, 20
  %v2776 = vpop.permute.xlu0 %2775
  %2777 = vrot.lane.b32.xlu0 %v1289, 20
  %v2778 = vpop.permute.xlu0 %2777
  %2779 = vrot.lane.b32.xlu0 %v1291, 20
  %v2780 = vpop.permute.xlu0 %2779
  %2781 = vrot.lane.b32.xlu0 %v1294, 20
  %v2782 = vpop.permute.xlu0 %2781
  %2783 = vrot.lane.b32.xlu0 %v1296, 20
  %v2784 = vpop.permute.xlu0 %2783
  %2785 = vrot.lane.b32.xlu0 %v2648, 20
  %v2786 = vpop.permute.xlu0 %2785
  %2787 = vrot.lane.b32.xlu0 %v2650, 20
  %v2788 = vpop.permute.xlu0 %2787
  %2789 = vrot.lane.b32.xlu0 %v1304, 20
  %v2790 = vpop.permute.xlu0 %2789
  %2791 = vrot.lane.b32.xlu0 %v1306, 20
  %v2792 = vpop.permute.xlu0 %2791
  %2793 = vrot.lane.b32.xlu0 %v1309, 20
  %v2794 = vpop.permute.xlu0 %2793
  %2795 = vrot.lane.b32.xlu0 %v1311, 20
  %v2796 = vpop.permute.xlu0 %2795
  %2797 = vrot.lane.b32.xlu0 %v1314, 20
  %v2798 = vpop.permute.xlu0 %2797
  %2799 = vrot.lane.b32.xlu0 %v1316, 20
  %v2800 = vpop.permute.xlu0 %2799
  %2801 = vrot.lane.b32.xlu0 %v1319, 20
  %v2802 = vpop.permute.xlu0 %2801
  %2803 = vrot.lane.b32.xlu0 %v1321, 20
  %v2804 = vpop.permute.xlu0 %2803
  %2805 = vrot.lane.b32.xlu0 %v1324, 20
  %v2806 = vpop.permute.xlu0 %2805
  %2807 = vrot.lane.b32.xlu0 %v1326, 20
  %v2808 = vpop.permute.xlu0 %2807
  %2809 = vrot.lane.b32.xlu0 %v1329, 20
  %v2810 = vpop.permute.xlu0 %2809
  %2811 = vrot.lane.b32.xlu0 %v1331, 20
  %v2812 = vpop.permute.xlu0 %2811
  %2813 = vrot.lane.b32.xlu0 %v1334, 20
  %v2814 = vpop.permute.xlu0 %2813
  %2815 = vrot.lane.b32.xlu0 %v1336, 20
  %v2816 = vpop.permute.xlu0 %2815
  %2817 = vrot.lane.b32.xlu0 %v1339, 20
  %v2818 = vpop.permute.xlu0 %2817
  %2819 = vrot.lane.b32.xlu0 %v1341, 20
  %v2820 = vpop.permute.xlu0 %2819
  %2821 = vrot.lane.b32.xlu0 %v1344, 20
  %v2822 = vpop.permute.xlu0 %2821
  %2823 = vrot.lane.b32.xlu0 %v1346, 20
  %v2824 = vpop.permute.xlu0 %2823
  %2825 = vrot.lane.b32.xlu0 %v1349, 20
  %v2826 = vpop.permute.xlu0 %2825
  %2827 = vrot.lane.b32.xlu0 %v1351, 20
  %v2828 = vpop.permute.xlu0 %2827
  %2829 = vrot.lane.b32.xlu0 %v1354, 20
  %v2830 = vpop.permute.xlu0 %2829
  %2831 = vrot.lane.b32.xlu0 %v1356, 20
  %v2832 = vpop.permute.xlu0 %2831
  %2833 = vrot.lane.b32.xlu0 %v1359, 20
  %v2834 = vpop.permute.xlu0 %2833
  %2835 = vrot.lane.b32.xlu0 %v1361, 20
  %v2836 = vpop.permute.xlu0 %2835
  %2837 = vrot.lane.b32.xlu0 %v1364, 20
  %v2838 = vpop.permute.xlu0 %2837
  %2839 = vrot.lane.b32.xlu0 %v1366, 20
  %v2840 = vpop.permute.xlu0 %2839
  %2841 = vrot.lane.b32.xlu0 %v1369, 20
  %v2842 = vpop.permute.xlu0 %2841
  %2843 = vrot.lane.b32.xlu0 %v1371, 20
  %v2844 = vpop.permute.xlu0 %2843
  %2845 = vrot.lane.b32.xlu0 %v1374, 20
  %v2846 = vpop.permute.xlu0 %2845
  %2847 = vrot.lane.b32.xlu0 %v1376, 20
  %v2848 = vpop.permute.xlu0 %2847
  %2849 = vrot.lane.b32.xlu0 %v2653, 20
  %v2850 = vpop.permute.xlu0 %2849
  %2851 = vrot.lane.b32.xlu0 %v2655, 20
  %v2852 = vpop.permute.xlu0 %2851
  %2853 = vrot.lane.b32.xlu0 %v1384, 20
  %v2854 = vpop.permute.xlu0 %2853
  %2855 = vrot.lane.b32.xlu0 %v1386, 20
  %v2856 = vpop.permute.xlu0 %2855
  %2857 = vrot.lane.b32.xlu0 %v1389, 20
  %v2858 = vpop.permute.xlu0 %2857
  %2859 = vrot.lane.b32.xlu0 %v1391, 20
  %v2860 = vpop.permute.xlu0 %2859
  %2861 = vrot.lane.b32.xlu0 %v1394, 20
  %v2862 = vpop.permute.xlu0 %2861
  %2863 = vrot.lane.b32.xlu0 %v1396, 20
  %v2864 = vpop.permute.xlu0 %2863
  %2865 = vrot.lane.b32.xlu0 %v1399, 20
  %v2866 = vpop.permute.xlu0 %2865
  %2867 = vrot.lane.b32.xlu0 %v1401, 20
  %v2868 = vpop.permute.xlu0 %2867
  %2869 = vrot.lane.b32.xlu0 %v1404, 20
  %v2870 = vpop.permute.xlu0 %2869
  %2871 = vrot.lane.b32.xlu0 %v1406, 20
  %v2872 = vpop.permute.xlu0 %2871
  %2873 = vrot.lane.b32.xlu0 %v1409, 20
  %v2874 = vpop.permute.xlu0 %2873
  %2875 = vrot.lane.b32.xlu0 %v1411, 20
  %v2876 = vpop.permute.xlu0 %2875
  %2877 = vrot.lane.b32.xlu0 %v1414, 20
  %v2878 = vpop.permute.xlu0 %2877
  %2879 = vrot.lane.b32.xlu0 %v1416, 20
  %v2880 = vpop.permute.xlu0 %2879
  %2881 = vrot.lane.b32.xlu0 %v1419, 20
  %v2882 = vpop.permute.xlu0 %2881
  %2883 = vrot.lane.b32.xlu0 %v1421, 20
  %v2884 = vpop.permute.xlu0 %2883
  %2885 = vrot.lane.b32.xlu0 %v1424, 20
  %v2886 = vpop.permute.xlu0 %2885
  %2887 = vrot.lane.b32.xlu0 %v1426, 20
  %v2888 = vpop.permute.xlu0 %2887
  %2889 = vrot.lane.b32.xlu0 %v1429, 20
  %v2890 = vpop.permute.xlu0 %2889
  %2891 = vrot.lane.b32.xlu0 %v1431, 20
  %v2892 = vpop.permute.xlu0 %2891
  %2893 = vrot.lane.b32.xlu0 %v1434, 20
  %v2894 = vpop.permute.xlu0 %2893
  %2895 = vrot.lane.b32.xlu0 %v1436, 20
  %v2896 = vpop.permute.xlu0 %2895
  %2897 = vrot.lane.b32.xlu0 %v1439, 20
  %v2898 = vpop.permute.xlu0 %2897
  %2899 = vrot.lane.b32.xlu0 %v1441, 20
  %v2900 = vpop.permute.xlu0 %2899
  %2901 = vrot.lane.b32.xlu0 %v1444, 20
  %v2902 = vpop.permute.xlu0 %2901
  %2903 = vrot.lane.b32.xlu0 %v1446, 20
  %v2904 = vpop.permute.xlu0 %2903
  %2905 = vrot.lane.b32.xlu0 %v1449, 20
  %v2906 = vpop.permute.xlu0 %2905
  %2907 = vrot.lane.b32.xlu0 %v1451, 20
  %v2908 = vpop.permute.xlu0 %2907
  %2909 = vrot.lane.b32.xlu0 %v1454, 20
  %v2910 = vpop.permute.xlu0 %2909
  %2911 = vrot.lane.b32.xlu0 %v1456, 20
  %v2912 = vpop.permute.xlu0 %2911
  %2913 = vrot.lane.b32.xlu0 %v2658, 20
  %v2914 = vpop.permute.xlu0 %2913
  %2915 = vrot.lane.b32.xlu0 %v2660, 20
  %v2916 = vpop.permute.xlu0 %2915
  %3053 = vrot.lane.b32.xlu0 %v29, 24
  %v3054 = vpop.permute.xlu0 %3053
  %3055 = vrot.lane.b32.xlu0 %v30, 24
  %v3056 = vpop.permute.xlu0 %3055
  %3057 = vrot.lane.b32.xlu0 %v32, 24
  %v3058 = vpop.permute.xlu0 %3057
  %3059 = vrot.lane.b32.xlu0 %v33, 24
  %v3060 = vpop.permute.xlu0 %3059
  %3061 = vrot.lane.b32.xlu0 %v35, 24
  %v3062 = vpop.permute.xlu0 %3061
  %3063 = vrot.lane.b32.xlu0 %v36, 24
  %v3064 = vpop.permute.xlu0 %3063
  %3065 = vrot.lane.b32.xlu0 %v38, 24
  %v3066 = vpop.permute.xlu0 %3065
  %3067 = vrot.lane.b32.xlu0 %v39, 24
  %v3068 = vpop.permute.xlu0 %3067
  %3069 = vrot.lane.b32.xlu0 %v41, 24
  %v3070 = vpop.permute.xlu0 %3069
  %3071 = vrot.lane.b32.xlu0 %v42, 24
  %v3072 = vpop.permute.xlu0 %3071
  %3073 = vrot.lane.b32.xlu0 %v44, 24
  %v3074 = vpop.permute.xlu0 %3073
  %3075 = vrot.lane.b32.xlu0 %v45, 24
  %v3076 = vpop.permute.xlu0 %3075
  %3077 = vrot.lane.b32.xlu0 %v47, 24
  %v3078 = vpop.permute.xlu0 %3077
  %3079 = vrot.lane.b32.xlu0 %v48, 24
  %v3080 = vpop.permute.xlu0 %3079
  %3081 = vrot.lane.b32.xlu0 %v50, 24
  %v3082 = vpop.permute.xlu0 %3081
  %3083 = vrot.lane.b32.xlu0 %v51, 24
  %v3084 = vpop.permute.xlu0 %3083
  %3085 = vrot.lane.b32.xlu0 %v53, 24
  %v3086 = vpop.permute.xlu0 %3085
  %3087 = vrot.lane.b32.xlu0 %v54, 24
  %v3088 = vpop.permute.xlu0 %3087
  %3089 = vrot.lane.b32.xlu0 %v56, 24
  %v3090 = vpop.permute.xlu0 %3089
  %3091 = vrot.lane.b32.xlu0 %v57, 24
  %v3092 = vpop.permute.xlu0 %3091
  %3093 = vrot.lane.b32.xlu0 %v59, 24
  %v3094 = vpop.permute.xlu0 %3093
  %3095 = vrot.lane.b32.xlu0 %v60, 24
  %v3096 = vpop.permute.xlu0 %3095
  %3097 = vrot.lane.b32.xlu0 %v62, 24
  %v3098 = vpop.permute.xlu0 %3097
  %3099 = vrot.lane.b32.xlu0 %v63, 24
  %v3100 = vpop.permute.xlu0 %3099
  %3101 = vrot.lane.b32.xlu0 %v65, 24
  %v3102 = vpop.permute.xlu0 %3101
  %3103 = vrot.lane.b32.xlu0 %v66, 24
  %v3104 = vpop.permute.xlu0 %3103
  %3105 = vrot.lane.b32.xlu0 %v68, 24
  %v3106 = vpop.permute.xlu0 %3105
  %3107 = vrot.lane.b32.xlu0 %v69, 24
  %v3108 = vpop.permute.xlu0 %3107
  %3109 = vrot.lane.b32.xlu0 %v71, 24
  %v3110 = vpop.permute.xlu0 %3109
  %3111 = vrot.lane.b32.xlu0 %v72, 24
  %v3112 = vpop.permute.xlu0 %3111
  %3113 = vrot.lane.b32.xlu0 %v74, 24
  %v3114 = vpop.permute.xlu0 %3113
  %3115 = vrot.lane.b32.xlu0 %v75, 24
  %v3116 = vpop.permute.xlu0 %3115
  %3117 = vrot.lane.b32.xlu0 %v83, 24
  %v3118 = vpop.permute.xlu0 %3117
  %3119 = vrot.lane.b32.xlu0 %v84, 24
  %v3120 = vpop.permute.xlu0 %3119
  %3121 = vrot.lane.b32.xlu0 %v86, 24
  %v3122 = vpop.permute.xlu0 %3121
  %3123 = vrot.lane.b32.xlu0 %v87, 24
  %v3124 = vpop.permute.xlu0 %3123
  %3125 = vrot.lane.b32.xlu0 %v89, 24
  %v3126 = vpop.permute.xlu0 %3125
  %3127 = vrot.lane.b32.xlu0 %v90, 24
  %v3128 = vpop.permute.xlu0 %3127
  %3129 = vrot.lane.b32.xlu0 %v92, 24
  %v3130 = vpop.permute.xlu0 %3129
  %3131 = vrot.lane.b32.xlu0 %v93, 24
  %v3132 = vpop.permute.xlu0 %3131
  %3133 = vrot.lane.b32.xlu0 %v95, 24
  %v3134 = vpop.permute.xlu0 %3133
  %3135 = vrot.lane.b32.xlu0 %v96, 24
  %v3136 = vpop.permute.xlu0 %3135
  %3137 = vrot.lane.b32.xlu0 %v98, 24
  %v3138 = vpop.permute.xlu0 %3137
  %3139 = vrot.lane.b32.xlu0 %v99, 24
  %v3140 = vpop.permute.xlu0 %3139
  %3141 = vrot.lane.b32.xlu0 %v101, 24
  %v3142 = vpop.permute.xlu0 %3141
  %3143 = vrot.lane.b32.xlu0 %v102, 24
  %v3144 = vpop.permute.xlu0 %3143
  %3145 = vrot.lane.b32.xlu0 %v104, 24
  %v3146 = vpop.permute.xlu0 %3145
  %3147 = vrot.lane.b32.xlu0 %v105, 24
  %v3148 = vpop.permute.xlu0 %3147
  %3149 = vrot.lane.b32.xlu0 %v107, 24
  %v3150 = vpop.permute.xlu0 %3149
  %3151 = vrot.lane.b32.xlu0 %v108, 24
  %v3152 = vpop.permute.xlu0 %3151
  %3153 = vrot.lane.b32.xlu0 %v110, 24
  %v3154 = vpop.permute.xlu0 %3153
  %3155 = vrot.lane.b32.xlu0 %v111, 24
  %v3156 = vpop.permute.xlu0 %3155
  %3157 = vrot.lane.b32.xlu0 %v113, 24
  %v3158 = vpop.permute.xlu0 %3157
  %3159 = vrot.lane.b32.xlu0 %v114, 24
  %v3160 = vpop.permute.xlu0 %3159
  %3161 = vrot.lane.b32.xlu0 %v116, 24
  %v3162 = vpop.permute.xlu0 %3161
  %3163 = vrot.lane.b32.xlu0 %v117, 24
  %v3164 = vpop.permute.xlu0 %3163
  %3165 = vrot.lane.b32.xlu0 %v119, 24
  %v3166 = vpop.permute.xlu0 %3165
  %3167 = vrot.lane.b32.xlu0 %v120, 24
  %v3168 = vpop.permute.xlu0 %3167
  %3169 = vrot.lane.b32.xlu0 %v122, 24
  %v3170 = vpop.permute.xlu0 %3169
  %3171 = vrot.lane.b32.xlu0 %v123, 24
  %v3172 = vpop.permute.xlu0 %3171
  %3173 = vrot.lane.b32.xlu0 %v125, 24
  %v3174 = vpop.permute.xlu0 %3173
  %3175 = vrot.lane.b32.xlu0 %v126, 24
  %v3176 = vpop.permute.xlu0 %3175
  %3177 = vrot.lane.b32.xlu0 %v128, 24
  %v3178 = vpop.permute.xlu0 %3177
  %3179 = vrot.lane.b32.xlu0 %v129, 24
  %v3180 = vpop.permute.xlu0 %3179
  %3181 = vrot.lane.b32.xlu0 %v137, 24
  %v3182 = vpop.permute.xlu0 %3181
  %3183 = vrot.lane.b32.xlu0 %v138, 24
  %v3184 = vpop.permute.xlu0 %3183
  %3185 = vrot.lane.b32.xlu0 %v140, 24
  %v3186 = vpop.permute.xlu0 %3185
  %3187 = vrot.lane.b32.xlu0 %v141, 24
  %v3188 = vpop.permute.xlu0 %3187
  %3189 = vrot.lane.b32.xlu0 %v143, 24
  %v3190 = vpop.permute.xlu0 %3189
  %3191 = vrot.lane.b32.xlu0 %v144, 24
  %v3192 = vpop.permute.xlu0 %3191
  %3193 = vrot.lane.b32.xlu0 %v146, 24
  %v3194 = vpop.permute.xlu0 %3193
  %3195 = vrot.lane.b32.xlu0 %v147, 24
  %v3196 = vpop.permute.xlu0 %3195
  %3197 = vrot.lane.b32.xlu0 %v149, 24
  %v3198 = vpop.permute.xlu0 %3197
  %3199 = vrot.lane.b32.xlu0 %v150, 24
  %v3200 = vpop.permute.xlu0 %3199
  %3201 = vrot.lane.b32.xlu0 %v152, 24
  %v3202 = vpop.permute.xlu0 %3201
  %3203 = vrot.lane.b32.xlu0 %v153, 24
  %v3204 = vpop.permute.xlu0 %3203
  %3205 = vrot.lane.b32.xlu0 %v155, 24
  %v3206 = vpop.permute.xlu0 %3205
  %3207 = vrot.lane.b32.xlu0 %v156, 24
  %v3208 = vpop.permute.xlu0 %3207
  %3209 = vrot.lane.b32.xlu0 %v158, 24
  %v3210 = vpop.permute.xlu0 %3209
  %3211 = vrot.lane.b32.xlu0 %v159, 24
  %v3212 = vpop.permute.xlu0 %3211
  %3213 = vrot.lane.b32.xlu0 %v161, 24
  %v3214 = vpop.permute.xlu0 %3213
  %3215 = vrot.lane.b32.xlu0 %v162, 24
  %v3216 = vpop.permute.xlu0 %3215
  %3217 = vrot.lane.b32.xlu0 %v164, 24
  %v3218 = vpop.permute.xlu0 %3217
  %3219 = vrot.lane.b32.xlu0 %v165, 24
  %v3220 = vpop.permute.xlu0 %3219
  %3221 = vrot.lane.b32.xlu0 %v167, 24
  %v3222 = vpop.permute.xlu0 %3221
  %3223 = vrot.lane.b32.xlu0 %v168, 24
  %v3224 = vpop.permute.xlu0 %3223
  %3225 = vrot.lane.b32.xlu0 %v170, 24
  %v3226 = vpop.permute.xlu0 %3225
  %3227 = vrot.lane.b32.xlu0 %v171, 24
  %v3228 = vpop.permute.xlu0 %3227
  %3229 = vrot.lane.b32.xlu0 %v173, 24
  %v3230 = vpop.permute.xlu0 %3229
  %3231 = vrot.lane.b32.xlu0 %v174, 24
  %v3232 = vpop.permute.xlu0 %3231
  %3233 = vrot.lane.b32.xlu0 %v176, 24
  %v3234 = vpop.permute.xlu0 %3233
  %3235 = vrot.lane.b32.xlu0 %v177, 24
  %v3236 = vpop.permute.xlu0 %3235
  %3237 = vrot.lane.b32.xlu0 %v179, 24
  %v3238 = vpop.permute.xlu0 %3237
  %3239 = vrot.lane.b32.xlu0 %v180, 24
  %v3240 = vpop.permute.xlu0 %3239
  %3241 = vrot.lane.b32.xlu0 %v182, 24
  %v3242 = vpop.permute.xlu0 %3241
  %3243 = vrot.lane.b32.xlu0 %v183, 24
  %v3244 = vpop.permute.xlu0 %3243
  %3245 = vrot.lane.b32.xlu0 %v191, 24
  %v3246 = vpop.permute.xlu0 %3245
  %3247 = vrot.lane.b32.xlu0 %v192, 24
  %v3248 = vpop.permute.xlu0 %3247
  %3249 = vrot.lane.b32.xlu0 %v194, 24
  %v3250 = vpop.permute.xlu0 %3249
  %3251 = vrot.lane.b32.xlu0 %v195, 24
  %v3252 = vpop.permute.xlu0 %3251
  %3253 = vrot.lane.b32.xlu0 %v197, 24
  %v3254 = vpop.permute.xlu0 %3253
  %3255 = vrot.lane.b32.xlu0 %v198, 24
  %v3256 = vpop.permute.xlu0 %3255
  %3257 = vrot.lane.b32.xlu0 %v200, 24
  %v3258 = vpop.permute.xlu0 %3257
  %3259 = vrot.lane.b32.xlu0 %v201, 24
  %v3260 = vpop.permute.xlu0 %3259
  %3261 = vrot.lane.b32.xlu0 %v203, 24
  %v3262 = vpop.permute.xlu0 %3261
  %3263 = vrot.lane.b32.xlu0 %v204, 24
  %v3264 = vpop.permute.xlu0 %3263
  %3265 = vrot.lane.b32.xlu0 %v206, 24
  %v3266 = vpop.permute.xlu0 %3265
  %3267 = vrot.lane.b32.xlu0 %v207, 24
  %v3268 = vpop.permute.xlu0 %3267
  %3269 = vrot.lane.b32.xlu0 %v209, 24
  %v3270 = vpop.permute.xlu0 %3269
  %3271 = vrot.lane.b32.xlu0 %v210, 24
  %v3272 = vpop.permute.xlu0 %3271
  %3273 = vrot.lane.b32.xlu0 %v212, 24
  %v3274 = vpop.permute.xlu0 %3273
  %3275 = vrot.lane.b32.xlu0 %v213, 24
  %v3276 = vpop.permute.xlu0 %3275
  %3277 = vrot.lane.b32.xlu0 %v215, 24
  %v3278 = vpop.permute.xlu0 %3277
  %3279 = vrot.lane.b32.xlu0 %v216, 24
  %v3280 = vpop.permute.xlu0 %3279
  %3281 = vrot.lane.b32.xlu0 %v218, 24
  %v3282 = vpop.permute.xlu0 %3281
  %3283 = vrot.lane.b32.xlu0 %v219, 24
  %v3284 = vpop.permute.xlu0 %3283
  %3285 = vrot.lane.b32.xlu0 %v221, 24
  %v3286 = vpop.permute.xlu0 %3285
  %3287 = vrot.lane.b32.xlu0 %v222, 24
  %v3288 = vpop.permute.xlu0 %3287
  %3289 = vrot.lane.b32.xlu0 %v224, 24
  %v3290 = vpop.permute.xlu0 %3289
  %3291 = vrot.lane.b32.xlu0 %v225, 24
  %v3292 = vpop.permute.xlu0 %3291
  %3293 = vrot.lane.b32.xlu0 %v227, 24
  %v3294 = vpop.permute.xlu0 %3293
  %3295 = vrot.lane.b32.xlu0 %v228, 24
  %v3296 = vpop.permute.xlu0 %3295
  %3297 = vrot.lane.b32.xlu0 %v230, 24
  %v3298 = vpop.permute.xlu0 %3297
  %3299 = vrot.lane.b32.xlu0 %v231, 24
  %v3300 = vpop.permute.xlu0 %3299
  %3301 = vrot.lane.b32.xlu0 %v233, 24
  %v3302 = vpop.permute.xlu0 %3301
  %3303 = vrot.lane.b32.xlu0 %v234, 24
  %v3304 = vpop.permute.xlu0 %3303
  %3305 = vrot.lane.b32.xlu0 %v236, 24
  %v3306 = vpop.permute.xlu0 %3305
  %3307 = vrot.lane.b32.xlu0 %v237, 24
  %v3308 = vpop.permute.xlu0 %3307
  %v3441 = vrot.slane %v74, 1
  %v3442 = vrot.slane %v75, 1
  %v3443 = vsel %vm431, %v3441, %v3442
  %v3444 = vrot.slane %v76, 1
  %v3445 = vsel %vm431, %v3442, %v3444
  %v3446 = vrot.slane %v128, 1
  %v3447 = vrot.slane %v129, 1
  %v3448 = vsel %vm431, %v3446, %v3447
  %v3449 = vrot.slane %v130, 1
  %v3450 = vsel %vm431, %v3447, %v3449
  %v3451 = vrot.slane %v182, 1
  %v3452 = vrot.slane %v183, 1
  %v3453 = vsel %vm431, %v3451, %v3452
  %v3454 = vrot.slane %v184, 1
  %v3455 = vsel %vm431, %v3452, %v3454
  %v3456 = vrot.slane %v236, 1
  %v3457 = vrot.slane %v237, 1
  %v3458 = vsel %vm431, %v3456, %v3457
  %v3459 = vrot.slane %v238, 1
  %v3460 = vsel %vm431, %v3457, %v3459
  %3461 = vrot.lane.b32.xlu0 %v444, 28
  %v3462 = vpop.permute.xlu0 %3461
  %3463 = vrot.lane.b32.xlu0 %v446, 28
  %v3464 = vpop.permute.xlu0 %3463
  %3465 = vrot.lane.b32.xlu0 %v449, 28
  %v3466 = vpop.permute.xlu0 %3465
  %3467 = vrot.lane.b32.xlu0 %v451, 28
  %v3468 = vpop.permute.xlu0 %3467
  %3469 = vrot.lane.b32.xlu0 %v454, 28
  %v3470 = vpop.permute.xlu0 %3469
  %3471 = vrot.lane.b32.xlu0 %v456, 28
  %v3472 = vpop.permute.xlu0 %3471
  %3473 = vrot.lane.b32.xlu0 %v459, 28
  %v3474 = vpop.permute.xlu0 %3473
  %3475 = vrot.lane.b32.xlu0 %v461, 28
  %v3476 = vpop.permute.xlu0 %3475
  %3477 = vrot.lane.b32.xlu0 %v464, 28
  %v3478 = vpop.permute.xlu0 %3477
  %3479 = vrot.lane.b32.xlu0 %v466, 28
  %v3480 = vpop.permute.xlu0 %3479
  %3481 = vrot.lane.b32.xlu0 %v469, 28
  %v3482 = vpop.permute.xlu0 %3481
  %3483 = vrot.lane.b32.xlu0 %v471, 28
  %v3484 = vpop.permute.xlu0 %3483
  %3485 = vrot.lane.b32.xlu0 %v474, 28
  %v3486 = vpop.permute.xlu0 %3485
  %3487 = vrot.lane.b32.xlu0 %v476, 28
  %v3488 = vpop.permute.xlu0 %3487
  %3489 = vrot.lane.b32.xlu0 %v479, 28
  %v3490 = vpop.permute.xlu0 %3489
  %3491 = vrot.lane.b32.xlu0 %v481, 28
  %v3492 = vpop.permute.xlu0 %3491
  %3493 = vrot.lane.b32.xlu0 %v484, 28
  %v3494 = vpop.permute.xlu0 %3493
  %3495 = vrot.lane.b32.xlu0 %v486, 28
  %v3496 = vpop.permute.xlu0 %3495
  %3497 = vrot.lane.b32.xlu0 %v489, 28
  %v3498 = vpop.permute.xlu0 %3497
  %3499 = vrot.lane.b32.xlu0 %v491, 28
  %v3500 = vpop.permute.xlu0 %3499
  %3501 = vrot.lane.b32.xlu0 %v494, 28
  %v3502 = vpop.permute.xlu0 %3501
  %3503 = vrot.lane.b32.xlu0 %v496, 28
  %v3504 = vpop.permute.xlu0 %3503
  %3505 = vrot.lane.b32.xlu0 %v499, 28
  %v3506 = vpop.permute.xlu0 %3505
  %3507 = vrot.lane.b32.xlu0 %v501, 28
  %v3508 = vpop.permute.xlu0 %3507
  %3509 = vrot.lane.b32.xlu0 %v504, 28
  %v3510 = vpop.permute.xlu0 %3509
  %3511 = vrot.lane.b32.xlu0 %v506, 28
  %v3512 = vpop.permute.xlu0 %3511
  %3513 = vrot.lane.b32.xlu0 %v509, 28
  %v3514 = vpop.permute.xlu0 %3513
  %3515 = vrot.lane.b32.xlu0 %v511, 28
  %v3516 = vpop.permute.xlu0 %3515
  %3517 = vrot.lane.b32.xlu0 %v2239, 28
  %v3518 = vpop.permute.xlu0 %3517
  %3519 = vrot.lane.b32.xlu0 %v2241, 28
  %v3520 = vpop.permute.xlu0 %3519
  %3521 = vrot.lane.b32.xlu0 %v3443, 28
  %v3522 = vpop.permute.xlu0 %3521
  %3523 = vrot.lane.b32.xlu0 %v3445, 28
  %v3524 = vpop.permute.xlu0 %3523
  %3525 = vrot.lane.b32.xlu0 %v524, 28
  %v3526 = vpop.permute.xlu0 %3525
  %3527 = vrot.lane.b32.xlu0 %v526, 28
  %v3528 = vpop.permute.xlu0 %3527
  %3529 = vrot.lane.b32.xlu0 %v529, 28
  %v3530 = vpop.permute.xlu0 %3529
  %3531 = vrot.lane.b32.xlu0 %v531, 28
  %v3532 = vpop.permute.xlu0 %3531
  %3533 = vrot.lane.b32.xlu0 %v534, 28
  %v3534 = vpop.permute.xlu0 %3533
  %3535 = vrot.lane.b32.xlu0 %v536, 28
  %v3536 = vpop.permute.xlu0 %3535
  %3537 = vrot.lane.b32.xlu0 %v539, 28
  %v3538 = vpop.permute.xlu0 %3537
  %3539 = vrot.lane.b32.xlu0 %v541, 28
  %v3540 = vpop.permute.xlu0 %3539
  %3541 = vrot.lane.b32.xlu0 %v544, 28
  %v3542 = vpop.permute.xlu0 %3541
  %3543 = vrot.lane.b32.xlu0 %v546, 28
  %v3544 = vpop.permute.xlu0 %3543
  %3545 = vrot.lane.b32.xlu0 %v549, 28
  %v3546 = vpop.permute.xlu0 %3545
  %3547 = vrot.lane.b32.xlu0 %v551, 28
  %v3548 = vpop.permute.xlu0 %3547
  %3549 = vrot.lane.b32.xlu0 %v554, 28
  %v3550 = vpop.permute.xlu0 %3549
  %3551 = vrot.lane.b32.xlu0 %v556, 28
  %v3552 = vpop.permute.xlu0 %3551
  %3553 = vrot.lane.b32.xlu0 %v559, 28
  %v3554 = vpop.permute.xlu0 %3553
  %3555 = vrot.lane.b32.xlu0 %v561, 28
  %v3556 = vpop.permute.xlu0 %3555
  %3557 = vrot.lane.b32.xlu0 %v564, 28
  %v3558 = vpop.permute.xlu0 %3557
  %3559 = vrot.lane.b32.xlu0 %v566, 28
  %v3560 = vpop.permute.xlu0 %3559
  %3561 = vrot.lane.b32.xlu0 %v569, 28
  %v3562 = vpop.permute.xlu0 %3561
  %3563 = vrot.lane.b32.xlu0 %v571, 28
  %v3564 = vpop.permute.xlu0 %3563
  %3565 = vrot.lane.b32.xlu0 %v574, 28
  %v3566 = vpop.permute.xlu0 %3565
  %3567 = vrot.lane.b32.xlu0 %v576, 28
  %v3568 = vpop.permute.xlu0 %3567
  %3569 = vrot.lane.b32.xlu0 %v579, 28
  %v3570 = vpop.permute.xlu0 %3569
  %3571 = vrot.lane.b32.xlu0 %v581, 28
  %v3572 = vpop.permute.xlu0 %3571
  %3573 = vrot.lane.b32.xlu0 %v584, 28
  %v3574 = vpop.permute.xlu0 %3573
  %3575 = vrot.lane.b32.xlu0 %v586, 28
  %v3576 = vpop.permute.xlu0 %3575
  %3577 = vrot.lane.b32.xlu0 %v589, 28
  %v3578 = vpop.permute.xlu0 %3577
  %3579 = vrot.lane.b32.xlu0 %v591, 28
  %v3580 = vpop.permute.xlu0 %3579
  %3581 = vrot.lane.b32.xlu0 %v2244, 28
  %v3582 = vpop.permute.xlu0 %3581
  %3583 = vrot.lane.b32.xlu0 %v2246, 28
  %v3584 = vpop.permute.xlu0 %3583
  %3585 = vrot.lane.b32.xlu0 %v3448, 28
  %v3586 = vpop.permute.xlu0 %3585
  %3587 = vrot.lane.b32.xlu0 %v3450, 28
  %v3588 = vpop.permute.xlu0 %3587
  %3589 = vrot.lane.b32.xlu0 %v604, 28
  %v3590 = vpop.permute.xlu0 %3589
  %3591 = vrot.lane.b32.xlu0 %v606, 28
  %v3592 = vpop.permute.xlu0 %3591
  %3593 = vrot.lane.b32.xlu0 %v609, 28
  %v3594 = vpop.permute.xlu0 %3593
  %3595 = vrot.lane.b32.xlu0 %v611, 28
  %v3596 = vpop.permute.xlu0 %3595
  %3597 = vrot.lane.b32.xlu0 %v614, 28
  %v3598 = vpop.permute.xlu0 %3597
  %3599 = vrot.lane.b32.xlu0 %v616, 28
  %v3600 = vpop.permute.xlu0 %3599
  %3601 = vrot.lane.b32.xlu0 %v619, 28
  %v3602 = vpop.permute.xlu0 %3601
  %3603 = vrot.lane.b32.xlu0 %v621, 28
  %v3604 = vpop.permute.xlu0 %3603
  %3605 = vrot.lane.b32.xlu0 %v624, 28
  %v3606 = vpop.permute.xlu0 %3605
  %3607 = vrot.lane.b32.xlu0 %v626, 28
  %v3608 = vpop.permute.xlu0 %3607
  %3609 = vrot.lane.b32.xlu0 %v629, 28
  %v3610 = vpop.permute.xlu0 %3609
  %3611 = vrot.lane.b32.xlu0 %v631, 28
  %v3612 = vpop.permute.xlu0 %3611
  %3613 = vrot.lane.b32.xlu0 %v634, 28
  %v3614 = vpop.permute.xlu0 %3613
  %3615 = vrot.lane.b32.xlu0 %v636, 28
  %v3616 = vpop.permute.xlu0 %3615
  %3617 = vrot.lane.b32.xlu0 %v639, 28
  %v3618 = vpop.permute.xlu0 %3617
  %3619 = vrot.lane.b32.xlu0 %v641, 28
  %v3620 = vpop.permute.xlu0 %3619
  %3621 = vrot.lane.b32.xlu0 %v644, 28
  %v3622 = vpop.permute.xlu0 %3621
  %3623 = vrot.lane.b32.xlu0 %v646, 28
  %v3624 = vpop.permute.xlu0 %3623
  %3625 = vrot.lane.b32.xlu0 %v649, 28
  %v3626 = vpop.permute.xlu0 %3625
  %3627 = vrot.lane.b32.xlu0 %v651, 28
  %v3628 = vpop.permute.xlu0 %3627
  %3629 = vrot.lane.b32.xlu0 %v654, 28
  %v3630 = vpop.permute.xlu0 %3629
  %3631 = vrot.lane.b32.xlu0 %v656, 28
  %v3632 = vpop.permute.xlu0 %3631
  %3633 = vrot.lane.b32.xlu0 %v659, 28
  %v3634 = vpop.permute.xlu0 %3633
  %3635 = vrot.lane.b32.xlu0 %v661, 28
  %v3636 = vpop.permute.xlu0 %3635
  %3637 = vrot.lane.b32.xlu0 %v664, 28
  %v3638 = vpop.permute.xlu0 %3637
  %3639 = vrot.lane.b32.xlu0 %v666, 28
  %v3640 = vpop.permute.xlu0 %3639
  %3641 = vrot.lane.b32.xlu0 %v669, 28
  %v3642 = vpop.permute.xlu0 %3641
  %3643 = vrot.lane.b32.xlu0 %v671, 28
  %v3644 = vpop.permute.xlu0 %3643
  %3645 = vrot.lane.b32.xlu0 %v2249, 28
  %v3646 = vpop.permute.xlu0 %3645
  %3647 = vrot.lane.b32.xlu0 %v2251, 28
  %v3648 = vpop.permute.xlu0 %3647
  %3649 = vrot.lane.b32.xlu0 %v3453, 28
  %v3650 = vpop.permute.xlu0 %3649
  %3651 = vrot.lane.b32.xlu0 %v3455, 28
  %v3652 = vpop.permute.xlu0 %3651
  %3653 = vrot.lane.b32.xlu0 %v684, 28
  %v3654 = vpop.permute.xlu0 %3653
  %3655 = vrot.lane.b32.xlu0 %v686, 28
  %v3656 = vpop.permute.xlu0 %3655
  %3657 = vrot.lane.b32.xlu0 %v689, 28
  %v3658 = vpop.permute.xlu0 %3657
  %3659 = vrot.lane.b32.xlu0 %v691, 28
  %v3660 = vpop.permute.xlu0 %3659
  %3661 = vrot.lane.b32.xlu0 %v694, 28
  %v3662 = vpop.permute.xlu0 %3661
  %3663 = vrot.lane.b32.xlu0 %v696, 28
  %v3664 = vpop.permute.xlu0 %3663
  %3665 = vrot.lane.b32.xlu0 %v699, 28
  %v3666 = vpop.permute.xlu0 %3665
  %3667 = vrot.lane.b32.xlu0 %v701, 28
  %v3668 = vpop.permute.xlu0 %3667
  %3669 = vrot.lane.b32.xlu0 %v704, 28
  %v3670 = vpop.permute.xlu0 %3669
  %3671 = vrot.lane.b32.xlu0 %v706, 28
  %v3672 = vpop.permute.xlu0 %3671
  %3673 = vrot.lane.b32.xlu0 %v709, 28
  %v3674 = vpop.permute.xlu0 %3673
  %3675 = vrot.lane.b32.xlu0 %v711, 28
  %v3676 = vpop.permute.xlu0 %3675
  %3677 = vrot.lane.b32.xlu0 %v714, 28
  %v3678 = vpop.permute.xlu0 %3677
  %3679 = vrot.lane.b32.xlu0 %v716, 28
  %v3680 = vpop.permute.xlu0 %3679
  %3681 = vrot.lane.b32.xlu0 %v719, 28
  %v3682 = vpop.permute.xlu0 %3681
  %3683 = vrot.lane.b32.xlu0 %v721, 28
  %v3684 = vpop.permute.xlu0 %3683
  %3685 = vrot.lane.b32.xlu0 %v724, 28
  %v3686 = vpop.permute.xlu0 %3685
  %3687 = vrot.lane.b32.xlu0 %v726, 28
  %v3688 = vpop.permute.xlu0 %3687
  %3689 = vrot.lane.b32.xlu0 %v729, 28
  %v3690 = vpop.permute.xlu0 %3689
  %3691 = vrot.lane.b32.xlu0 %v731, 28
  %v3692 = vpop.permute.xlu0 %3691
  %3693 = vrot.lane.b32.xlu0 %v734, 28
  %v3694 = vpop.permute.xlu0 %3693
  %3695 = vrot.lane.b32.xlu0 %v736, 28
  %v3696 = vpop.permute.xlu0 %3695
  %3697 = vrot.lane.b32.xlu0 %v739, 28
  %v3698 = vpop.permute.xlu0 %3697
  %3699 = vrot.lane.b32.xlu0 %v741, 28
  %v3700 = vpop.permute.xlu0 %3699
  %3701 = vrot.lane.b32.xlu0 %v744, 28
  %v3702 = vpop.permute.xlu0 %3701
  %3703 = vrot.lane.b32.xlu0 %v746, 28
  %v3704 = vpop.permute.xlu0 %3703
  %3705 = vrot.lane.b32.xlu0 %v749, 28
  %v3706 = vpop.permute.xlu0 %3705
  %3707 = vrot.lane.b32.xlu0 %v751, 28
  %v3708 = vpop.permute.xlu0 %3707
  %3709 = vrot.lane.b32.xlu0 %v2254, 28
  %v3710 = vpop.permute.xlu0 %3709
  %3711 = vrot.lane.b32.xlu0 %v2256, 28
  %v3712 = vpop.permute.xlu0 %3711
  %3713 = vrot.lane.b32.xlu0 %v3458, 28
  %v3714 = vpop.permute.xlu0 %3713
  %3715 = vrot.lane.b32.xlu0 %v3460, 28
  %v3716 = vpop.permute.xlu0 %3715
  %v3845 = vrot.slane %v74, 2
  %v3846 = vrot.slane %v75, 2
  %v3847 = vsel %vm1136, %v3845, %v3846
  %v3848 = vrot.slane %v76, 2
  %v3849 = vsel %vm1136, %v3846, %v3848
  %v3850 = vrot.slane %v128, 2
  %v3851 = vrot.slane %v129, 2
  %v3852 = vsel %vm1136, %v3850, %v3851
  %v3853 = vrot.slane %v130, 2
  %v3854 = vsel %vm1136, %v3851, %v3853
  %v3855 = vrot.slane %v182, 2
  %v3856 = vrot.slane %v183, 2
  %v3857 = vsel %vm1136, %v3855, %v3856
  %v3858 = vrot.slane %v184, 2
  %v3859 = vsel %vm1136, %v3856, %v3858
  %v3860 = vrot.slane %v236, 2
  %v3861 = vrot.slane %v237, 2
  %v3862 = vsel %vm1136, %v3860, %v3861
  %v3863 = vrot.slane %v238, 2
  %v3864 = vsel %vm1136, %v3861, %v3863
  %3865 = vrot.lane.b32.xlu0 %v1149, 32
  %v3866 = vpop.permute.xlu0 %3865
  %3867 = vrot.lane.b32.xlu0 %v1151, 32
  %v3868 = vpop.permute.xlu0 %3867
  %3869 = vrot.lane.b32.xlu0 %v1154, 32
  %v3870 = vpop.permute.xlu0 %3869
  %3871 = vrot.lane.b32.xlu0 %v1156, 32
  %v3872 = vpop.permute.xlu0 %3871
  %3873 = vrot.lane.b32.xlu0 %v1159, 32
  %v3874 = vpop.permute.xlu0 %3873
  %3875 = vrot.lane.b32.xlu0 %v1161, 32
  %v3876 = vpop.permute.xlu0 %3875
  %3877 = vrot.lane.b32.xlu0 %v1164, 32
  %v3878 = vpop.permute.xlu0 %3877
  %3879 = vrot.lane.b32.xlu0 %v1166, 32
  %v3880 = vpop.permute.xlu0 %3879
  %3881 = vrot.lane.b32.xlu0 %v1169, 32
  %v3882 = vpop.permute.xlu0 %3881
  %3883 = vrot.lane.b32.xlu0 %v1171, 32
  %v3884 = vpop.permute.xlu0 %3883
  %3885 = vrot.lane.b32.xlu0 %v1174, 32
  %v3886 = vpop.permute.xlu0 %3885
  %3887 = vrot.lane.b32.xlu0 %v1176, 32
  %v3888 = vpop.permute.xlu0 %3887
  %3889 = vrot.lane.b32.xlu0 %v1179, 32
  %v3890 = vpop.permute.xlu0 %3889
  %3891 = vrot.lane.b32.xlu0 %v1181, 32
  %v3892 = vpop.permute.xlu0 %3891
  %3893 = vrot.lane.b32.xlu0 %v1184, 32
  %v3894 = vpop.permute.xlu0 %3893
  %3895 = vrot.lane.b32.xlu0 %v1186, 32
  %v3896 = vpop.permute.xlu0 %3895
  %3897 = vrot.lane.b32.xlu0 %v1189, 32
  %v3898 = vpop.permute.xlu0 %3897
  %3899 = vrot.lane.b32.xlu0 %v1191, 32
  %v3900 = vpop.permute.xlu0 %3899
  %3901 = vrot.lane.b32.xlu0 %v1194, 32
  %v3902 = vpop.permute.xlu0 %3901
  %3903 = vrot.lane.b32.xlu0 %v1196, 32
  %v3904 = vpop.permute.xlu0 %3903
  %3905 = vrot.lane.b32.xlu0 %v1199, 32
  %v3906 = vpop.permute.xlu0 %3905
  %3907 = vrot.lane.b32.xlu0 %v1201, 32
  %v3908 = vpop.permute.xlu0 %3907
  %3909 = vrot.lane.b32.xlu0 %v1204, 32
  %v3910 = vpop.permute.xlu0 %3909
  %3911 = vrot.lane.b32.xlu0 %v1206, 32
  %v3912 = vpop.permute.xlu0 %3911
  %3913 = vrot.lane.b32.xlu0 %v1209, 32
  %v3914 = vpop.permute.xlu0 %3913
  %3915 = vrot.lane.b32.xlu0 %v1211, 32
  %v3916 = vpop.permute.xlu0 %3915
  %3917 = vrot.lane.b32.xlu0 %v1214, 32
  %v3918 = vpop.permute.xlu0 %3917
  %3919 = vrot.lane.b32.xlu0 %v1216, 32
  %v3920 = vpop.permute.xlu0 %3919
  %3921 = vrot.lane.b32.xlu0 %v2643, 32
  %v3922 = vpop.permute.xlu0 %3921
  %3923 = vrot.lane.b32.xlu0 %v2645, 32
  %v3924 = vpop.permute.xlu0 %3923
  %3925 = vrot.lane.b32.xlu0 %v3847, 32
  %v3926 = vpop.permute.xlu0 %3925
  %3927 = vrot.lane.b32.xlu0 %v3849, 32
  %v3928 = vpop.permute.xlu0 %3927
  %3929 = vrot.lane.b32.xlu0 %v1229, 32
  %v3930 = vpop.permute.xlu0 %3929
  %3931 = vrot.lane.b32.xlu0 %v1231, 32
  %v3932 = vpop.permute.xlu0 %3931
  %3933 = vrot.lane.b32.xlu0 %v1234, 32
  %v3934 = vpop.permute.xlu0 %3933
  %3935 = vrot.lane.b32.xlu0 %v1236, 32
  %v3936 = vpop.permute.xlu0 %3935
  %3937 = vrot.lane.b32.xlu0 %v1239, 32
  %v3938 = vpop.permute.xlu0 %3937
  %3939 = vrot.lane.b32.xlu0 %v1241, 32
  %v3940 = vpop.permute.xlu0 %3939
  %3941 = vrot.lane.b32.xlu0 %v1244, 32
  %v3942 = vpop.permute.xlu0 %3941
  %3943 = vrot.lane.b32.xlu0 %v1246, 32
  %v3944 = vpop.permute.xlu0 %3943
  %3945 = vrot.lane.b32.xlu0 %v1249, 32
  %v3946 = vpop.permute.xlu0 %3945
  %3947 = vrot.lane.b32.xlu0 %v1251, 32
  %v3948 = vpop.permute.xlu0 %3947
  %3949 = vrot.lane.b32.xlu0 %v1254, 32
  %v3950 = vpop.permute.xlu0 %3949
  %3951 = vrot.lane.b32.xlu0 %v1256, 32
  %v3952 = vpop.permute.xlu0 %3951
  %3953 = vrot.lane.b32.xlu0 %v1259, 32
  %v3954 = vpop.permute.xlu0 %3953
  %3955 = vrot.lane.b32.xlu0 %v1261, 32
  %v3956 = vpop.permute.xlu0 %3955
  %3957 = vrot.lane.b32.xlu0 %v1264, 32
  %v3958 = vpop.permute.xlu0 %3957
  %3959 = vrot.lane.b32.xlu0 %v1266, 32
  %v3960 = vpop.permute.xlu0 %3959
  %3961 = vrot.lane.b32.xlu0 %v1269, 32
  %v3962 = vpop.permute.xlu0 %3961
  %3963 = vrot.lane.b32.xlu0 %v1271, 32
  %v3964 = vpop.permute.xlu0 %3963
  %3965 = vrot.lane.b32.xlu0 %v1274, 32
  %v3966 = vpop.permute.xlu0 %3965
  %3967 = vrot.lane.b32.xlu0 %v1276, 32
  %v3968 = vpop.permute.xlu0 %3967
  %3969 = vrot.lane.b32.xlu0 %v1279, 32
  %v3970 = vpop.permute.xlu0 %3969
  %3971 = vrot.lane.b32.xlu0 %v1281, 32
  %v3972 = vpop.permute.xlu0 %3971
  %3973 = vrot.lane.b32.xlu0 %v1284, 32
  %v3974 = vpop.permute.xlu0 %3973
  %3975 = vrot.lane.b32.xlu0 %v1286, 32
  %v3976 = vpop.permute.xlu0 %3975
  %3977 = vrot.lane.b32.xlu0 %v1289, 32
  %v3978 = vpop.permute.xlu0 %3977
  %3979 = vrot.lane.b32.xlu0 %v1291, 32
  %v3980 = vpop.permute.xlu0 %3979
  %3981 = vrot.lane.b32.xlu0 %v1294, 32
  %v3982 = vpop.permute.xlu0 %3981
  %3983 = vrot.lane.b32.xlu0 %v1296, 32
  %v3984 = vpop.permute.xlu0 %3983
  %3985 = vrot.lane.b32.xlu0 %v2648, 32
  %v3986 = vpop.permute.xlu0 %3985
  %3987 = vrot.lane.b32.xlu0 %v2650, 32
  %v3988 = vpop.permute.xlu0 %3987
  %3989 = vrot.lane.b32.xlu0 %v3852, 32
  %v3990 = vpop.permute.xlu0 %3989
  %3991 = vrot.lane.b32.xlu0 %v3854, 32
  %v3992 = vpop.permute.xlu0 %3991
  %3993 = vrot.lane.b32.xlu0 %v1309, 32
  %v3994 = vpop.permute.xlu0 %3993
  %3995 = vrot.lane.b32.xlu0 %v1311, 32
  %v3996 = vpop.permute.xlu0 %3995
  %3997 = vrot.lane.b32.xlu0 %v1314, 32
  %v3998 = vpop.permute.xlu0 %3997
  %3999 = vrot.lane.b32.xlu0 %v1316, 32
  %v4000 = vpop.permute.xlu0 %3999
  %4001 = vrot.lane.b32.xlu0 %v1319, 32
  %v4002 = vpop.permute.xlu0 %4001
  %4003 = vrot.lane.b32.xlu0 %v1321, 32
  %v4004 = vpop.permute.xlu0 %4003
  %4005 = vrot.lane.b32.xlu0 %v1324, 32
  %v4006 = vpop.permute.xlu0 %4005
  %4007 = vrot.lane.b32.xlu0 %v1326, 32
  %v4008 = vpop.permute.xlu0 %4007
  %4009 = vrot.lane.b32.xlu0 %v1329, 32
  %v4010 = vpop.permute.xlu0 %4009
  %4011 = vrot.lane.b32.xlu0 %v1331, 32
  %v4012 = vpop.permute.xlu0 %4011
  %4013 = vrot.lane.b32.xlu0 %v1334, 32
  %v4014 = vpop.permute.xlu0 %4013
  %4015 = vrot.lane.b32.xlu0 %v1336, 32
  %v4016 = vpop.permute.xlu0 %4015
  %4017 = vrot.lane.b32.xlu0 %v1339, 32
  %v4018 = vpop.permute.xlu0 %4017
  %4019 = vrot.lane.b32.xlu0 %v1341, 32
  %v4020 = vpop.permute.xlu0 %4019
  %4021 = vrot.lane.b32.xlu0 %v1344, 32
  %v4022 = vpop.permute.xlu0 %4021
  %4023 = vrot.lane.b32.xlu0 %v1346, 32
  %v4024 = vpop.permute.xlu0 %4023
  %4025 = vrot.lane.b32.xlu0 %v1349, 32
  %v4026 = vpop.permute.xlu0 %4025
  %4027 = vrot.lane.b32.xlu0 %v1351, 32
  %v4028 = vpop.permute.xlu0 %4027
  %4029 = vrot.lane.b32.xlu0 %v1354, 32
  %v4030 = vpop.permute.xlu0 %4029
  %4031 = vrot.lane.b32.xlu0 %v1356, 32
  %v4032 = vpop.permute.xlu0 %4031
  %4033 = vrot.lane.b32.xlu0 %v1359, 32
  %v4034 = vpop.permute.xlu0 %4033
  %4035 = vrot.lane.b32.xlu0 %v1361, 32
  %v4036 = vpop.permute.xlu0 %4035
  %4037 = vrot.lane.b32.xlu0 %v1364, 32
  %v4038 = vpop.permute.xlu0 %4037
  %4039 = vrot.lane.b32.xlu0 %v1366, 32
  %v4040 = vpop.permute.xlu0 %4039
  %4041 = vrot.lane.b32.xlu0 %v1369, 32
  %v4042 = vpop.permute.xlu0 %4041
  %4043 = vrot.lane.b32.xlu0 %v1371, 32
  %v4044 = vpop.permute.xlu0 %4043
  %4045 = vrot.lane.b32.xlu0 %v1374, 32
  %v4046 = vpop.permute.xlu0 %4045
  %4047 = vrot.lane.b32.xlu0 %v1376, 32
  %v4048 = vpop.permute.xlu0 %4047
  %4049 = vrot.lane.b32.xlu0 %v2653, 32
  %v4050 = vpop.permute.xlu0 %4049
  %4051 = vrot.lane.b32.xlu0 %v2655, 32
  %v4052 = vpop.permute.xlu0 %4051
  %4053 = vrot.lane.b32.xlu0 %v3857, 32
  %v4054 = vpop.permute.xlu0 %4053
  %4055 = vrot.lane.b32.xlu0 %v3859, 32
  %v4056 = vpop.permute.xlu0 %4055
  %4057 = vrot.lane.b32.xlu0 %v1389, 32
  %v4058 = vpop.permute.xlu0 %4057
  %4059 = vrot.lane.b32.xlu0 %v1391, 32
  %v4060 = vpop.permute.xlu0 %4059
  %4061 = vrot.lane.b32.xlu0 %v1394, 32
  %v4062 = vpop.permute.xlu0 %4061
  %4063 = vrot.lane.b32.xlu0 %v1396, 32
  %v4064 = vpop.permute.xlu0 %4063
  %4065 = vrot.lane.b32.xlu0 %v1399, 32
  %v4066 = vpop.permute.xlu0 %4065
  %4067 = vrot.lane.b32.xlu0 %v1401, 32
  %v4068 = vpop.permute.xlu0 %4067
  %4069 = vrot.lane.b32.xlu0 %v1404, 32
  %v4070 = vpop.permute.xlu0 %4069
  %4071 = vrot.lane.b32.xlu0 %v1406, 32
  %v4072 = vpop.permute.xlu0 %4071
  %4073 = vrot.lane.b32.xlu0 %v1409, 32
  %v4074 = vpop.permute.xlu0 %4073
  %4075 = vrot.lane.b32.xlu0 %v1411, 32
  %v4076 = vpop.permute.xlu0 %4075
  %4077 = vrot.lane.b32.xlu0 %v1414, 32
  %v4078 = vpop.permute.xlu0 %4077
  %4079 = vrot.lane.b32.xlu0 %v1416, 32
  %v4080 = vpop.permute.xlu0 %4079
  %4081 = vrot.lane.b32.xlu0 %v1419, 32
  %v4082 = vpop.permute.xlu0 %4081
  %4083 = vrot.lane.b32.xlu0 %v1421, 32
  %v4084 = vpop.permute.xlu0 %4083
  %4085 = vrot.lane.b32.xlu0 %v1424, 32
  %v4086 = vpop.permute.xlu0 %4085
  %4087 = vrot.lane.b32.xlu0 %v1426, 32
  %v4088 = vpop.permute.xlu0 %4087
  %4089 = vrot.lane.b32.xlu0 %v1429, 32
  %v4090 = vpop.permute.xlu0 %4089
  %4091 = vrot.lane.b32.xlu0 %v1431, 32
  %v4092 = vpop.permute.xlu0 %4091
  %4093 = vrot.lane.b32.xlu0 %v1434, 32
  %v4094 = vpop.permute.xlu0 %4093
  %4095 = vrot.lane.b32.xlu0 %v1436, 32
  %v4096 = vpop.permute.xlu0 %4095
  %4097 = vrot.lane.b32.xlu0 %v1439, 32
  %v4098 = vpop.permute.xlu0 %4097
  %4099 = vrot.lane.b32.xlu0 %v1441, 32
  %v4100 = vpop.permute.xlu0 %4099
  %4101 = vrot.lane.b32.xlu0 %v1444, 32
  %v4102 = vpop.permute.xlu0 %4101
  %4103 = vrot.lane.b32.xlu0 %v1446, 32
  %v4104 = vpop.permute.xlu0 %4103
  %4105 = vrot.lane.b32.xlu0 %v1449, 32
  %v4106 = vpop.permute.xlu0 %4105
  %4107 = vrot.lane.b32.xlu0 %v1451, 32
  %v4108 = vpop.permute.xlu0 %4107
  %4109 = vrot.lane.b32.xlu0 %v1454, 32
  %v4110 = vpop.permute.xlu0 %4109
  %4111 = vrot.lane.b32.xlu0 %v1456, 32
  %v4112 = vpop.permute.xlu0 %4111
  %4113 = vrot.lane.b32.xlu0 %v2658, 32
  %v4114 = vpop.permute.xlu0 %4113
  %4115 = vrot.lane.b32.xlu0 %v2660, 32
  %v4116 = vpop.permute.xlu0 %4115
  %4117 = vrot.lane.b32.xlu0 %v3862, 32
  %v4118 = vpop.permute.xlu0 %4117
  %4119 = vrot.lane.b32.xlu0 %v3864, 32
  %v4120 = vpop.permute.xlu0 %4119
  %vm4249 = vcmask 31744
  %v4250 = vsel %vm4249, %v23, %v753
  %v4251 = vsel %vm4249, %v24, %v755
  %v4252 = vsel %vm4249, %v26, %v757
  %v4253 = vsel %vm4249, %v27, %v759
  %v4254 = vsel %vm4249, %v29, %v761
  %v4255 = vsel %vm4249, %v30, %v763
  %v4256 = vsel %vm4249, %v32, %v765
  %v4257 = vsel %vm4249, %v33, %v767
  %v4258 = vsel %vm4249, %v35, %v769
  %v4259 = vsel %vm4249, %v36, %v771
  %v4260 = vsel %vm4249, %v38, %v773
  %v4261 = vsel %vm4249, %v39, %v775
  %v4262 = vsel %vm4249, %v41, %v777
  %v4263 = vsel %vm4249, %v42, %v779
  %v4264 = vsel %vm4249, %v44, %v781
  %v4265 = vsel %vm4249, %v45, %v783
  %v4266 = vsel %vm4249, %v47, %v785
  %v4267 = vsel %vm4249, %v48, %v787
  %v4268 = vsel %vm4249, %v50, %v789
  %v4269 = vsel %vm4249, %v51, %v791
  %v4270 = vsel %vm4249, %v53, %v793
  %v4271 = vsel %vm4249, %v54, %v795
  %v4272 = vsel %vm4249, %v56, %v797
  %v4273 = vsel %vm4249, %v57, %v799
  %v4274 = vsel %vm4249, %v59, %v801
  %v4275 = vsel %vm4249, %v60, %v803
  %v4276 = vsel %vm4249, %v62, %v805
  %v4277 = vsel %vm4249, %v63, %v807
  %v4278 = vsel %vm4249, %v65, %v809
  %v4279 = vsel %vm4249, %v66, %v811
  %v4280 = vsel %vm4249, %v68, %v813
  %v4281 = vsel %vm4249, %v69, %v815
  %v4282 = vsel %vm4249, %v77, %v817
  %v4283 = vsel %vm4249, %v78, %v819
  %v4284 = vsel %vm4249, %v80, %v821
  %v4285 = vsel %vm4249, %v81, %v823
  %v4286 = vsel %vm4249, %v83, %v825
  %v4287 = vsel %vm4249, %v84, %v827
  %v4288 = vsel %vm4249, %v86, %v829
  %v4289 = vsel %vm4249, %v87, %v831
  %v4290 = vsel %vm4249, %v89, %v833
  %v4291 = vsel %vm4249, %v90, %v835
  %v4292 = vsel %vm4249, %v92, %v837
  %v4293 = vsel %vm4249, %v93, %v839
  %v4294 = vsel %vm4249, %v95, %v841
  %v4295 = vsel %vm4249, %v96, %v843
  %v4296 = vsel %vm4249, %v98, %v845
  %v4297 = vsel %vm4249, %v99, %v847
  %v4298 = vsel %vm4249, %v101, %v849
  %v4299 = vsel %vm4249, %v102, %v851
  %v4300 = vsel %vm4249, %v104, %v853
  %v4301 = vsel %vm4249, %v105, %v855
  %v4302 = vsel %vm4249, %v107, %v857
  %v4303 = vsel %vm4249, %v108, %v859
  %v4304 = vsel %vm4249, %v110, %v861
  %v4305 = vsel %vm4249, %v111, %v863
  %v4306 = vsel %vm4249, %v113, %v865
  %v4307 = vsel %vm4249, %v114, %v867
  %v4308 = vsel %vm4249, %v116, %v869
  %v4309 = vsel %vm4249, %v117, %v871
  %v4310 = vsel %vm4249, %v119, %v873
  %v4311 = vsel %vm4249, %v120, %v875
  %v4312 = vsel %vm4249, %v122, %v877
  %v4313 = vsel %vm4249, %v123, %v879
  %v4314 = vsel %vm4249, %v131, %v881
  %v4315 = vsel %vm4249, %v132, %v883
  %v4316 = vsel %vm4249, %v134, %v885
  %v4317 = vsel %vm4249, %v135, %v887
  %v4318 = vsel %vm4249, %v137, %v889
  %v4319 = vsel %vm4249, %v138, %v891
  %v4320 = vsel %vm4249, %v140, %v893
  %v4321 = vsel %vm4249, %v141, %v895
  %v4322 = vsel %vm4249, %v143, %v897
  %v4323 = vsel %vm4249, %v144, %v899
  %v4324 = vsel %vm4249, %v146, %v901
  %v4325 = vsel %vm4249, %v147, %v903
  %v4326 = vsel %vm4249, %v149, %v905
  %v4327 = vsel %vm4249, %v150, %v907
  %v4328 = vsel %vm4249, %v152, %v909
  %v4329 = vsel %vm4249, %v153, %v911
  %v4330 = vsel %vm4249, %v155, %v913
  %v4331 = vsel %vm4249, %v156, %v915
  %v4332 = vsel %vm4249, %v158, %v917
  %v4333 = vsel %vm4249, %v159, %v919
  %v4334 = vsel %vm4249, %v161, %v921
  %v4335 = vsel %vm4249, %v162, %v923
  %v4336 = vsel %vm4249, %v164, %v925
  %v4337 = vsel %vm4249, %v165, %v927
  %v4338 = vsel %vm4249, %v167, %v929
  %v4339 = vsel %vm4249, %v168, %v931
  %v4340 = vsel %vm4249, %v170, %v933
  %v4341 = vsel %vm4249, %v171, %v935
  %v4342 = vsel %vm4249, %v173, %v937
  %v4343 = vsel %vm4249, %v174, %v939
  %v4344 = vsel %vm4249, %v176, %v941
  %v4345 = vsel %vm4249, %v177, %v943
  %v4346 = vsel %vm4249, %v185, %v945
  %v4347 = vsel %vm4249, %v186, %v947
  %v4348 = vsel %vm4249, %v188, %v949
  %v4349 = vsel %vm4249, %v189, %v951
  %v4350 = vsel %vm4249, %v191, %v953
  %v4351 = vsel %vm4249, %v192, %v955
  %v4352 = vsel %vm4249, %v194, %v957
  %v4353 = vsel %vm4249, %v195, %v959
  %v4354 = vsel %vm4249, %v197, %v961
  %v4355 = vsel %vm4249, %v198, %v963
  %v4356 = vsel %vm4249, %v200, %v965
  %v4357 = vsel %vm4249, %v201, %v967
  %v4358 = vsel %vm4249, %v203, %v969
  %v4359 = vsel %vm4249, %v204, %v971
  %v4360 = vsel %vm4249, %v206, %v973
  %v4361 = vsel %vm4249, %v207, %v975
  %v4362 = vsel %vm4249, %v209, %v977
  %v4363 = vsel %vm4249, %v210, %v979
  %v4364 = vsel %vm4249, %v212, %v981
  %v4365 = vsel %vm4249, %v213, %v983
  %v4366 = vsel %vm4249, %v215, %v985
  %v4367 = vsel %vm4249, %v216, %v987
  %v4368 = vsel %vm4249, %v218, %v989
  %v4369 = vsel %vm4249, %v219, %v991
  %v4370 = vsel %vm4249, %v221, %v993
  %v4371 = vsel %vm4249, %v222, %v995
  %v4372 = vsel %vm4249, %v224, %v997
  %v4373 = vsel %vm4249, %v225, %v999
  %v4374 = vsel %vm4249, %v227, %v1001
  %v4375 = vsel %vm4249, %v228, %v1003
  %v4376 = vsel %vm4249, %v230, %v1005
  %v4377 = vsel %vm4249, %v231, %v1007
  %vm4378 = vcmask 64512
  %v4379 = vsel %vm4378, %v4250, %v1458
  %v4380 = vsel %vm4378, %v4251, %v1460
  %v4381 = vsel %vm4378, %v4252, %v1462
  %v4382 = vsel %vm4378, %v4253, %v1464
  %v4383 = vsel %vm4378, %v4254, %v1466
  %v4384 = vsel %vm4378, %v4255, %v1468
  %v4385 = vsel %vm4378, %v4256, %v1470
  %v4386 = vsel %vm4378, %v4257, %v1472
  %v4387 = vsel %vm4378, %v4258, %v1474
  %v4388 = vsel %vm4378, %v4259, %v1476
  %v4389 = vsel %vm4378, %v4260, %v1478
  %v4390 = vsel %vm4378, %v4261, %v1480
  %v4391 = vsel %vm4378, %v4262, %v1482
  %v4392 = vsel %vm4378, %v4263, %v1484
  %v4393 = vsel %vm4378, %v4264, %v1486
  %v4394 = vsel %vm4378, %v4265, %v1488
  %v4395 = vsel %vm4378, %v4266, %v1490
  %v4396 = vsel %vm4378, %v4267, %v1492
  %v4397 = vsel %vm4378, %v4268, %v1494
  %v4398 = vsel %vm4378, %v4269, %v1496
  %v4399 = vsel %vm4378, %v4270, %v1498
  %v4400 = vsel %vm4378, %v4271, %v1500
  %v4401 = vsel %vm4378, %v4272, %v1502
  %v4402 = vsel %vm4378, %v4273, %v1504
  %v4403 = vsel %vm4378, %v4274, %v1506
  %v4404 = vsel %vm4378, %v4275, %v1508
  %v4405 = vsel %vm4378, %v4276, %v1510
  %v4406 = vsel %vm4378, %v4277, %v1512
  %v4407 = vsel %vm4378, %v4278, %v1514
  %v4408 = vsel %vm4378, %v4279, %v1516
  %v4409 = vsel %vm4378, %v4280, %v1518
  %v4410 = vsel %vm4378, %v4281, %v1520
  %v4411 = vsel %vm4378, %v4282, %v1522
  %v4412 = vsel %vm4378, %v4283, %v1524
  %v4413 = vsel %vm4378, %v4284, %v1526
  %v4414 = vsel %vm4378, %v4285, %v1528
  %v4415 = vsel %vm4378, %v4286, %v1530
  %v4416 = vsel %vm4378, %v4287, %v1532
  %v4417 = vsel %vm4378, %v4288, %v1534
  %v4418 = vsel %vm4378, %v4289, %v1536
  %v4419 = vsel %vm4378, %v4290, %v1538
  %v4420 = vsel %vm4378, %v4291, %v1540
  %v4421 = vsel %vm4378, %v4292, %v1542
  %v4422 = vsel %vm4378, %v4293, %v1544
  %v4423 = vsel %vm4378, %v4294, %v1546
  %v4424 = vsel %vm4378, %v4295, %v1548
  %v4425 = vsel %vm4378, %v4296, %v1550
  %v4426 = vsel %vm4378, %v4297, %v1552
  %v4427 = vsel %vm4378, %v4298, %v1554
  %v4428 = vsel %vm4378, %v4299, %v1556
  %v4429 = vsel %vm4378, %v4300, %v1558
  %v4430 = vsel %vm4378, %v4301, %v1560
  %v4431 = vsel %vm4378, %v4302, %v1562
  %v4432 = vsel %vm4378, %v4303, %v1564
  %v4433 = vsel %vm4378, %v4304, %v1566
  %v4434 = vsel %vm4378, %v4305, %v1568
  %v4435 = vsel %vm4378, %v4306, %v1570
  %v4436 = vsel %vm4378, %v4307, %v1572
  %v4437 = vsel %vm4378, %v4308, %v1574
  %v4438 = vsel %vm4378, %v4309, %v1576
  %v4439 = vsel %vm4378, %v4310, %v1578
  %v4440 = vsel %vm4378, %v4311, %v1580
  %v4441 = vsel %vm4378, %v4312, %v1582
  %v4442 = vsel %vm4378, %v4313, %v1584
  %v4443 = vsel %vm4378, %v4314, %v1586
  %v4444 = vsel %vm4378, %v4315, %v1588
  %v4445 = vsel %vm4378, %v4316, %v1590
  %v4446 = vsel %vm4378, %v4317, %v1592
  %v4447 = vsel %vm4378, %v4318, %v1594
  %v4448 = vsel %vm4378, %v4319, %v1596
  %v4449 = vsel %vm4378, %v4320, %v1598
  %v4450 = vsel %vm4378, %v4321, %v1600
  %v4451 = vsel %vm4378, %v4322, %v1602
  %v4452 = vsel %vm4378, %v4323, %v1604
  %v4453 = vsel %vm4378, %v4324, %v1606
  %v4454 = vsel %vm4378, %v4325, %v1608
  %v4455 = vsel %vm4378, %v4326, %v1610
  %v4456 = vsel %vm4378, %v4327, %v1612
  %v4457 = vsel %vm4378, %v4328, %v1614
  %v4458 = vsel %vm4378, %v4329, %v1616
  %v4459 = vsel %vm4378, %v4330, %v1618
  %v4460 = vsel %vm4378, %v4331, %v1620
  %v4461 = vsel %vm4378, %v4332, %v1622
  %v4462 = vsel %vm4378, %v4333, %v1624
  %v4463 = vsel %vm4378, %v4334, %v1626
  %v4464 = vsel %vm4378, %v4335, %v1628
  %v4465 = vsel %vm4378, %v4336, %v1630
  %v4466 = vsel %vm4378, %v4337, %v1632
  %v4467 = vsel %vm4378, %v4338, %v1634
  %v4468 = vsel %vm4378, %v4339, %v1636
  %v4469 = vsel %vm4378, %v4340, %v1638
  %v4470 = vsel %vm4378, %v4341, %v1640
  %v4471 = vsel %vm4378, %v4342, %v1642
  %v4472 = vsel %vm4378, %v4343, %v1644
  %v4473 = vsel %vm4378, %v4344, %v1646
  %v4474 = vsel %vm4378, %v4345, %v1648
  %v4475 = vsel %vm4378, %v4346, %v1650
  %v4476 = vsel %vm4378, %v4347, %v1652
  %v4477 = vsel %vm4378, %v4348, %v1654
  %v4478 = vsel %vm4378, %v4349, %v1656
  %v4479 = vsel %vm4378, %v4350, %v1658
  %v4480 = vsel %vm4378, %v4351, %v1660
  %v4481 = vsel %vm4378, %v4352, %v1662
  %v4482 = vsel %vm4378, %v4353, %v1664
  %v4483 = vsel %vm4378, %v4354, %v1666
  %v4484 = vsel %vm4378, %v4355, %v1668
  %v4485 = vsel %vm4378, %v4356, %v1670
  %v4486 = vsel %vm4378, %v4357, %v1672
  %v4487 = vsel %vm4378, %v4358, %v1674
  %v4488 = vsel %vm4378, %v4359, %v1676
  %v4489 = vsel %vm4378, %v4360, %v1678
  %v4490 = vsel %vm4378, %v4361, %v1680
  %v4491 = vsel %vm4378, %v4362, %v1682
  %v4492 = vsel %vm4378, %v4363, %v1684
  %v4493 = vsel %vm4378, %v4364, %v1686
  %v4494 = vsel %vm4378, %v4365, %v1688
  %v4495 = vsel %vm4378, %v4366, %v1690
  %v4496 = vsel %vm4378, %v4367, %v1692
  %v4497 = vsel %vm4378, %v4368, %v1694
  %v4498 = vsel %vm4378, %v4369, %v1696
  %v4499 = vsel %vm4378, %v4370, %v1698
  %v4500 = vsel %vm4378, %v4371, %v1700
  %v4501 = vsel %vm4378, %v4372, %v1702
  %v4502 = vsel %vm4378, %v4373, %v1704
  %v4503 = vsel %vm4378, %v4374, %v1706
  %v4504 = vsel %vm4378, %v4375, %v1708
  %v4505 = vsel %vm4378, %v4376, %v1710
  %v4506 = vsel %vm4378, %v4377, %v1712
  %vm4507 = vcmask 97280
  %v4508 = vsel %vm4507, %v4379, %v1850
  %v4509 = vsel %vm4507, %v4380, %v1852
  %v4510 = vsel %vm4507, %v4381, %v1854
  %v4511 = vsel %vm4507, %v4382, %v1856
  %v4512 = vsel %vm4507, %v4383, %v1858
  %v4513 = vsel %vm4507, %v4384, %v1860
  %v4514 = vsel %vm4507, %v4385, %v1862
  %v4515 = vsel %vm4507, %v4386, %v1864
  %v4516 = vsel %vm4507, %v4387, %v1866
  %v4517 = vsel %vm4507, %v4388, %v1868
  %v4518 = vsel %vm4507, %v4389, %v1870
  %v4519 = vsel %vm4507, %v4390, %v1872
  %v4520 = vsel %vm4507, %v4391, %v1874
  %v4521 = vsel %vm4507, %v4392, %v1876
  %v4522 = vsel %vm4507, %v4393, %v1878
  %v4523 = vsel %vm4507, %v4394, %v1880
  %v4524 = vsel %vm4507, %v4395, %v1882
  %v4525 = vsel %vm4507, %v4396, %v1884
  %v4526 = vsel %vm4507, %v4397, %v1886
  %v4527 = vsel %vm4507, %v4398, %v1888
  %v4528 = vsel %vm4507, %v4399, %v1890
  %v4529 = vsel %vm4507, %v4400, %v1892
  %v4530 = vsel %vm4507, %v4401, %v1894
  %v4531 = vsel %vm4507, %v4402, %v1896
  %v4532 = vsel %vm4507, %v4403, %v1898
  %v4533 = vsel %vm4507, %v4404, %v1900
  %v4534 = vsel %vm4507, %v4405, %v1902
  %v4535 = vsel %vm4507, %v4406, %v1904
  %v4536 = vsel %vm4507, %v4407, %v1906
  %v4537 = vsel %vm4507, %v4408, %v1908
  %v4538 = vsel %vm4507, %v4409, %v1910
  %v4539 = vsel %vm4507, %v4410, %v1912
  %v4540 = vsel %vm4507, %v4411, %v1914
  %v4541 = vsel %vm4507, %v4412, %v1916
  %v4542 = vsel %vm4507, %v4413, %v1918
  %v4543 = vsel %vm4507, %v4414, %v1920
  %v4544 = vsel %vm4507, %v4415, %v1922
  %v4545 = vsel %vm4507, %v4416, %v1924
  %v4546 = vsel %vm4507, %v4417, %v1926
  %v4547 = vsel %vm4507, %v4418, %v1928
  %v4548 = vsel %vm4507, %v4419, %v1930
  %v4549 = vsel %vm4507, %v4420, %v1932
  %v4550 = vsel %vm4507, %v4421, %v1934
  %v4551 = vsel %vm4507, %v4422, %v1936
  %v4552 = vsel %vm4507, %v4423, %v1938
  %v4553 = vsel %vm4507, %v4424, %v1940
  %v4554 = vsel %vm4507, %v4425, %v1942
  %v4555 = vsel %vm4507, %v4426, %v1944
  %v4556 = vsel %vm4507, %v4427, %v1946
  %v4557 = vsel %vm4507, %v4428, %v1948
  %v4558 = vsel %vm4507, %v4429, %v1950
  %v4559 = vsel %vm4507, %v4430, %v1952
  %v4560 = vsel %vm4507, %v4431, %v1954
  %v4561 = vsel %vm4507, %v4432, %v1956
  %v4562 = vsel %vm4507, %v4433, %v1958
  %v4563 = vsel %vm4507, %v4434, %v1960
  %v4564 = vsel %vm4507, %v4435, %v1962
  %v4565 = vsel %vm4507, %v4436, %v1964
  %v4566 = vsel %vm4507, %v4437, %v1966
  %v4567 = vsel %vm4507, %v4438, %v1968
  %v4568 = vsel %vm4507, %v4439, %v1970
  %v4569 = vsel %vm4507, %v4440, %v1972
  %v4570 = vsel %vm4507, %v4441, %v1974
  %v4571 = vsel %vm4507, %v4442, %v1976
  %v4572 = vsel %vm4507, %v4443, %v1978
  %v4573 = vsel %vm4507, %v4444, %v1980
  %v4574 = vsel %vm4507, %v4445, %v1982
  %v4575 = vsel %vm4507, %v4446, %v1984
  %v4576 = vsel %vm4507, %v4447, %v1986
  %v4577 = vsel %vm4507, %v4448, %v1988
  %v4578 = vsel %vm4507, %v4449, %v1990
  %v4579 = vsel %vm4507, %v4450, %v1992
  %v4580 = vsel %vm4507, %v4451, %v1994
  %v4581 = vsel %vm4507, %v4452, %v1996
  %v4582 = vsel %vm4507, %v4453, %v1998
  %v4583 = vsel %vm4507, %v4454, %v2000
  %v4584 = vsel %vm4507, %v4455, %v2002
  %v4585 = vsel %vm4507, %v4456, %v2004
  %v4586 = vsel %vm4507, %v4457, %v2006
  %v4587 = vsel %vm4507, %v4458, %v2008
  %v4588 = vsel %vm4507, %v4459, %v2010
  %v4589 = vsel %vm4507, %v4460, %v2012
  %v4590 = vsel %vm4507, %v4461, %v2014
  %v4591 = vsel %vm4507, %v4462, %v2016
  %v4592 = vsel %vm4507, %v4463, %v2018
  %v4593 = vsel %vm4507, %v4464, %v2020
  %v4594 = vsel %vm4507, %v4465, %v2022
  %v4595 = vsel %vm4507, %v4466, %v2024
  %v4596 = vsel %vm4507, %v4467, %v2026
  %v4597 = vsel %vm4507, %v4468, %v2028
  %v4598 = vsel %vm4507, %v4469, %v2030
  %v4599 = vsel %vm4507, %v4470, %v2032
  %v4600 = vsel %vm4507, %v4471, %v2034
  %v4601 = vsel %vm4507, %v4472, %v2036
  %v4602 = vsel %vm4507, %v4473, %v2038
  %v4603 = vsel %vm4507, %v4474, %v2040
  %v4604 = vsel %vm4507, %v4475, %v2042
  %v4605 = vsel %vm4507, %v4476, %v2044
  %v4606 = vsel %vm4507, %v4477, %v2046
  %v4607 = vsel %vm4507, %v4478, %v2048
  %v4608 = vsel %vm4507, %v4479, %v2050
  %v4609 = vsel %vm4507, %v4480, %v2052
  %v4610 = vsel %vm4507, %v4481, %v2054
  %v4611 = vsel %vm4507, %v4482, %v2056
  %v4612 = vsel %vm4507, %v4483, %v2058
  %v4613 = vsel %vm4507, %v4484, %v2060
  %v4614 = vsel %vm4507, %v4485, %v2062
  %v4615 = vsel %vm4507, %v4486, %v2064
  %v4616 = vsel %vm4507, %v4487, %v2066
  %v4617 = vsel %vm4507, %v4488, %v2068
  %v4618 = vsel %vm4507, %v4489, %v2070
  %v4619 = vsel %vm4507, %v4490, %v2072
  %v4620 = vsel %vm4507, %v4491, %v2074
  %v4621 = vsel %vm4507, %v4492, %v2076
  %v4622 = vsel %vm4507, %v4493, %v2078
  %v4623 = vsel %vm4507, %v4494, %v2080
  %v4624 = vsel %vm4507, %v4495, %v2082
  %v4625 = vsel %vm4507, %v4496, %v2084
  %v4626 = vsel %vm4507, %v4497, %v2086
  %v4627 = vsel %vm4507, %v4498, %v2088
  %v4628 = vsel %vm4507, %v4499, %v2090
  %v4629 = vsel %vm4507, %v4500, %v2092
  %v4630 = vsel %vm4507, %v4501, %v2094
  %v4631 = vsel %vm4507, %v4502, %v2096
  %v4632 = vsel %vm4507, %v4503, %v2098
  %v4633 = vsel %vm4507, %v4504, %v2100
  %v4634 = vsel %vm4507, %v4505, %v2102
  %v4635 = vsel %vm4507, %v4506, %v2104
  %vm4636 = vcmask 130048
  %v4637 = vsel %vm4636, %v4508, %v2258
  %v4638 = vsel %vm4636, %v4509, %v2260
  %v4639 = vsel %vm4636, %v4510, %v2262
  %v4640 = vsel %vm4636, %v4511, %v2264
  %v4641 = vsel %vm4636, %v4512, %v2266
  %v4642 = vsel %vm4636, %v4513, %v2268
  %v4643 = vsel %vm4636, %v4514, %v2270
  %v4644 = vsel %vm4636, %v4515, %v2272
  %v4645 = vsel %vm4636, %v4516, %v2274
  %v4646 = vsel %vm4636, %v4517, %v2276
  %v4647 = vsel %vm4636, %v4518, %v2278
  %v4648 = vsel %vm4636, %v4519, %v2280
  %v4649 = vsel %vm4636, %v4520, %v2282
  %v4650 = vsel %vm4636, %v4521, %v2284
  %v4651 = vsel %vm4636, %v4522, %v2286
  %v4652 = vsel %vm4636, %v4523, %v2288
  %v4653 = vsel %vm4636, %v4524, %v2290
  %v4654 = vsel %vm4636, %v4525, %v2292
  %v4655 = vsel %vm4636, %v4526, %v2294
  %v4656 = vsel %vm4636, %v4527, %v2296
  %v4657 = vsel %vm4636, %v4528, %v2298
  %v4658 = vsel %vm4636, %v4529, %v2300
  %v4659 = vsel %vm4636, %v4530, %v2302
  %v4660 = vsel %vm4636, %v4531, %v2304
  %v4661 = vsel %vm4636, %v4532, %v2306
  %v4662 = vsel %vm4636, %v4533, %v2308
  %v4663 = vsel %vm4636, %v4534, %v2310
  %v4664 = vsel %vm4636, %v4535, %v2312
  %v4665 = vsel %vm4636, %v4536, %v2314
  %v4666 = vsel %vm4636, %v4537, %v2316
  %v4667 = vsel %vm4636, %v4538, %v2318
  %v4668 = vsel %vm4636, %v4539, %v2320
  %v4669 = vsel %vm4636, %v4540, %v2322
  %v4670 = vsel %vm4636, %v4541, %v2324
  %v4671 = vsel %vm4636, %v4542, %v2326
  %v4672 = vsel %vm4636, %v4543, %v2328
  %v4673 = vsel %vm4636, %v4544, %v2330
  %v4674 = vsel %vm4636, %v4545, %v2332
  %v4675 = vsel %vm4636, %v4546, %v2334
  %v4676 = vsel %vm4636, %v4547, %v2336
  %v4677 = vsel %vm4636, %v4548, %v2338
  %v4678 = vsel %vm4636, %v4549, %v2340
  %v4679 = vsel %vm4636, %v4550, %v2342
  %v4680 = vsel %vm4636, %v4551, %v2344
  %v4681 = vsel %vm4636, %v4552, %v2346
  %v4682 = vsel %vm4636, %v4553, %v2348
  %v4683 = vsel %vm4636, %v4554, %v2350
  %v4684 = vsel %vm4636, %v4555, %v2352
  %v4685 = vsel %vm4636, %v4556, %v2354
  %v4686 = vsel %vm4636, %v4557, %v2356
  %v4687 = vsel %vm4636, %v4558, %v2358
  %v4688 = vsel %vm4636, %v4559, %v2360
  %v4689 = vsel %vm4636, %v4560, %v2362
  %v4690 = vsel %vm4636, %v4561, %v2364
  %v4691 = vsel %vm4636, %v4562, %v2366
  %v4692 = vsel %vm4636, %v4563, %v2368
  %v4693 = vsel %vm4636, %v4564, %v2370
  %v4694 = vsel %vm4636, %v4565, %v2372
  %v4695 = vsel %vm4636, %v4566, %v2374
  %v4696 = vsel %vm4636, %v4567, %v2376
  %v4697 = vsel %vm4636, %v4568, %v2378
  %v4698 = vsel %vm4636, %v4569, %v2380
  %v4699 = vsel %vm4636, %v4570, %v2382
  %v4700 = vsel %vm4636, %v4571, %v2384
  %v4701 = vsel %vm4636, %v4572, %v2386
  %v4702 = vsel %vm4636, %v4573, %v2388
  %v4703 = vsel %vm4636, %v4574, %v2390
  %v4704 = vsel %vm4636, %v4575, %v2392
  %v4705 = vsel %vm4636, %v4576, %v2394
  %v4706 = vsel %vm4636, %v4577, %v2396
  %v4707 = vsel %vm4636, %v4578, %v2398
  %v4708 = vsel %vm4636, %v4579, %v2400
  %v4709 = vsel %vm4636, %v4580, %v2402
  %v4710 = vsel %vm4636, %v4581, %v2404
  %v4711 = vsel %vm4636, %v4582, %v2406
  %v4712 = vsel %vm4636, %v4583, %v2408
  %v4713 = vsel %vm4636, %v4584, %v2410
  %v4714 = vsel %vm4636, %v4585, %v2412
  %v4715 = vsel %vm4636, %v4586, %v2414
  %v4716 = vsel %vm4636, %v4587, %v2416
  %v4717 = vsel %vm4636, %v4588, %v2418
  %v4718 = vsel %vm4636, %v4589, %v2420
  %v4719 = vsel %vm4636, %v4590, %v2422
  %v4720 = vsel %vm4636, %v4591, %v2424
  %v4721 = vsel %vm4636, %v4592, %v2426
  %v4722 = vsel %vm4636, %v4593, %v2428
  %v4723 = vsel %vm4636, %v4594, %v2430
  %v4724 = vsel %vm4636, %v4595, %v2432
  %v4725 = vsel %vm4636, %v4596, %v2434
  %v4726 = vsel %vm4636, %v4597, %v2436
  %v4727 = vsel %vm4636, %v4598, %v2438
  %v4728 = vsel %vm4636, %v4599, %v2440
  %v4729 = vsel %vm4636, %v4600, %v2442
  %v4730 = vsel %vm4636, %v4601, %v2444
  %v4731 = vsel %vm4636, %v4602, %v2446
  %v4732 = vsel %vm4636, %v4603, %v2448
  %v4733 = vsel %vm4636, %v4604, %v2450
  %v4734 = vsel %vm4636, %v4605, %v2452
  %v4735 = vsel %vm4636, %v4606, %v2454
  %v4736 = vsel %vm4636, %v4607, %v2456
  %v4737 = vsel %vm4636, %v4608, %v2458
  %v4738 = vsel %vm4636, %v4609, %v2460
  %v4739 = vsel %vm4636, %v4610, %v2462
  %v4740 = vsel %vm4636, %v4611, %v2464
  %v4741 = vsel %vm4636, %v4612, %v2466
  %v4742 = vsel %vm4636, %v4613, %v2468
  %v4743 = vsel %vm4636, %v4614, %v2470
  %v4744 = vsel %vm4636, %v4615, %v2472
  %v4745 = vsel %vm4636, %v4616, %v2474
  %v4746 = vsel %vm4636, %v4617, %v2476
  %v4747 = vsel %vm4636, %v4618, %v2478
  %v4748 = vsel %vm4636, %v4619, %v2480
  %v4749 = vsel %vm4636, %v4620, %v2482
  %v4750 = vsel %vm4636, %v4621, %v2484
  %v4751 = vsel %vm4636, %v4622, %v2486
  %v4752 = vsel %vm4636, %v4623, %v2488
  %v4753 = vsel %vm4636, %v4624, %v2490
  %v4754 = vsel %vm4636, %v4625, %v2492
  %v4755 = vsel %vm4636, %v4626, %v2494
  %v4756 = vsel %vm4636, %v4627, %v2496
  %v4757 = vsel %vm4636, %v4628, %v2498
  %v4758 = vsel %vm4636, %v4629, %v2500
  %v4759 = vsel %vm4636, %v4630, %v2502
  %v4760 = vsel %vm4636, %v4631, %v2504
  %v4761 = vsel %vm4636, %v4632, %v2506
  %v4762 = vsel %vm4636, %v4633, %v2508
  %v4763 = vsel %vm4636, %v4634, %v2510
  %v4764 = vsel %vm4636, %v4635, %v2512
  %vm4765 = vcmask 162816
  %v4766 = vsel %vm4765, %v4637, %v2662
  %v4767 = vsel %vm4765, %v4638, %v2664
  %v4768 = vsel %vm4765, %v4639, %v2666
  %v4769 = vsel %vm4765, %v4640, %v2668
  %v4770 = vsel %vm4765, %v4641, %v2670
  %v4771 = vsel %vm4765, %v4642, %v2672
  %v4772 = vsel %vm4765, %v4643, %v2674
  %v4773 = vsel %vm4765, %v4644, %v2676
  %v4774 = vsel %vm4765, %v4645, %v2678
  %v4775 = vsel %vm4765, %v4646, %v2680
  %v4776 = vsel %vm4765, %v4647, %v2682
  %v4777 = vsel %vm4765, %v4648, %v2684
  %v4778 = vsel %vm4765, %v4649, %v2686
  %v4779 = vsel %vm4765, %v4650, %v2688
  %v4780 = vsel %vm4765, %v4651, %v2690
  %v4781 = vsel %vm4765, %v4652, %v2692
  %v4782 = vsel %vm4765, %v4653, %v2694
  %v4783 = vsel %vm4765, %v4654, %v2696
  %v4784 = vsel %vm4765, %v4655, %v2698
  %v4785 = vsel %vm4765, %v4656, %v2700
  %v4786 = vsel %vm4765, %v4657, %v2702
  %v4787 = vsel %vm4765, %v4658, %v2704
  %v4788 = vsel %vm4765, %v4659, %v2706
  %v4789 = vsel %vm4765, %v4660, %v2708
  %v4790 = vsel %vm4765, %v4661, %v2710
  %v4791 = vsel %vm4765, %v4662, %v2712
  %v4792 = vsel %vm4765, %v4663, %v2714
  %v4793 = vsel %vm4765, %v4664, %v2716
  %v4794 = vsel %vm4765, %v4665, %v2718
  %v4795 = vsel %vm4765, %v4666, %v2720
  %v4796 = vsel %vm4765, %v4667, %v2722
  %v4797 = vsel %vm4765, %v4668, %v2724
  %v4798 = vsel %vm4765, %v4669, %v2726
  %v4799 = vsel %vm4765, %v4670, %v2728
  %v4800 = vsel %vm4765, %v4671, %v2730
  %v4801 = vsel %vm4765, %v4672, %v2732
  %v4802 = vsel %vm4765, %v4673, %v2734
  %v4803 = vsel %vm4765, %v4674, %v2736
  %v4804 = vsel %vm4765, %v4675, %v2738
  %v4805 = vsel %vm4765, %v4676, %v2740
  %v4806 = vsel %vm4765, %v4677, %v2742
  %v4807 = vsel %vm4765, %v4678, %v2744
  %v4808 = vsel %vm4765, %v4679, %v2746
  %v4809 = vsel %vm4765, %v4680, %v2748
  %v4810 = vsel %vm4765, %v4681, %v2750
  %v4811 = vsel %vm4765, %v4682, %v2752
  %v4812 = vsel %vm4765, %v4683, %v2754
  %v4813 = vsel %vm4765, %v4684, %v2756
  %v4814 = vsel %vm4765, %v4685, %v2758
  %v4815 = vsel %vm4765, %v4686, %v2760
  %v4816 = vsel %vm4765, %v4687, %v2762
  %v4817 = vsel %vm4765, %v4688, %v2764
  %v4818 = vsel %vm4765, %v4689, %v2766
  %v4819 = vsel %vm4765, %v4690, %v2768
  %v4820 = vsel %vm4765, %v4691, %v2770
  %v4821 = vsel %vm4765, %v4692, %v2772
  %v4822 = vsel %vm4765, %v4693, %v2774
  %v4823 = vsel %vm4765, %v4694, %v2776
  %v4824 = vsel %vm4765, %v4695, %v2778
  %v4825 = vsel %vm4765, %v4696, %v2780
  %v4826 = vsel %vm4765, %v4697, %v2782
  %v4827 = vsel %vm4765, %v4698, %v2784
  %v4828 = vsel %vm4765, %v4699, %v2786
  %v4829 = vsel %vm4765, %v4700, %v2788
  %v4830 = vsel %vm4765, %v4701, %v2790
  %v4831 = vsel %vm4765, %v4702, %v2792
  %v4832 = vsel %vm4765, %v4703, %v2794
  %v4833 = vsel %vm4765, %v4704, %v2796
  %v4834 = vsel %vm4765, %v4705, %v2798
  %v4835 = vsel %vm4765, %v4706, %v2800
  %v4836 = vsel %vm4765, %v4707, %v2802
  %v4837 = vsel %vm4765, %v4708, %v2804
  %v4838 = vsel %vm4765, %v4709, %v2806
  %v4839 = vsel %vm4765, %v4710, %v2808
  %v4840 = vsel %vm4765, %v4711, %v2810
  %v4841 = vsel %vm4765, %v4712, %v2812
  %v4842 = vsel %vm4765, %v4713, %v2814
  %v4843 = vsel %vm4765, %v4714, %v2816
  %v4844 = vsel %vm4765, %v4715, %v2818
  %v4845 = vsel %vm4765, %v4716, %v2820
  %v4846 = vsel %vm4765, %v4717, %v2822
  %v4847 = vsel %vm4765, %v4718, %v2824
  %v4848 = vsel %vm4765, %v4719, %v2826
  %v4849 = vsel %vm4765, %v4720, %v2828
  %v4850 = vsel %vm4765, %v4721, %v2830
  %v4851 = vsel %vm4765, %v4722, %v2832
  %v4852 = vsel %vm4765, %v4723, %v2834
  %v4853 = vsel %vm4765, %v4724, %v2836
  %v4854 = vsel %vm4765, %v4725, %v2838
  %v4855 = vsel %vm4765, %v4726, %v2840
  %v4856 = vsel %vm4765, %v4727, %v2842
  %v4857 = vsel %vm4765, %v4728, %v2844
  %v4858 = vsel %vm4765, %v4729, %v2846
  %v4859 = vsel %vm4765, %v4730, %v2848
  %v4860 = vsel %vm4765, %v4731, %v2850
  %v4861 = vsel %vm4765, %v4732, %v2852
  %v4862 = vsel %vm4765, %v4733, %v2854
  %v4863 = vsel %vm4765, %v4734, %v2856
  %v4864 = vsel %vm4765, %v4735, %v2858
  %v4865 = vsel %vm4765, %v4736, %v2860
  %v4866 = vsel %vm4765, %v4737, %v2862
  %v4867 = vsel %vm4765, %v4738, %v2864
  %v4868 = vsel %vm4765, %v4739, %v2866
  %v4869 = vsel %vm4765, %v4740, %v2868
  %v4870 = vsel %vm4765, %v4741, %v2870
  %v4871 = vsel %vm4765, %v4742, %v2872
  %v4872 = vsel %vm4765, %v4743, %v2874
  %v4873 = vsel %vm4765, %v4744, %v2876
  %v4874 = vsel %vm4765, %v4745, %v2878
  %v4875 = vsel %vm4765, %v4746, %v2880
  %v4876 = vsel %vm4765, %v4747, %v2882
  %v4877 = vsel %vm4765, %v4748, %v2884
  %v4878 = vsel %vm4765, %v4749, %v2886
  %v4879 = vsel %vm4765, %v4750, %v2888
  %v4880 = vsel %vm4765, %v4751, %v2890
  %v4881 = vsel %vm4765, %v4752, %v2892
  %v4882 = vsel %vm4765, %v4753, %v2894
  %v4883 = vsel %vm4765, %v4754, %v2896
  %v4884 = vsel %vm4765, %v4755, %v2898
  %v4885 = vsel %vm4765, %v4756, %v2900
  %v4886 = vsel %vm4765, %v4757, %v2902
  %v4887 = vsel %vm4765, %v4758, %v2904
  %v4888 = vsel %vm4765, %v4759, %v2906
  %v4889 = vsel %vm4765, %v4760, %v2908
  %v4890 = vsel %vm4765, %v4761, %v2910
  %v4891 = vsel %vm4765, %v4762, %v2912
  %v4892 = vsel %vm4765, %v4763, %v2914
  %v4893 = vsel %vm4765, %v4764, %v2916
  %vm4894 = vcmask 195584
  %v4895 = vsel %vm4894, %v4766, %v3054
  %v4896 = vsel %vm4894, %v4767, %v3056
  %v4897 = vsel %vm4894, %v4768, %v3058
  %v4898 = vsel %vm4894, %v4769, %v3060
  %v4899 = vsel %vm4894, %v4770, %v3062
  %v4900 = vsel %vm4894, %v4771, %v3064
  %v4901 = vsel %vm4894, %v4772, %v3066
  %v4902 = vsel %vm4894, %v4773, %v3068
  %v4903 = vsel %vm4894, %v4774, %v3070
  %v4904 = vsel %vm4894, %v4775, %v3072
  %v4905 = vsel %vm4894, %v4776, %v3074
  %v4906 = vsel %vm4894, %v4777, %v3076
  %v4907 = vsel %vm4894, %v4778, %v3078
  %v4908 = vsel %vm4894, %v4779, %v3080
  %v4909 = vsel %vm4894, %v4780, %v3082
  %v4910 = vsel %vm4894, %v4781, %v3084
  %v4911 = vsel %vm4894, %v4782, %v3086
  %v4912 = vsel %vm4894, %v4783, %v3088
  %v4913 = vsel %vm4894, %v4784, %v3090
  %v4914 = vsel %vm4894, %v4785, %v3092
  %v4915 = vsel %vm4894, %v4786, %v3094
  %v4916 = vsel %vm4894, %v4787, %v3096
  %v4917 = vsel %vm4894, %v4788, %v3098
  %v4918 = vsel %vm4894, %v4789, %v3100
  %v4919 = vsel %vm4894, %v4790, %v3102
  %v4920 = vsel %vm4894, %v4791, %v3104
  %v4921 = vsel %vm4894, %v4792, %v3106
  %v4922 = vsel %vm4894, %v4793, %v3108
  %v4923 = vsel %vm4894, %v4794, %v3110
  %v4924 = vsel %vm4894, %v4795, %v3112
  %v4925 = vsel %vm4894, %v4796, %v3114
  %v4926 = vsel %vm4894, %v4797, %v3116
  %v4927 = vsel %vm4894, %v4798, %v3118
  %v4928 = vsel %vm4894, %v4799, %v3120
  %v4929 = vsel %vm4894, %v4800, %v3122
  %v4930 = vsel %vm4894, %v4801, %v3124
  %v4931 = vsel %vm4894, %v4802, %v3126
  %v4932 = vsel %vm4894, %v4803, %v3128
  %v4933 = vsel %vm4894, %v4804, %v3130
  %v4934 = vsel %vm4894, %v4805, %v3132
  %v4935 = vsel %vm4894, %v4806, %v3134
  %v4936 = vsel %vm4894, %v4807, %v3136
  %v4937 = vsel %vm4894, %v4808, %v3138
  %v4938 = vsel %vm4894, %v4809, %v3140
  %v4939 = vsel %vm4894, %v4810, %v3142
  %v4940 = vsel %vm4894, %v4811, %v3144
  %v4941 = vsel %vm4894, %v4812, %v3146
  %v4942 = vsel %vm4894, %v4813, %v3148
  %v4943 = vsel %vm4894, %v4814, %v3150
  %v4944 = vsel %vm4894, %v4815, %v3152
  %v4945 = vsel %vm4894, %v4816, %v3154
  %v4946 = vsel %vm4894, %v4817, %v3156
  %v4947 = vsel %vm4894, %v4818, %v3158
  %v4948 = vsel %vm4894, %v4819, %v3160
  %v4949 = vsel %vm4894, %v4820, %v3162
  %v4950 = vsel %vm4894, %v4821, %v3164
  %v4951 = vsel %vm4894, %v4822, %v3166
  %v4952 = vsel %vm4894, %v4823, %v3168
  %v4953 = vsel %vm4894, %v4824, %v3170
  %v4954 = vsel %vm4894, %v4825, %v3172
  %v4955 = vsel %vm4894, %v4826, %v3174
  %v4956 = vsel %vm4894, %v4827, %v3176
  %v4957 = vsel %vm4894, %v4828, %v3178
  %v4958 = vsel %vm4894, %v4829, %v3180
  %v4959 = vsel %vm4894, %v4830, %v3182
  %v4960 = vsel %vm4894, %v4831, %v3184
  %v4961 = vsel %vm4894, %v4832, %v3186
  %v4962 = vsel %vm4894, %v4833, %v3188
  %v4963 = vsel %vm4894, %v4834, %v3190
  %v4964 = vsel %vm4894, %v4835, %v3192
  %v4965 = vsel %vm4894, %v4836, %v3194
  %v4966 = vsel %vm4894, %v4837, %v3196
  %v4967 = vsel %vm4894, %v4838, %v3198
  %v4968 = vsel %vm4894, %v4839, %v3200
  %v4969 = vsel %vm4894, %v4840, %v3202
  %v4970 = vsel %vm4894, %v4841, %v3204
  %v4971 = vsel %vm4894, %v4842, %v3206
  %v4972 = vsel %vm4894, %v4843, %v3208
  %v4973 = vsel %vm4894, %v4844, %v3210
  %v4974 = vsel %vm4894, %v4845, %v3212
  %v4975 = vsel %vm4894, %v4846, %v3214
  %v4976 = vsel %vm4894, %v4847, %v3216
  %v4977 = vsel %vm4894, %v4848, %v3218
  %v4978 = vsel %vm4894, %v4849, %v3220
  %v4979 = vsel %vm4894, %v4850, %v3222
  %v4980 = vsel %vm4894, %v4851, %v3224
  %v4981 = vsel %vm4894, %v4852, %v3226
  %v4982 = vsel %vm4894, %v4853, %v3228
  %v4983 = vsel %vm4894, %v4854, %v3230
  %v4984 = vsel %vm4894, %v4855, %v3232
  %v4985 = vsel %vm4894, %v4856, %v3234
  %v4986 = vsel %vm4894, %v4857, %v3236
  %v4987 = vsel %vm4894, %v4858, %v3238
  %v4988 = vsel %vm4894, %v4859, %v3240
  %v4989 = vsel %vm4894, %v4860, %v3242
  %v4990 = vsel %vm4894, %v4861, %v3244
  %v4991 = vsel %vm4894, %v4862, %v3246
  %v4992 = vsel %vm4894, %v4863, %v3248
  %v4993 = vsel %vm4894, %v4864, %v3250
  %v4994 = vsel %vm4894, %v4865, %v3252
  %v4995 = vsel %vm4894, %v4866, %v3254
  %v4996 = vsel %vm4894, %v4867, %v3256
  %v4997 = vsel %vm4894, %v4868, %v3258
  %v4998 = vsel %vm4894, %v4869, %v3260
  %v4999 = vsel %vm4894, %v4870, %v3262
  %v5000 = vsel %vm4894, %v4871, %v3264
  %v5001 = vsel %vm4894, %v4872, %v3266
  %v5002 = vsel %vm4894, %v4873, %v3268
  %v5003 = vsel %vm4894, %v4874, %v3270
  %v5004 = vsel %vm4894, %v4875, %v3272
  %v5005 = vsel %vm4894, %v4876, %v3274
  %v5006 = vsel %vm4894, %v4877, %v3276
  %v5007 = vsel %vm4894, %v4878, %v3278
  %v5008 = vsel %vm4894, %v4879, %v3280
  %v5009 = vsel %vm4894, %v4880, %v3282
  %v5010 = vsel %vm4894, %v4881, %v3284
  %v5011 = vsel %vm4894, %v4882, %v3286
  %v5012 = vsel %vm4894, %v4883, %v3288
  %v5013 = vsel %vm4894, %v4884, %v3290
  %v5014 = vsel %vm4894, %v4885, %v3292
  %v5015 = vsel %vm4894, %v4886, %v3294
  %v5016 = vsel %vm4894, %v4887, %v3296
  %v5017 = vsel %vm4894, %v4888, %v3298
  %v5018 = vsel %vm4894, %v4889, %v3300
  %v5019 = vsel %vm4894, %v4890, %v3302
  %v5020 = vsel %vm4894, %v4891, %v3304
  %v5021 = vsel %vm4894, %v4892, %v3306
  %v5022 = vsel %vm4894, %v4893, %v3308
  %vm5023 = vcmask 228352
  %v5024 = vsel %vm5023, %v4895, %v3462
  %v5025 = vsel %vm5023, %v4896, %v3464
  %v5026 = vsel %vm5023, %v4897, %v3466
  %v5027 = vsel %vm5023, %v4898, %v3468
  %v5028 = vsel %vm5023, %v4899, %v3470
  %v5029 = vsel %vm5023, %v4900, %v3472
  %v5030 = vsel %vm5023, %v4901, %v3474
  %v5031 = vsel %vm5023, %v4902, %v3476
  %v5032 = vsel %vm5023, %v4903, %v3478
  %v5033 = vsel %vm5023, %v4904, %v3480
  %v5034 = vsel %vm5023, %v4905, %v3482
  %v5035 = vsel %vm5023, %v4906, %v3484
  %v5036 = vsel %vm5023, %v4907, %v3486
  %v5037 = vsel %vm5023, %v4908, %v3488
  %v5038 = vsel %vm5023, %v4909, %v3490
  %v5039 = vsel %vm5023, %v4910, %v3492
  %v5040 = vsel %vm5023, %v4911, %v3494
  %v5041 = vsel %vm5023, %v4912, %v3496
  %v5042 = vsel %vm5023, %v4913, %v3498
  %v5043 = vsel %vm5023, %v4914, %v3500
  %v5044 = vsel %vm5023, %v4915, %v3502
  %v5045 = vsel %vm5023, %v4916, %v3504
  %v5046 = vsel %vm5023, %v4917, %v3506
  %v5047 = vsel %vm5023, %v4918, %v3508
  %v5048 = vsel %vm5023, %v4919, %v3510
  %v5049 = vsel %vm5023, %v4920, %v3512
  %v5050 = vsel %vm5023, %v4921, %v3514
  %v5051 = vsel %vm5023, %v4922, %v3516
  %v5052 = vsel %vm5023, %v4923, %v3518
  %v5053 = vsel %vm5023, %v4924, %v3520
  %v5054 = vsel %vm5023, %v4925, %v3522
  %v5055 = vsel %vm5023, %v4926, %v3524
  %v5056 = vsel %vm5023, %v4927, %v3526
  %v5057 = vsel %vm5023, %v4928, %v3528
  %v5058 = vsel %vm5023, %v4929, %v3530
  %v5059 = vsel %vm5023, %v4930, %v3532
  %v5060 = vsel %vm5023, %v4931, %v3534
  %v5061 = vsel %vm5023, %v4932, %v3536
  %v5062 = vsel %vm5023, %v4933, %v3538
  %v5063 = vsel %vm5023, %v4934, %v3540
  %v5064 = vsel %vm5023, %v4935, %v3542
  %v5065 = vsel %vm5023, %v4936, %v3544
  %v5066 = vsel %vm5023, %v4937, %v3546
  %v5067 = vsel %vm5023, %v4938, %v3548
  %v5068 = vsel %vm5023, %v4939, %v3550
  %v5069 = vsel %vm5023, %v4940, %v3552
  %v5070 = vsel %vm5023, %v4941, %v3554
  %v5071 = vsel %vm5023, %v4942, %v3556
  %v5072 = vsel %vm5023, %v4943, %v3558
  %v5073 = vsel %vm5023, %v4944, %v3560
  %v5074 = vsel %vm5023, %v4945, %v3562
  %v5075 = vsel %vm5023, %v4946, %v3564
  %v5076 = vsel %vm5023, %v4947, %v3566
  %v5077 = vsel %vm5023, %v4948, %v3568
  %v5078 = vsel %vm5023, %v4949, %v3570
  %v5079 = vsel %vm5023, %v4950, %v3572
  %v5080 = vsel %vm5023, %v4951, %v3574
  %v5081 = vsel %vm5023, %v4952, %v3576
  %v5082 = vsel %vm5023, %v4953, %v3578
  %v5083 = vsel %vm5023, %v4954, %v3580
  %v5084 = vsel %vm5023, %v4955, %v3582
  %v5085 = vsel %vm5023, %v4956, %v3584
  %v5086 = vsel %vm5023, %v4957, %v3586
  %v5087 = vsel %vm5023, %v4958, %v3588
  %v5088 = vsel %vm5023, %v4959, %v3590
  %v5089 = vsel %vm5023, %v4960, %v3592
  %v5090 = vsel %vm5023, %v4961, %v3594
  %v5091 = vsel %vm5023, %v4962, %v3596
  %v5092 = vsel %vm5023, %v4963, %v3598
  %v5093 = vsel %vm5023, %v4964, %v3600
  %v5094 = vsel %vm5023, %v4965, %v3602
  %v5095 = vsel %vm5023, %v4966, %v3604
  %v5096 = vsel %vm5023, %v4967, %v3606
  %v5097 = vsel %vm5023, %v4968, %v3608
  %v5098 = vsel %vm5023, %v4969, %v3610
  %v5099 = vsel %vm5023, %v4970, %v3612
  %v5100 = vsel %vm5023, %v4971, %v3614
  %v5101 = vsel %vm5023, %v4972, %v3616
  %v5102 = vsel %vm5023, %v4973, %v3618
  %v5103 = vsel %vm5023, %v4974, %v3620
  %v5104 = vsel %vm5023, %v4975, %v3622
  %v5105 = vsel %vm5023, %v4976, %v3624
  %v5106 = vsel %vm5023, %v4977, %v3626
  %v5107 = vsel %vm5023, %v4978, %v3628
  %v5108 = vsel %vm5023, %v4979, %v3630
  %v5109 = vsel %vm5023, %v4980, %v3632
  %v5110 = vsel %vm5023, %v4981, %v3634
  %v5111 = vsel %vm5023, %v4982, %v3636
  %v5112 = vsel %vm5023, %v4983, %v3638
  %v5113 = vsel %vm5023, %v4984, %v3640
  %v5114 = vsel %vm5023, %v4985, %v3642
  %v5115 = vsel %vm5023, %v4986, %v3644
  %v5116 = vsel %vm5023, %v4987, %v3646
  %v5117 = vsel %vm5023, %v4988, %v3648
  %v5118 = vsel %vm5023, %v4989, %v3650
  %v5119 = vsel %vm5023, %v4990, %v3652
  %v5120 = vsel %vm5023, %v4991, %v3654
  %v5121 = vsel %vm5023, %v4992, %v3656
  %v5122 = vsel %vm5023, %v4993, %v3658
  %v5123 = vsel %vm5023, %v4994, %v3660
  %v5124 = vsel %vm5023, %v4995, %v3662
  %v5125 = vsel %vm5023, %v4996, %v3664
  %v5126 = vsel %vm5023, %v4997, %v3666
  %v5127 = vsel %vm5023, %v4998, %v3668
  %v5128 = vsel %vm5023, %v4999, %v3670
  %v5129 = vsel %vm5023, %v5000, %v3672
  %v5130 = vsel %vm5023, %v5001, %v3674
  %v5131 = vsel %vm5023, %v5002, %v3676
  %v5132 = vsel %vm5023, %v5003, %v3678
  %v5133 = vsel %vm5023, %v5004, %v3680
  %v5134 = vsel %vm5023, %v5005, %v3682
  %v5135 = vsel %vm5023, %v5006, %v3684
  %v5136 = vsel %vm5023, %v5007, %v3686
  %v5137 = vsel %vm5023, %v5008, %v3688
  %v5138 = vsel %vm5023, %v5009, %v3690
  %v5139 = vsel %vm5023, %v5010, %v3692
  %v5140 = vsel %vm5023, %v5011, %v3694
  %v5141 = vsel %vm5023, %v5012, %v3696
  %v5142 = vsel %vm5023, %v5013, %v3698
  %v5143 = vsel %vm5023, %v5014, %v3700
  %v5144 = vsel %vm5023, %v5015, %v3702
  %v5145 = vsel %vm5023, %v5016, %v3704
  %v5146 = vsel %vm5023, %v5017, %v3706
  %v5147 = vsel %vm5023, %v5018, %v3708
  %v5148 = vsel %vm5023, %v5019, %v3710
  %v5149 = vsel %vm5023, %v5020, %v3712
  %v5150 = vsel %vm5023, %v5021, %v3714
  %v5151 = vsel %vm5023, %v5022, %v3716
  %vm5152 = vcmask 261120
  %v5153 = vsel %vm5152, %v5024, %v3866
  %v5154 = vsel %vm5152, %v5025, %v3868
  %v5155 = vsel %vm5152, %v5026, %v3870
  %v5156 = vsel %vm5152, %v5027, %v3872
  %v5157 = vsel %vm5152, %v5028, %v3874
  %v5158 = vsel %vm5152, %v5029, %v3876
  %v5159 = vsel %vm5152, %v5030, %v3878
  %v5160 = vsel %vm5152, %v5031, %v3880
  %v5161 = vsel %vm5152, %v5032, %v3882
  %v5162 = vsel %vm5152, %v5033, %v3884
  %v5163 = vsel %vm5152, %v5034, %v3886
  %v5164 = vsel %vm5152, %v5035, %v3888
  %v5165 = vsel %vm5152, %v5036, %v3890
  %v5166 = vsel %vm5152, %v5037, %v3892
  %v5167 = vsel %vm5152, %v5038, %v3894
  %v5168 = vsel %vm5152, %v5039, %v3896
  %v5169 = vsel %vm5152, %v5040, %v3898
  %v5170 = vsel %vm5152, %v5041, %v3900
  %v5171 = vsel %vm5152, %v5042, %v3902
  %v5172 = vsel %vm5152, %v5043, %v3904
  %v5173 = vsel %vm5152, %v5044, %v3906
  %v5174 = vsel %vm5152, %v5045, %v3908
  %v5175 = vsel %vm5152, %v5046, %v3910
  %v5176 = vsel %vm5152, %v5047, %v3912
  %v5177 = vsel %vm5152, %v5048, %v3914
  %v5178 = vsel %vm5152, %v5049, %v3916
  %v5179 = vsel %vm5152, %v5050, %v3918
  %v5180 = vsel %vm5152, %v5051, %v3920
  %v5181 = vsel %vm5152, %v5052, %v3922
  %v5182 = vsel %vm5152, %v5053, %v3924
  %v5183 = vsel %vm5152, %v5054, %v3926
  %v5184 = vsel %vm5152, %v5055, %v3928
  %v5185 = vsel %vm5152, %v5056, %v3930
  %v5186 = vsel %vm5152, %v5057, %v3932
  %v5187 = vsel %vm5152, %v5058, %v3934
  %v5188 = vsel %vm5152, %v5059, %v3936
  %v5189 = vsel %vm5152, %v5060, %v3938
  %v5190 = vsel %vm5152, %v5061, %v3940
  %v5191 = vsel %vm5152, %v5062, %v3942
  %v5192 = vsel %vm5152, %v5063, %v3944
  %v5193 = vsel %vm5152, %v5064, %v3946
  %v5194 = vsel %vm5152, %v5065, %v3948
  %v5195 = vsel %vm5152, %v5066, %v3950
  %v5196 = vsel %vm5152, %v5067, %v3952
  %v5197 = vsel %vm5152, %v5068, %v3954
  %v5198 = vsel %vm5152, %v5069, %v3956
  %v5199 = vsel %vm5152, %v5070, %v3958
  %v5200 = vsel %vm5152, %v5071, %v3960
  %v5201 = vsel %vm5152, %v5072, %v3962
  %v5202 = vsel %vm5152, %v5073, %v3964
  %v5203 = vsel %vm5152, %v5074, %v3966
  %v5204 = vsel %vm5152, %v5075, %v3968
  %v5205 = vsel %vm5152, %v5076, %v3970
  %v5206 = vsel %vm5152, %v5077, %v3972
  %v5207 = vsel %vm5152, %v5078, %v3974
  %v5208 = vsel %vm5152, %v5079, %v3976
  %v5209 = vsel %vm5152, %v5080, %v3978
  %v5210 = vsel %vm5152, %v5081, %v3980
  %v5211 = vsel %vm5152, %v5082, %v3982
  %v5212 = vsel %vm5152, %v5083, %v3984
  %v5213 = vsel %vm5152, %v5084, %v3986
  %v5214 = vsel %vm5152, %v5085, %v3988
  %v5215 = vsel %vm5152, %v5086, %v3990
  %v5216 = vsel %vm5152, %v5087, %v3992
  %v5217 = vsel %vm5152, %v5088, %v3994
  %v5218 = vsel %vm5152, %v5089, %v3996
  %v5219 = vsel %vm5152, %v5090, %v3998
  %v5220 = vsel %vm5152, %v5091, %v4000
  %v5221 = vsel %vm5152, %v5092, %v4002
  %v5222 = vsel %vm5152, %v5093, %v4004
  %v5223 = vsel %vm5152, %v5094, %v4006
  %v5224 = vsel %vm5152, %v5095, %v4008
  %v5225 = vsel %vm5152, %v5096, %v4010
  %v5226 = vsel %vm5152, %v5097, %v4012
  %v5227 = vsel %vm5152, %v5098, %v4014
  %v5228 = vsel %vm5152, %v5099, %v4016
  %v5229 = vsel %vm5152, %v5100, %v4018
  %v5230 = vsel %vm5152, %v5101, %v4020
  %v5231 = vsel %vm5152, %v5102, %v4022
  %v5232 = vsel %vm5152, %v5103, %v4024
  %v5233 = vsel %vm5152, %v5104, %v4026
  %v5234 = vsel %vm5152, %v5105, %v4028
  %v5235 = vsel %vm5152, %v5106, %v4030
  %v5236 = vsel %vm5152, %v5107, %v4032
  %v5237 = vsel %vm5152, %v5108, %v4034
  %v5238 = vsel %vm5152, %v5109, %v4036
  %v5239 = vsel %vm5152, %v5110, %v4038
  %v5240 = vsel %vm5152, %v5111, %v4040
  %v5241 = vsel %vm5152, %v5112, %v4042
  %v5242 = vsel %vm5152, %v5113, %v4044
  %v5243 = vsel %vm5152, %v5114, %v4046
  %v5244 = vsel %vm5152, %v5115, %v4048
  %v5245 = vsel %vm5152, %v5116, %v4050
  %v5246 = vsel %vm5152, %v5117, %v4052
  %v5247 = vsel %vm5152, %v5118, %v4054
  %v5248 = vsel %vm5152, %v5119, %v4056
  %v5249 = vsel %vm5152, %v5120, %v4058
  %v5250 = vsel %vm5152, %v5121, %v4060
  %v5251 = vsel %vm5152, %v5122, %v4062
  %v5252 = vsel %vm5152, %v5123, %v4064
  %v5253 = vsel %vm5152, %v5124, %v4066
  %v5254 = vsel %vm5152, %v5125, %v4068
  %v5255 = vsel %vm5152, %v5126, %v4070
  %v5256 = vsel %vm5152, %v5127, %v4072
  %v5257 = vsel %vm5152, %v5128, %v4074
  %v5258 = vsel %vm5152, %v5129, %v4076
  %v5259 = vsel %vm5152, %v5130, %v4078
  %v5260 = vsel %vm5152, %v5131, %v4080
  %v5261 = vsel %vm5152, %v5132, %v4082
  %v5262 = vsel %vm5152, %v5133, %v4084
  %v5263 = vsel %vm5152, %v5134, %v4086
  %v5264 = vsel %vm5152, %v5135, %v4088
  %v5265 = vsel %vm5152, %v5136, %v4090
  %v5266 = vsel %vm5152, %v5137, %v4092
  %v5267 = vsel %vm5152, %v5138, %v4094
  %v5268 = vsel %vm5152, %v5139, %v4096
  %v5269 = vsel %vm5152, %v5140, %v4098
  %v5270 = vsel %vm5152, %v5141, %v4100
  %v5271 = vsel %vm5152, %v5142, %v4102
  %v5272 = vsel %vm5152, %v5143, %v4104
  %v5273 = vsel %vm5152, %v5144, %v4106
  %v5274 = vsel %vm5152, %v5145, %v4108
  %v5275 = vsel %vm5152, %v5146, %v4110
  %v5276 = vsel %vm5152, %v5147, %v4112
  %v5277 = vsel %vm5152, %v5148, %v4114
  %v5278 = vsel %vm5152, %v5149, %v4116
  %v5279 = vsel %vm5152, %v5150, %v4118
  %v5280 = vsel %vm5152, %v5151, %v4120
  %v5281 = vld [vmem:[%s1] sm:$0xff]
  %v5282 = vld [vmem:[%s1 + $0x8] sm:$0xff]
  %v5283 = vld [vmem:[%s1 + $0x10] sm:$0xff]
  %v5284 = vld [vmem:[%s1 + $0x18] sm:$0xff]
  %v5285 = vld [vmem:[%s1 + $0x20] sm:$0xf]
  %v5286 = vld [vmem:[%s2] sm:$0x1]
  %v5288 = vlaneseq
  %v5289 = vshrl.u32 %v5288, 7
  %v5290 = vsub.s32 0, %v5289
  %v5291 = vrot.slane %v5286, %v5290
  %vm5293 = vcmask 293888
  %v5295 = vsel %vm5293, %v5153, 0
  %v5298 = vsel %vm5293, %v5154, 0
  %v5301 = vsel %vm5293, %v5155, 0
  %v5304 = vsel %vm5293, %v5156, 0
  %v5307 = vsel %vm5293, %v5157, 0
  %v5310 = vsel %vm5293, %v5158, 0
  %v5313 = vsel %vm5293, %v5159, 0
  %v5316 = vsel %vm5293, %v5160, 0
  %v5319 = vsel %vm5293, %v5161, 0
  %v5322 = vsel %vm5293, %v5162, 0
  %v5325 = vsel %vm5293, %v5163, 0
  %v5328 = vsel %vm5293, %v5164, 0
  %v5331 = vsel %vm5293, %v5165, 0
  %v5334 = vsel %vm5293, %v5166, 0
  %v5337 = vsel %vm5293, %v5167, 0
  %v5340 = vsel %vm5293, %v5168, 0
  %v5343 = vsel %vm5293, %v5169, 0
  %v5346 = vsel %vm5293, %v5170, 0
  %v5349 = vsel %vm5293, %v5171, 0
  %v5352 = vsel %vm5293, %v5172, 0
  %v5355 = vsel %vm5293, %v5173, 0
  %v5358 = vsel %vm5293, %v5174, 0
  %v5361 = vsel %vm5293, %v5175, 0
  %v5364 = vsel %vm5293, %v5176, 0
  %v5367 = vsel %vm5293, %v5177, 0
  %v5370 = vsel %vm5293, %v5178, 0
  %v5373 = vsel %vm5293, %v5179, 0
  %v5376 = vsel %vm5293, %v5180, 0
  %v5379 = vsel %vm5293, %v5181, 0
  %v5382 = vsel %vm5293, %v5182, 0
  %v5385 = vsel %vm5293, %v5183, 0
  %v5388 = vsel %vm5293, %v5184, 0
  %v5391 = vsel %vm5293, %v5185, 0
  %v5394 = vsel %vm5293, %v5186, 0
  %v5397 = vsel %vm5293, %v5187, 0
  %v5400 = vsel %vm5293, %v5188, 0
  %v5403 = vsel %vm5293, %v5189, 0
  %v5406 = vsel %vm5293, %v5190, 0
  %v5409 = vsel %vm5293, %v5191, 0
  %v5412 = vsel %vm5293, %v5192, 0
  %v5415 = vsel %vm5293, %v5193, 0
  %v5418 = vsel %vm5293, %v5194, 0
  %v5421 = vsel %vm5293, %v5195, 0
  %v5424 = vsel %vm5293, %v5196, 0
  %v5427 = vsel %vm5293, %v5197, 0
  %v5430 = vsel %vm5293, %v5198, 0
  %v5433 = vsel %vm5293, %v5199, 0
  %v5436 = vsel %vm5293, %v5200, 0
  %v5439 = vsel %vm5293, %v5201, 0
  %v5442 = vsel %vm5293, %v5202, 0
  %v5445 = vsel %vm5293, %v5203, 0
  %v5448 = vsel %vm5293, %v5204, 0
  %v5451 = vsel %vm5293, %v5205, 0
  %v5454 = vsel %vm5293, %v5206, 0
  %v5457 = vsel %vm5293, %v5207, 0
  %v5460 = vsel %vm5293, %v5208, 0
  %v5463 = vsel %vm5293, %v5209, 0
  %v5466 = vsel %vm5293, %v5210, 0
  %v5469 = vsel %vm5293, %v5211, 0
  %v5472 = vsel %vm5293, %v5212, 0
  %v5475 = vsel %vm5293, %v5213, 0
  %v5478 = vsel %vm5293, %v5214, 0
  %v5481 = vsel %vm5293, %v5215, 0
  %v5484 = vsel %vm5293, %v5216, 0
  %v5487 = vsel %vm5293, %v5217, 0
  %v5490 = vsel %vm5293, %v5218, 0
  %v5493 = vsel %vm5293, %v5219, 0
  %v5496 = vsel %vm5293, %v5220, 0
  %v5499 = vsel %vm5293, %v5221, 0
  %v5502 = vsel %vm5293, %v5222, 0
  %v5505 = vsel %vm5293, %v5223, 0
  %v5508 = vsel %vm5293, %v5224, 0
  %v5511 = vsel %vm5293, %v5225, 0
  %v5514 = vsel %vm5293, %v5226, 0
  %v5517 = vsel %vm5293, %v5227, 0
  %v5520 = vsel %vm5293, %v5228, 0
  %v5523 = vsel %vm5293, %v5229, 0
  %v5526 = vsel %vm5293, %v5230, 0
  %v5529 = vsel %vm5293, %v5231, 0
  %v5532 = vsel %vm5293, %v5232, 0
  %v5535 = vsel %vm5293, %v5233, 0
  %v5538 = vsel %vm5293, %v5234, 0
  %v5541 = vsel %vm5293, %v5235, 0
  %v5544 = vsel %vm5293, %v5236, 0
  %v5547 = vsel %vm5293, %v5237, 0
  %v5550 = vsel %vm5293, %v5238, 0
  %v5553 = vsel %vm5293, %v5239, 0
  %v5556 = vsel %vm5293, %v5240, 0
  %v5559 = vsel %vm5293, %v5241, 0
  %v5562 = vsel %vm5293, %v5242, 0
  %v5565 = vsel %vm5293, %v5243, 0
  %v5568 = vsel %vm5293, %v5244, 0
  %v5571 = vsel %vm5293, %v5245, 0
  %v5574 = vsel %vm5293, %v5246, 0
  %v5577 = vsel %vm5293, %v5247, 0
  %v5580 = vsel %vm5293, %v5248, 0
  %v5583 = vsel %vm5293, %v5249, 0
  %v5586 = vsel %vm5293, %v5250, 0
  %v5589 = vsel %vm5293, %v5251, 0
  %v5592 = vsel %vm5293, %v5252, 0
  %v5595 = vsel %vm5293, %v5253, 0
  %v5598 = vsel %vm5293, %v5254, 0
  %v5601 = vsel %vm5293, %v5255, 0
  %v5604 = vsel %vm5293, %v5256, 0
  %v5607 = vsel %vm5293, %v5257, 0
  %v5610 = vsel %vm5293, %v5258, 0
  %v5613 = vsel %vm5293, %v5259, 0
  %v5616 = vsel %vm5293, %v5260, 0
  %v5619 = vsel %vm5293, %v5261, 0
  %v5622 = vsel %vm5293, %v5262, 0
  %v5625 = vsel %vm5293, %v5263, 0
  %v5628 = vsel %vm5293, %v5264, 0
  %v5631 = vsel %vm5293, %v5265, 0
  %v5634 = vsel %vm5293, %v5266, 0
  %v5637 = vsel %vm5293, %v5267, 0
  %v5640 = vsel %vm5293, %v5268, 0
  %v5643 = vsel %vm5293, %v5269, 0
  %v5646 = vsel %vm5293, %v5270, 0
  %v5649 = vsel %vm5293, %v5271, 0
  %v5652 = vsel %vm5293, %v5272, 0
  %v5655 = vsel %vm5293, %v5273, 0
  %v5658 = vsel %vm5293, %v5274, 0
  %v5661 = vsel %vm5293, %v5275, 0
  %v5664 = vsel %vm5293, %v5276, 0
  %v5667 = vsel %vm5293, %v5277, 0
  %v5670 = vsel %vm5293, %v5278, 0
  %v5673 = vsel %vm5293, %v5279, 0
  %v5676 = vsel %vm5293, %v5280, 0
  %vm5678 = vcmask 1043456
  %v5680 = vsel %vm5678, %v5285, 0
  %5682 = vmatprep.subr.mxu0 0.0
  %5683 = vmatpush1.msra.mxu0 0.0
  %5684 = vmatprep.subr.mxu0 0.0
  %5685 = vmatpush1.msra.mxu0 0.0
  %5686 = vmatprep.subr.mxu0 0.0
  %5687 = vmatpush1.msra.mxu0 0.0
  %5688 = vmatprep.subr.mxu0 0.0
  %5689 = vmatpush1.msra.mxu0 0.0
  %5690 = vmatprep.subr.mxu0 0.0
  %5691 = vmatpush1.msra.mxu0 0.0
  %5692 = vmatprep.subr.mxu0 0.0
  %5693 = vmatpush1.msra.mxu0 0.0
  %5694 = vmatprep.subr.mxu0 0.0
  %5695 = vmatpush1.msra.mxu0 0.0
  %5696 = vmatprep.subr.mxu0 0.0
  %5697 = vmatpush1.msra.mxu0 0.0
  %5698 = vmatprep.subr.mxu0 0.0
  %5699 = vmatpush1.msra.mxu0 0.0
  %5700 = vmatprep.subr.mxu0 0.0
  %5701 = vmatpush1.msra.mxu0 0.0
  %5702 = vmatprep.subr.mxu0 0.0
  %5703 = vmatpush1.msra.mxu0 0.0
  %5704 = vmatprep.subr.mxu0 0.0
  %5705 = vmatpush1.msra.mxu0 %v5680
  %5706 = vmatprep.subr.mxu0 0.0
  %5707 = vmatpush1.msra.mxu0 %v5284
  %5708 = vmatprep.subr.mxu0 0.0
  %5709 = vmatpush1.msra.mxu0 %v5283
  %5710 = vmatprep.subr.mxu0 0.0
  %5711 = vmatpush1.msra.mxu0 %v5282
  %5712 = vmatprep.subr.mxu0 0.0
  %5713 = vmatpush1.msra.mxu0 %v5281
  %5714 = vmatprep.subr.mxu0 0.0
  %5715 = vmatpush2.msra.mxu0 0.0
  %5716 = vmatprep.subr.mxu0 0.0
  %5717 = vmatpush2.msra.mxu0 0.0
  %5718 = vmatprep.subr.mxu0 0.0
  %5719 = vmatpush2.msra.mxu0 0.0
  %5720 = vmatprep.subr.mxu0 0.0
  %5721 = vmatpush2.msra.mxu0 0.0
  %5722 = vmatprep.subr.mxu0 0.0
  %5723 = vmatpush2.msra.mxu0 0.0
  %5724 = vmatprep.subr.mxu0 0.0
  %5725 = vmatpush2.msra.mxu0 0.0
  %5726 = vmatprep.subr.mxu0 0.0
  %5727 = vmatpush2.msra.mxu0 0.0
  %5728 = vmatprep.subr.mxu0 0.0
  %5729 = vmatpush2.msra.mxu0 0.0
  %5730 = vmatprep.subr.mxu0 0.0
  %5731 = vmatpush2.msra.mxu0 0.0
  %5732 = vmatprep.subr.mxu0 0.0
  %5733 = vmatpush2.msra.mxu0 0.0
  %5734 = vmatprep.subr.mxu0 0.0
  %5735 = vmatpush2.msra.mxu0 0.0
  %5736 = vmatprep.subr.mxu0 0.0
  %5737 = vmatpush2.msra.mxu0 0.0
  %5738 = vmatprep.subr.mxu0 0.0
  %5739 = vmatpush2.msra.mxu0 0.0
  %5740 = vmatprep.subr.mxu0 0.0
  %5741 = vmatpush2.msra.mxu0 0.0
  %5742 = vmatprep.subr.mxu0 0.0
  %5743 = vmatpush2.msra.mxu0 0.0
  %5744 = vmatprep.subr.mxu0 0.0
  %5745 = vmatpush2.msra.mxu0 0.0
  %5746 = vmatprep.mubr.f32.mxu0 0.0
  %5747 = vmatmul.mubr.f32.gmra.mxu0 %v5295
  %v5748 = vpop.f32.mrf.mxu0
  %v5749 = vadd.f32 %v5291, %v5748
  %v5750 = vpop.f32.mrf.mxu0
  %5751 = vmatprep.mubr.f32.mxu0 0.0
  %5752 = vmatmul.mubr.f32.gmra.mxu0 %v5298
  %v5753 = vpop.f32.mrf.mxu0
  %v5754 = vadd.f32 %v5291, %v5753
  %v5755 = vpop.f32.mrf.mxu0
  %5756 = vmatprep.mubr.f32.mxu0 0.0
  %5757 = vmatmul.mubr.f32.gmra.mxu0 %v5301
  %v5758 = vpop.f32.mrf.mxu0
  %v5759 = vadd.f32 %v5291, %v5758
  %v5760 = vpop.f32.mrf.mxu0
  %5761 = vmatprep.mubr.f32.mxu0 0.0
  %5762 = vmatmul.mubr.f32.gmra.mxu0 %v5304
  %v5763 = vpop.f32.mrf.mxu0
  %v5764 = vadd.f32 %v5291, %v5763
  %v5765 = vpop.f32.mrf.mxu0
  %5766 = vmatprep.mubr.f32.mxu0 0.0
  %5767 = vmatmul.mubr.f32.gmra.mxu0 %v5307
  %v5768 = vpop.f32.mrf.mxu0
  %v5769 = vadd.f32 %v5291, %v5768
  %v5770 = vpop.f32.mrf.mxu0
  %5771 = vmatprep.mubr.f32.mxu0 0.0
  %5772 = vmatmul.mubr.f32.gmra.mxu0 %v5310
  %v5773 = vpop.f32.mrf.mxu0
  %v5774 = vadd.f32 %v5291, %v5773
  %v5775 = vpop.f32.mrf.mxu0
  %5776 = vmatprep.mubr.f32.mxu0 0.0
  %5777 = vmatmul.mubr.f32.gmra.mxu0 %v5313
  %v5778 = vpop.f32.mrf.mxu0
  %v5779 = vadd.f32 %v5291, %v5778
  %v5780 = vpop.f32.mrf.mxu0
  %5781 = vmatprep.mubr.f32.mxu0 0.0
  %5782 = vmatmul.mubr.f32.gmra.mxu0 %v5316
  %v5783 = vpop.f32.mrf.mxu0
  %v5784 = vadd.f32 %v5291, %v5783
  %v5785 = vpop.f32.mrf.mxu0
  %5786 = vmatprep.mubr.f32.mxu0 0.0
  %5787 = vmatmul.mubr.f32.gmra.mxu0 %v5319
  %v5788 = vpop.f32.mrf.mxu0
  %v5789 = vadd.f32 %v5291, %v5788
  %v5790 = vpop.f32.mrf.mxu0
  %5791 = vmatprep.mubr.f32.mxu0 0.0
  %5792 = vmatmul.mubr.f32.gmra.mxu0 %v5322
  %v5793 = vpop.f32.mrf.mxu0
  %v5794 = vadd.f32 %v5291, %v5793
  %v5795 = vpop.f32.mrf.mxu0
  %5796 = vmatprep.mubr.f32.mxu0 0.0
  %5797 = vmatmul.mubr.f32.gmra.mxu0 %v5325
  %v5798 = vpop.f32.mrf.mxu0
  %v5799 = vadd.f32 %v5291, %v5798
  %v5800 = vpop.f32.mrf.mxu0
  %5801 = vmatprep.mubr.f32.mxu0 0.0
  %5802 = vmatmul.mubr.f32.gmra.mxu0 %v5328
  %v5803 = vpop.f32.mrf.mxu0
  %v5804 = vadd.f32 %v5291, %v5803
  %v5805 = vpop.f32.mrf.mxu0
  %5806 = vmatprep.mubr.f32.mxu0 0.0
  %5807 = vmatmul.mubr.f32.gmra.mxu0 %v5331
  %v5808 = vpop.f32.mrf.mxu0
  %v5809 = vadd.f32 %v5291, %v5808
  %v5810 = vpop.f32.mrf.mxu0
  %5811 = vmatprep.mubr.f32.mxu0 0.0
  %5812 = vmatmul.mubr.f32.gmra.mxu0 %v5334
  %v5813 = vpop.f32.mrf.mxu0
  %v5814 = vadd.f32 %v5291, %v5813
  %v5815 = vpop.f32.mrf.mxu0
  %5816 = vmatprep.mubr.f32.mxu0 0.0
  %5817 = vmatmul.mubr.f32.gmra.mxu0 %v5337
  %v5818 = vpop.f32.mrf.mxu0
  %v5819 = vadd.f32 %v5291, %v5818
  %v5820 = vpop.f32.mrf.mxu0
  %5821 = vmatprep.mubr.f32.mxu0 0.0
  %5822 = vmatmul.mubr.f32.gmra.mxu0 %v5340
  %v5823 = vpop.f32.mrf.mxu0
  %v5824 = vadd.f32 %v5291, %v5823
  %v5825 = vpop.f32.mrf.mxu0
  %5826 = vmatprep.mubr.f32.mxu0 0.0
  %5827 = vmatmul.mubr.f32.gmra.mxu0 %v5343
  %v5828 = vpop.f32.mrf.mxu0
  %v5829 = vadd.f32 %v5291, %v5828
  %v5830 = vpop.f32.mrf.mxu0
  %5831 = vmatprep.mubr.f32.mxu0 0.0
  %5832 = vmatmul.mubr.f32.gmra.mxu0 %v5346
  %v5833 = vpop.f32.mrf.mxu0
  %v5834 = vadd.f32 %v5291, %v5833
  %v5835 = vpop.f32.mrf.mxu0
  %5836 = vmatprep.mubr.f32.mxu0 0.0
  %5837 = vmatmul.mubr.f32.gmra.mxu0 %v5349
  %v5838 = vpop.f32.mrf.mxu0
  %v5839 = vadd.f32 %v5291, %v5838
  %v5840 = vpop.f32.mrf.mxu0
  %5841 = vmatprep.mubr.f32.mxu0 0.0
  %5842 = vmatmul.mubr.f32.gmra.mxu0 %v5352
  %v5843 = vpop.f32.mrf.mxu0
  %v5844 = vadd.f32 %v5291, %v5843
  %v5845 = vpop.f32.mrf.mxu0
  %5846 = vmatprep.mubr.f32.mxu0 0.0
  %5847 = vmatmul.mubr.f32.gmra.mxu0 %v5355
  %v5848 = vpop.f32.mrf.mxu0
  %v5849 = vadd.f32 %v5291, %v5848
  %v5850 = vpop.f32.mrf.mxu0
  %5851 = vmatprep.mubr.f32.mxu0 0.0
  %5852 = vmatmul.mubr.f32.gmra.mxu0 %v5358
  %v5853 = vpop.f32.mrf.mxu0
  %v5854 = vadd.f32 %v5291, %v5853
  %v5855 = vpop.f32.mrf.mxu0
  %5856 = vmatprep.mubr.f32.mxu0 0.0
  %5857 = vmatmul.mubr.f32.gmra.mxu0 %v5361
  %v5858 = vpop.f32.mrf.mxu0
  %v5859 = vadd.f32 %v5291, %v5858
  %v5860 = vpop.f32.mrf.mxu0
  %5861 = vmatprep.mubr.f32.mxu0 0.0
  %5862 = vmatmul.mubr.f32.gmra.mxu0 %v5364
  %v5863 = vpop.f32.mrf.mxu0
  %v5864 = vadd.f32 %v5291, %v5863
  %v5865 = vpop.f32.mrf.mxu0
  %5866 = vmatprep.mubr.f32.mxu0 0.0
  %5867 = vmatmul.mubr.f32.gmra.mxu0 %v5367
  %v5868 = vpop.f32.mrf.mxu0
  %v5869 = vadd.f32 %v5291, %v5868
  %v5870 = vpop.f32.mrf.mxu0
  %5871 = vmatprep.mubr.f32.mxu0 0.0
  %5872 = vmatmul.mubr.f32.gmra.mxu0 %v5370
  %v5873 = vpop.f32.mrf.mxu0
  %v5874 = vadd.f32 %v5291, %v5873
  %v5875 = vpop.f32.mrf.mxu0
  %5876 = vmatprep.mubr.f32.mxu0 0.0
  %5877 = vmatmul.mubr.f32.gmra.mxu0 %v5373
  %v5878 = vpop.f32.mrf.mxu0
  %v5879 = vadd.f32 %v5291, %v5878
  %v5880 = vpop.f32.mrf.mxu0
  %5881 = vmatprep.mubr.f32.mxu0 0.0
  %5882 = vmatmul.mubr.f32.gmra.mxu0 %v5376
  %v5883 = vpop.f32.mrf.mxu0
  %v5884 = vadd.f32 %v5291, %v5883
  %v5885 = vpop.f32.mrf.mxu0
  %5886 = vmatprep.mubr.f32.mxu0 0.0
  %5887 = vmatmul.mubr.f32.gmra.mxu0 %v5379
  %v5888 = vpop.f32.mrf.mxu0
  %v5889 = vadd.f32 %v5291, %v5888
  %v5890 = vpop.f32.mrf.mxu0
  %5891 = vmatprep.mubr.f32.mxu0 0.0
  %5892 = vmatmul.mubr.f32.gmra.mxu0 %v5382
  %v5893 = vpop.f32.mrf.mxu0
  %v5894 = vadd.f32 %v5291, %v5893
  %v5895 = vpop.f32.mrf.mxu0
  %5896 = vmatprep.mubr.f32.mxu0 0.0
  %5897 = vmatmul.mubr.f32.gmra.mxu0 %v5385
  %v5898 = vpop.f32.mrf.mxu0
  %v5899 = vadd.f32 %v5291, %v5898
  %v5900 = vpop.f32.mrf.mxu0
  %5901 = vmatprep.mubr.f32.mxu0 0.0
  %5902 = vmatmul.mubr.f32.gmra.mxu0 %v5388
  %v5903 = vpop.f32.mrf.mxu0
  %v5904 = vadd.f32 %v5291, %v5903
  %v5905 = vpop.f32.mrf.mxu0
  %5906 = vmatprep.mubr.f32.mxu0 0.0
  %5907 = vmatmul.mubr.f32.gmra.mxu0 %v5391
  %v5908 = vpop.f32.mrf.mxu0
  %v5909 = vadd.f32 %v5291, %v5908
  %v5910 = vpop.f32.mrf.mxu0
  %5911 = vmatprep.mubr.f32.mxu0 0.0
  %5912 = vmatmul.mubr.f32.gmra.mxu0 %v5394
  %v5913 = vpop.f32.mrf.mxu0
  %v5914 = vadd.f32 %v5291, %v5913
  %v5915 = vpop.f32.mrf.mxu0
  %5916 = vmatprep.mubr.f32.mxu0 0.0
  %5917 = vmatmul.mubr.f32.gmra.mxu0 %v5397
  %v5918 = vpop.f32.mrf.mxu0
  %v5919 = vadd.f32 %v5291, %v5918
  %v5920 = vpop.f32.mrf.mxu0
  %5921 = vmatprep.mubr.f32.mxu0 0.0
  %5922 = vmatmul.mubr.f32.gmra.mxu0 %v5400
  %v5923 = vpop.f32.mrf.mxu0
  %v5924 = vadd.f32 %v5291, %v5923
  %v5925 = vpop.f32.mrf.mxu0
  %5926 = vmatprep.mubr.f32.mxu0 0.0
  %5927 = vmatmul.mubr.f32.gmra.mxu0 %v5403
  %v5928 = vpop.f32.mrf.mxu0
  %v5929 = vadd.f32 %v5291, %v5928
  %v5930 = vpop.f32.mrf.mxu0
  %5931 = vmatprep.mubr.f32.mxu0 0.0
  %5932 = vmatmul.mubr.f32.gmra.mxu0 %v5406
  %v5933 = vpop.f32.mrf.mxu0
  %v5934 = vadd.f32 %v5291, %v5933
  %v5935 = vpop.f32.mrf.mxu0
  %5936 = vmatprep.mubr.f32.mxu0 0.0
  %5937 = vmatmul.mubr.f32.gmra.mxu0 %v5409
  %v5938 = vpop.f32.mrf.mxu0
  %v5939 = vadd.f32 %v5291, %v5938
  %v5940 = vpop.f32.mrf.mxu0
  %5941 = vmatprep.mubr.f32.mxu0 0.0
  %5942 = vmatmul.mubr.f32.gmra.mxu0 %v5412
  %v5943 = vpop.f32.mrf.mxu0
  %v5944 = vadd.f32 %v5291, %v5943
  %v5945 = vpop.f32.mrf.mxu0
  %5946 = vmatprep.mubr.f32.mxu0 0.0
  %5947 = vmatmul.mubr.f32.gmra.mxu0 %v5415
  %v5948 = vpop.f32.mrf.mxu0
  %v5949 = vadd.f32 %v5291, %v5948
  %v5950 = vpop.f32.mrf.mxu0
  %5951 = vmatprep.mubr.f32.mxu0 0.0
  %5952 = vmatmul.mubr.f32.gmra.mxu0 %v5418
  %v5953 = vpop.f32.mrf.mxu0
  %v5954 = vadd.f32 %v5291, %v5953
  %v5955 = vpop.f32.mrf.mxu0
  %5956 = vmatprep.mubr.f32.mxu0 0.0
  %5957 = vmatmul.mubr.f32.gmra.mxu0 %v5421
  %v5958 = vpop.f32.mrf.mxu0
  %v5959 = vadd.f32 %v5291, %v5958
  %v5960 = vpop.f32.mrf.mxu0
  %5961 = vmatprep.mubr.f32.mxu0 0.0
  %5962 = vmatmul.mubr.f32.gmra.mxu0 %v5424
  %v5963 = vpop.f32.mrf.mxu0
  %v5964 = vadd.f32 %v5291, %v5963
  %v5965 = vpop.f32.mrf.mxu0
  %5966 = vmatprep.mubr.f32.mxu0 0.0
  %5967 = vmatmul.mubr.f32.gmra.mxu0 %v5427
  %v5968 = vpop.f32.mrf.mxu0
  %v5969 = vadd.f32 %v5291, %v5968
  %v5970 = vpop.f32.mrf.mxu0
  %5971 = vmatprep.mubr.f32.mxu0 0.0
  %5972 = vmatmul.mubr.f32.gmra.mxu0 %v5430
  %v5973 = vpop.f32.mrf.mxu0
  %v5974 = vadd.f32 %v5291, %v5973
  %v5975 = vpop.f32.mrf.mxu0
  %5976 = vmatprep.mubr.f32.mxu0 0.0
  %5977 = vmatmul.mubr.f32.gmra.mxu0 %v5433
  %v5978 = vpop.f32.mrf.mxu0
  %v5979 = vadd.f32 %v5291, %v5978
  %v5980 = vpop.f32.mrf.mxu0
  %5981 = vmatprep.mubr.f32.mxu0 0.0
  %5982 = vmatmul.mubr.f32.gmra.mxu0 %v5436
  %v5983 = vpop.f32.mrf.mxu0
  %v5984 = vadd.f32 %v5291, %v5983
  %v5985 = vpop.f32.mrf.mxu0
  %5986 = vmatprep.mubr.f32.mxu0 0.0
  %5987 = vmatmul.mubr.f32.gmra.mxu0 %v5439
  %v5988 = vpop.f32.mrf.mxu0
  %v5989 = vadd.f32 %v5291, %v5988
  %v5990 = vpop.f32.mrf.mxu0
  %5991 = vmatprep.mubr.f32.mxu0 0.0
  %5992 = vmatmul.mubr.f32.gmra.mxu0 %v5442
  %v5993 = vpop.f32.mrf.mxu0
  %v5994 = vadd.f32 %v5291, %v5993
  %v5995 = vpop.f32.mrf.mxu0
  %5996 = vmatprep.mubr.f32.mxu0 0.0
  %5997 = vmatmul.mubr.f32.gmra.mxu0 %v5445
  %v5998 = vpop.f32.mrf.mxu0
  %v5999 = vadd.f32 %v5291, %v5998
  %v6000 = vpop.f32.mrf.mxu0
  %6001 = vmatprep.mubr.f32.mxu0 0.0
  %6002 = vmatmul.mubr.f32.gmra.mxu0 %v5448
  %v6003 = vpop.f32.mrf.mxu0
  %v6004 = vadd.f32 %v5291, %v6003
  %v6005 = vpop.f32.mrf.mxu0
  %6006 = vmatprep.mubr.f32.mxu0 0.0
  %6007 = vmatmul.mubr.f32.gmra.mxu0 %v5451
  %v6008 = vpop.f32.mrf.mxu0
  %v6009 = vadd.f32 %v5291, %v6008
  %v6010 = vpop.f32.mrf.mxu0
  %6011 = vmatprep.mubr.f32.mxu0 0.0
  %6012 = vmatmul.mubr.f32.gmra.mxu0 %v5454
  %v6013 = vpop.f32.mrf.mxu0
  %v6014 = vadd.f32 %v5291, %v6013
  %v6015 = vpop.f32.mrf.mxu0
  %6016 = vmatprep.mubr.f32.mxu0 0.0
  %6017 = vmatmul.mubr.f32.gmra.mxu0 %v5457
  %v6018 = vpop.f32.mrf.mxu0
  %v6019 = vadd.f32 %v5291, %v6018
  %v6020 = vpop.f32.mrf.mxu0
  %6021 = vmatprep.mubr.f32.mxu0 0.0
  %6022 = vmatmul.mubr.f32.gmra.mxu0 %v5460
  %v6023 = vpop.f32.mrf.mxu0
  %v6024 = vadd.f32 %v5291, %v6023
  %v6025 = vpop.f32.mrf.mxu0
  %6026 = vmatprep.mubr.f32.mxu0 0.0
  %6027 = vmatmul.mubr.f32.gmra.mxu0 %v5463
  %v6028 = vpop.f32.mrf.mxu0
  %v6029 = vadd.f32 %v5291, %v6028
  %v6030 = vpop.f32.mrf.mxu0
  %6031 = vmatprep.mubr.f32.mxu0 0.0
  %6032 = vmatmul.mubr.f32.gmra.mxu0 %v5466
  %v6033 = vpop.f32.mrf.mxu0
  %v6034 = vadd.f32 %v5291, %v6033
  %v6035 = vpop.f32.mrf.mxu0
  %6036 = vmatprep.mubr.f32.mxu0 0.0
  %6037 = vmatmul.mubr.f32.gmra.mxu0 %v5469
  %v6038 = vpop.f32.mrf.mxu0
  %v6039 = vadd.f32 %v5291, %v6038
  %v6040 = vpop.f32.mrf.mxu0
  %6041 = vmatprep.mubr.f32.mxu0 0.0
  %6042 = vmatmul.mubr.f32.gmra.mxu0 %v5472
  %v6043 = vpop.f32.mrf.mxu0
  %v6044 = vadd.f32 %v5291, %v6043
  %v6045 = vpop.f32.mrf.mxu0
  %6046 = vmatprep.mubr.f32.mxu0 0.0
  %6047 = vmatmul.mubr.f32.gmra.mxu0 %v5475
  %v6048 = vpop.f32.mrf.mxu0
  %v6049 = vadd.f32 %v5291, %v6048
  %v6050 = vpop.f32.mrf.mxu0
  %6051 = vmatprep.mubr.f32.mxu0 0.0
  %6052 = vmatmul.mubr.f32.gmra.mxu0 %v5478
  %v6053 = vpop.f32.mrf.mxu0
  %v6054 = vadd.f32 %v5291, %v6053
  %v6055 = vpop.f32.mrf.mxu0
  %6056 = vmatprep.mubr.f32.mxu0 0.0
  %6057 = vmatmul.mubr.f32.gmra.mxu0 %v5481
  %v6058 = vpop.f32.mrf.mxu0
  %v6059 = vadd.f32 %v5291, %v6058
  %v6060 = vpop.f32.mrf.mxu0
  %6061 = vmatprep.mubr.f32.mxu0 0.0
  %6062 = vmatmul.mubr.f32.gmra.mxu0 %v5484
  %v6063 = vpop.f32.mrf.mxu0
  %v6064 = vadd.f32 %v5291, %v6063
  %v6065 = vpop.f32.mrf.mxu0
  %6066 = vmatprep.mubr.f32.mxu0 0.0
  %6067 = vmatmul.mubr.f32.gmra.mxu0 %v5487
  %v6068 = vpop.f32.mrf.mxu0
  %v6069 = vadd.f32 %v5291, %v6068
  %v6070 = vpop.f32.mrf.mxu0
  %6071 = vmatprep.mubr.f32.mxu0 0.0
  %6072 = vmatmul.mubr.f32.gmra.mxu0 %v5490
  %v6073 = vpop.f32.mrf.mxu0
  %v6074 = vadd.f32 %v5291, %v6073
  %v6075 = vpop.f32.mrf.mxu0
  %6076 = vmatprep.mubr.f32.mxu0 0.0
  %6077 = vmatmul.mubr.f32.gmra.mxu0 %v5493
  %v6078 = vpop.f32.mrf.mxu0
  %v6079 = vadd.f32 %v5291, %v6078
  %v6080 = vpop.f32.mrf.mxu0
  %6081 = vmatprep.mubr.f32.mxu0 0.0
  %6082 = vmatmul.mubr.f32.gmra.mxu0 %v5496
  %v6083 = vpop.f32.mrf.mxu0
  %v6084 = vadd.f32 %v5291, %v6083
  %v6085 = vpop.f32.mrf.mxu0
  %6086 = vmatprep.mubr.f32.mxu0 0.0
  %6087 = vmatmul.mubr.f32.gmra.mxu0 %v5499
  %v6088 = vpop.f32.mrf.mxu0
  %v6089 = vadd.f32 %v5291, %v6088
  %v6090 = vpop.f32.mrf.mxu0
  %6091 = vmatprep.mubr.f32.mxu0 0.0
  %6092 = vmatmul.mubr.f32.gmra.mxu0 %v5502
  %v6093 = vpop.f32.mrf.mxu0
  %v6094 = vadd.f32 %v5291, %v6093
  %v6095 = vpop.f32.mrf.mxu0
  %6096 = vmatprep.mubr.f32.mxu0 0.0
  %6097 = vmatmul.mubr.f32.gmra.mxu0 %v5505
  %v6098 = vpop.f32.mrf.mxu0
  %v6099 = vadd.f32 %v5291, %v6098
  %v6100 = vpop.f32.mrf.mxu0
  %6101 = vmatprep.mubr.f32.mxu0 0.0
  %6102 = vmatmul.mubr.f32.gmra.mxu0 %v5508
  %v6103 = vpop.f32.mrf.mxu0
  %v6104 = vadd.f32 %v5291, %v6103
  %v6105 = vpop.f32.mrf.mxu0
  %6106 = vmatprep.mubr.f32.mxu0 0.0
  %6107 = vmatmul.mubr.f32.gmra.mxu0 %v5511
  %v6108 = vpop.f32.mrf.mxu0
  %v6109 = vadd.f32 %v5291, %v6108
  %v6110 = vpop.f32.mrf.mxu0
  %6111 = vmatprep.mubr.f32.mxu0 0.0
  %6112 = vmatmul.mubr.f32.gmra.mxu0 %v5514
  %v6113 = vpop.f32.mrf.mxu0
  %v6114 = vadd.f32 %v5291, %v6113
  %v6115 = vpop.f32.mrf.mxu0
  %6116 = vmatprep.mubr.f32.mxu0 0.0
  %6117 = vmatmul.mubr.f32.gmra.mxu0 %v5517
  %v6118 = vpop.f32.mrf.mxu0
  %v6119 = vadd.f32 %v5291, %v6118
  %v6120 = vpop.f32.mrf.mxu0
  %6121 = vmatprep.mubr.f32.mxu0 0.0
  %6122 = vmatmul.mubr.f32.gmra.mxu0 %v5520
  %v6123 = vpop.f32.mrf.mxu0
  %v6124 = vadd.f32 %v5291, %v6123
  %v6125 = vpop.f32.mrf.mxu0
  %6126 = vmatprep.mubr.f32.mxu0 0.0
  %6127 = vmatmul.mubr.f32.gmra.mxu0 %v5523
  %v6128 = vpop.f32.mrf.mxu0
  %v6129 = vadd.f32 %v5291, %v6128
  %v6130 = vpop.f32.mrf.mxu0
  %6131 = vmatprep.mubr.f32.mxu0 0.0
  %6132 = vmatmul.mubr.f32.gmra.mxu0 %v5526
  %v6133 = vpop.f32.mrf.mxu0
  %v6134 = vadd.f32 %v5291, %v6133
  %v6135 = vpop.f32.mrf.mxu0
  %6136 = vmatprep.mubr.f32.mxu0 0.0
  %6137 = vmatmul.mubr.f32.gmra.mxu0 %v5529
  %v6138 = vpop.f32.mrf.mxu0
  %v6139 = vadd.f32 %v5291, %v6138
  %v6140 = vpop.f32.mrf.mxu0
  %6141 = vmatprep.mubr.f32.mxu0 0.0
  %6142 = vmatmul.mubr.f32.gmra.mxu0 %v5532
  %v6143 = vpop.f32.mrf.mxu0
  %v6144 = vadd.f32 %v5291, %v6143
  %v6145 = vpop.f32.mrf.mxu0
  %6146 = vmatprep.mubr.f32.mxu0 0.0
  %6147 = vmatmul.mubr.f32.gmra.mxu0 %v5535
  %v6148 = vpop.f32.mrf.mxu0
  %v6149 = vadd.f32 %v5291, %v6148
  %v6150 = vpop.f32.mrf.mxu0
  %6151 = vmatprep.mubr.f32.mxu0 0.0
  %6152 = vmatmul.mubr.f32.gmra.mxu0 %v5538
  %v6153 = vpop.f32.mrf.mxu0
  %v6154 = vadd.f32 %v5291, %v6153
  %v6155 = vpop.f32.mrf.mxu0
  %6156 = vmatprep.mubr.f32.mxu0 0.0
  %6157 = vmatmul.mubr.f32.gmra.mxu0 %v5541
  %v6158 = vpop.f32.mrf.mxu0
  %v6159 = vadd.f32 %v5291, %v6158
  %v6160 = vpop.f32.mrf.mxu0
  %6161 = vmatprep.mubr.f32.mxu0 0.0
  %6162 = vmatmul.mubr.f32.gmra.mxu0 %v5544
  %v6163 = vpop.f32.mrf.mxu0
  %v6164 = vadd.f32 %v5291, %v6163
  %v6165 = vpop.f32.mrf.mxu0
  %6166 = vmatprep.mubr.f32.mxu0 0.0
  %6167 = vmatmul.mubr.f32.gmra.mxu0 %v5547
  %v6168 = vpop.f32.mrf.mxu0
  %v6169 = vadd.f32 %v5291, %v6168
  %v6170 = vpop.f32.mrf.mxu0
  %6171 = vmatprep.mubr.f32.mxu0 0.0
  %6172 = vmatmul.mubr.f32.gmra.mxu0 %v5550
  %v6173 = vpop.f32.mrf.mxu0
  %v6174 = vadd.f32 %v5291, %v6173
  %v6175 = vpop.f32.mrf.mxu0
  %6176 = vmatprep.mubr.f32.mxu0 0.0
  %6177 = vmatmul.mubr.f32.gmra.mxu0 %v5553
  %v6178 = vpop.f32.mrf.mxu0
  %v6179 = vadd.f32 %v5291, %v6178
  %v6180 = vpop.f32.mrf.mxu0
  %6181 = vmatprep.mubr.f32.mxu0 0.0
  %6182 = vmatmul.mubr.f32.gmra.mxu0 %v5556
  %v6183 = vpop.f32.mrf.mxu0
  %v6184 = vadd.f32 %v5291, %v6183
  %v6185 = vpop.f32.mrf.mxu0
  %6186 = vmatprep.mubr.f32.mxu0 0.0
  %6187 = vmatmul.mubr.f32.gmra.mxu0 %v5559
  %v6188 = vpop.f32.mrf.mxu0
  %v6189 = vadd.f32 %v5291, %v6188
  %v6190 = vpop.f32.mrf.mxu0
  %6191 = vmatprep.mubr.f32.mxu0 0.0
  %6192 = vmatmul.mubr.f32.gmra.mxu0 %v5562
  %v6193 = vpop.f32.mrf.mxu0
  %v6194 = vadd.f32 %v5291, %v6193
  %v6195 = vpop.f32.mrf.mxu0
  %6196 = vmatprep.mubr.f32.mxu0 0.0
  %6197 = vmatmul.mubr.f32.gmra.mxu0 %v5565
  %v6198 = vpop.f32.mrf.mxu0
  %v6199 = vadd.f32 %v5291, %v6198
  %v6200 = vpop.f32.mrf.mxu0
  %6201 = vmatprep.mubr.f32.mxu0 0.0
  %6202 = vmatmul.mubr.f32.gmra.mxu0 %v5568
  %v6203 = vpop.f32.mrf.mxu0
  %v6204 = vadd.f32 %v5291, %v6203
  %v6205 = vpop.f32.mrf.mxu0
  %6206 = vmatprep.mubr.f32.mxu0 0.0
  %6207 = vmatmul.mubr.f32.gmra.mxu0 %v5571
  %v6208 = vpop.f32.mrf.mxu0
  %v6209 = vadd.f32 %v5291, %v6208
  %v6210 = vpop.f32.mrf.mxu0
  %6211 = vmatprep.mubr.f32.mxu0 0.0
  %6212 = vmatmul.mubr.f32.gmra.mxu0 %v5574
  %v6213 = vpop.f32.mrf.mxu0
  %v6214 = vadd.f32 %v5291, %v6213
  %v6215 = vpop.f32.mrf.mxu0
  %6216 = vmatprep.mubr.f32.mxu0 0.0
  %6217 = vmatmul.mubr.f32.gmra.mxu0 %v5577
  %v6218 = vpop.f32.mrf.mxu0
  %v6219 = vadd.f32 %v5291, %v6218
  %v6220 = vpop.f32.mrf.mxu0
  %6221 = vmatprep.mubr.f32.mxu0 0.0
  %6222 = vmatmul.mubr.f32.gmra.mxu0 %v5580
  %v6223 = vpop.f32.mrf.mxu0
  %v6224 = vadd.f32 %v5291, %v6223
  %v6225 = vpop.f32.mrf.mxu0
  %6226 = vmatprep.mubr.f32.mxu0 0.0
  %6227 = vmatmul.mubr.f32.gmra.mxu0 %v5583
  %v6228 = vpop.f32.mrf.mxu0
  %v6229 = vadd.f32 %v5291, %v6228
  %v6230 = vpop.f32.mrf.mxu0
  %6231 = vmatprep.mubr.f32.mxu0 0.0
  %6232 = vmatmul.mubr.f32.gmra.mxu0 %v5586
  %v6233 = vpop.f32.mrf.mxu0
  %v6234 = vadd.f32 %v5291, %v6233
  %v6235 = vpop.f32.mrf.mxu0
  %6236 = vmatprep.mubr.f32.mxu0 0.0
  %6237 = vmatmul.mubr.f32.gmra.mxu0 %v5589
  %v6238 = vpop.f32.mrf.mxu0
  %v6239 = vadd.f32 %v5291, %v6238
  %v6240 = vpop.f32.mrf.mxu0
  %6241 = vmatprep.mubr.f32.mxu0 0.0
  %6242 = vmatmul.mubr.f32.gmra.mxu0 %v5592
  %v6243 = vpop.f32.mrf.mxu0
  %v6244 = vadd.f32 %v5291, %v6243
  %v6245 = vpop.f32.mrf.mxu0
  %6246 = vmatprep.mubr.f32.mxu0 0.0
  %6247 = vmatmul.mubr.f32.gmra.mxu0 %v5595
  %v6248 = vpop.f32.mrf.mxu0
  %v6249 = vadd.f32 %v5291, %v6248
  %v6250 = vpop.f32.mrf.mxu0
  %6251 = vmatprep.mubr.f32.mxu0 0.0
  %6252 = vmatmul.mubr.f32.gmra.mxu0 %v5598
  %v6253 = vpop.f32.mrf.mxu0
  %v6254 = vadd.f32 %v5291, %v6253
  %v6255 = vpop.f32.mrf.mxu0
  %6256 = vmatprep.mubr.f32.mxu0 0.0
  %6257 = vmatmul.mubr.f32.gmra.mxu0 %v5601
  %v6258 = vpop.f32.mrf.mxu0
  %v6259 = vadd.f32 %v5291, %v6258
  %v6260 = vpop.f32.mrf.mxu0
  %6261 = vmatprep.mubr.f32.mxu0 0.0
  %6262 = vmatmul.mubr.f32.gmra.mxu0 %v5604
  %v6263 = vpop.f32.mrf.mxu0
  %v6264 = vadd.f32 %v5291, %v6263
  %v6265 = vpop.f32.mrf.mxu0
  %6266 = vmatprep.mubr.f32.mxu0 0.0
  %6267 = vmatmul.mubr.f32.gmra.mxu0 %v5607
  %v6268 = vpop.f32.mrf.mxu0
  %v6269 = vadd.f32 %v5291, %v6268
  %v6270 = vpop.f32.mrf.mxu0
  %6271 = vmatprep.mubr.f32.mxu0 0.0
  %6272 = vmatmul.mubr.f32.gmra.mxu0 %v5610
  %v6273 = vpop.f32.mrf.mxu0
  %v6274 = vadd.f32 %v5291, %v6273
  %v6275 = vpop.f32.mrf.mxu0
  %6276 = vmatprep.mubr.f32.mxu0 0.0
  %6277 = vmatmul.mubr.f32.gmra.mxu0 %v5613
  %v6278 = vpop.f32.mrf.mxu0
  %v6279 = vadd.f32 %v5291, %v6278
  %v6280 = vpop.f32.mrf.mxu0
  %6281 = vmatprep.mubr.f32.mxu0 0.0
  %6282 = vmatmul.mubr.f32.gmra.mxu0 %v5616
  %v6283 = vpop.f32.mrf.mxu0
  %v6284 = vadd.f32 %v5291, %v6283
  %v6285 = vpop.f32.mrf.mxu0
  %6286 = vmatprep.mubr.f32.mxu0 0.0
  %6287 = vmatmul.mubr.f32.gmra.mxu0 %v5619
  %v6288 = vpop.f32.mrf.mxu0
  %v6289 = vadd.f32 %v5291, %v6288
  %v6290 = vpop.f32.mrf.mxu0
  %6291 = vmatprep.mubr.f32.mxu0 0.0
  %6292 = vmatmul.mubr.f32.gmra.mxu0 %v5622
  %v6293 = vpop.f32.mrf.mxu0
  %v6294 = vadd.f32 %v5291, %v6293
  %v6295 = vpop.f32.mrf.mxu0
  %6296 = vmatprep.mubr.f32.mxu0 0.0
  %6297 = vmatmul.mubr.f32.gmra.mxu0 %v5625
  %v6298 = vpop.f32.mrf.mxu0
  %v6299 = vadd.f32 %v5291, %v6298
  %v6300 = vpop.f32.mrf.mxu0
  %6301 = vmatprep.mubr.f32.mxu0 0.0
  %6302 = vmatmul.mubr.f32.gmra.mxu0 %v5628
  %v6303 = vpop.f32.mrf.mxu0
  %v6304 = vadd.f32 %v5291, %v6303
  %v6305 = vpop.f32.mrf.mxu0
  %6306 = vmatprep.mubr.f32.mxu0 0.0
  %6307 = vmatmul.mubr.f32.gmra.mxu0 %v5631
  %v6308 = vpop.f32.mrf.mxu0
  %v6309 = vadd.f32 %v5291, %v6308
  %v6310 = vpop.f32.mrf.mxu0
  %6311 = vmatprep.mubr.f32.mxu0 0.0
  %6312 = vmatmul.mubr.f32.gmra.mxu0 %v5634
  %v6313 = vpop.f32.mrf.mxu0
  %v6314 = vadd.f32 %v5291, %v6313
  %v6315 = vpop.f32.mrf.mxu0
  %6316 = vmatprep.mubr.f32.mxu0 0.0
  %6317 = vmatmul.mubr.f32.gmra.mxu0 %v5637
  %v6318 = vpop.f32.mrf.mxu0
  %v6319 = vadd.f32 %v5291, %v6318
  %v6320 = vpop.f32.mrf.mxu0
  %6321 = vmatprep.mubr.f32.mxu0 0.0
  %6322 = vmatmul.mubr.f32.gmra.mxu0 %v5640
  %v6323 = vpop.f32.mrf.mxu0
  %v6324 = vadd.f32 %v5291, %v6323
  %v6325 = vpop.f32.mrf.mxu0
  %6326 = vmatprep.mubr.f32.mxu0 0.0
  %6327 = vmatmul.mubr.f32.gmra.mxu0 %v5643
  %v6328 = vpop.f32.mrf.mxu0
  %v6329 = vadd.f32 %v5291, %v6328
  %v6330 = vpop.f32.mrf.mxu0
  %6331 = vmatprep.mubr.f32.mxu0 0.0
  %6332 = vmatmul.mubr.f32.gmra.mxu0 %v5646
  %v6333 = vpop.f32.mrf.mxu0
  %v6334 = vadd.f32 %v5291, %v6333
  %v6335 = vpop.f32.mrf.mxu0
  %6336 = vmatprep.mubr.f32.mxu0 0.0
  %6337 = vmatmul.mubr.f32.gmra.mxu0 %v5649
  %v6338 = vpop.f32.mrf.mxu0
  %v6339 = vadd.f32 %v5291, %v6338
  %v6340 = vpop.f32.mrf.mxu0
  %6341 = vmatprep.mubr.f32.mxu0 0.0
  %6342 = vmatmul.mubr.f32.gmra.mxu0 %v5652
  %v6343 = vpop.f32.mrf.mxu0
  %v6344 = vadd.f32 %v5291, %v6343
  %v6345 = vpop.f32.mrf.mxu0
  %6346 = vmatprep.mubr.f32.mxu0 0.0
  %6347 = vmatmul.mubr.f32.gmra.mxu0 %v5655
  %v6348 = vpop.f32.mrf.mxu0
  %v6349 = vadd.f32 %v5291, %v6348
  %v6350 = vpop.f32.mrf.mxu0
  %6351 = vmatprep.mubr.f32.mxu0 0.0
  %6352 = vmatmul.mubr.f32.gmra.mxu0 %v5658
  %v6353 = vpop.f32.mrf.mxu0
  %v6354 = vadd.f32 %v5291, %v6353
  %v6355 = vpop.f32.mrf.mxu0
  %6356 = vmatprep.mubr.f32.mxu0 0.0
  %6357 = vmatmul.mubr.f32.gmra.mxu0 %v5661
  %v6358 = vpop.f32.mrf.mxu0
  %v6359 = vadd.f32 %v5291, %v6358
  %v6360 = vpop.f32.mrf.mxu0
  %6361 = vmatprep.mubr.f32.mxu0 0.0
  %6362 = vmatmul.mubr.f32.gmra.mxu0 %v5664
  %v6363 = vpop.f32.mrf.mxu0
  %v6364 = vadd.f32 %v5291, %v6363
  %v6365 = vpop.f32.mrf.mxu0
  %6366 = vmatprep.mubr.f32.mxu0 0.0
  %6367 = vmatmul.mubr.f32.gmra.mxu0 %v5667
  %v6368 = vpop.f32.mrf.mxu0
  %v6369 = vadd.f32 %v5291, %v6368
  %v6370 = vpop.f32.mrf.mxu0
  %6371 = vmatprep.mubr.f32.mxu0 0.0
  %6372 = vmatmul.mubr.f32.gmra.mxu0 %v5670
  %v6373 = vpop.f32.mrf.mxu0
  %v6374 = vadd.f32 %v5291, %v6373
  %v6375 = vpop.f32.mrf.mxu0
  %6376 = vmatprep.mubr.f32.mxu0 0.0
  %6377 = vmatmul.mubr.f32.gmra.mxu0 %v5673
  %v6378 = vpop.f32.mrf.mxu0
  %v6379 = vadd.f32 %v5291, %v6378
  %v6380 = vpop.f32.mrf.mxu0
  %6381 = vmatprep.mubr.f32.mxu0 0.0
  %6382 = vmatmul.mubr.f32.gmra.mxu0 %v5676
  %v6383 = vpop.f32.mrf.mxu0
  %v6384 = vadd.f32 %v5291, %v6383
  %v6385 = vpop.f32.mrf.mxu0
  %6386 = vdwg.mxu0
  %v6387 = vmax.f32 %v5749, 0.0
  %v6388 = vmax.f32 %v5754, 0.0
  %v6389 = vmax.f32 %v5759, 0.0
  %v6390 = vmax.f32 %v5764, 0.0
  %v6391 = vmax.f32 %v5769, 0.0
  %v6392 = vmax.f32 %v5774, 0.0
  %v6393 = vmax.f32 %v5779, 0.0
  %v6394 = vmax.f32 %v5784, 0.0
  %v6395 = vmax.f32 %v5789, 0.0
  %v6396 = vmax.f32 %v5794, 0.0
  %v6397 = vmax.f32 %v5799, 0.0
  %v6398 = vmax.f32 %v5804, 0.0
  %v6399 = vmax.f32 %v5809, 0.0
  %v6400 = vmax.f32 %v5814, 0.0
  %v6401 = vmax.f32 %v5819, 0.0
  %v6402 = vmax.f32 %v5824, 0.0
  %v6403 = vmax.f32 %v5829, 0.0
  %v6404 = vmax.f32 %v5834, 0.0
  %v6405 = vmax.f32 %v5839, 0.0
  %v6406 = vmax.f32 %v5844, 0.0
  %v6407 = vmax.f32 %v5849, 0.0
  %v6408 = vmax.f32 %v5854, 0.0
  %v6409 = vmax.f32 %v5859, 0.0
  %v6410 = vmax.f32 %v5864, 0.0
  %v6411 = vmax.f32 %v5869, 0.0
  %v6412 = vmax.f32 %v5874, 0.0
  %v6413 = vmax.f32 %v5879, 0.0
  %v6414 = vmax.f32 %v5884, 0.0
  %v6415 = vmax.f32 %v5889, 0.0
  %v6416 = vmax.f32 %v5894, 0.0
  %v6417 = vmax.f32 %v5899, 0.0
  %v6418 = vmax.f32 %v5904, 0.0
  %v6419 = vmax.f32 %v5909, 0.0
  %v6420 = vmax.f32 %v5914, 0.0
  %v6421 = vmax.f32 %v5919, 0.0
  %v6422 = vmax.f32 %v5924, 0.0
  %v6423 = vmax.f32 %v5929, 0.0
  %v6424 = vmax.f32 %v5934, 0.0
  %v6425 = vmax.f32 %v5939, 0.0
  %v6426 = vmax.f32 %v5944, 0.0
  %v6427 = vmax.f32 %v5949, 0.0
  %v6428 = vmax.f32 %v5954, 0.0
  %v6429 = vmax.f32 %v5959, 0.0
  %v6430 = vmax.f32 %v5964, 0.0
  %v6431 = vmax.f32 %v5969, 0.0
  %v6432 = vmax.f32 %v5974, 0.0
  %v6433 = vmax.f32 %v5979, 0.0
  %v6434 = vmax.f32 %v5984, 0.0
  %v6435 = vmax.f32 %v5989, 0.0
  %v6436 = vmax.f32 %v5994, 0.0
  %v6437 = vmax.f32 %v5999, 0.0
  %v6438 = vmax.f32 %v6004, 0.0
  %v6439 = vmax.f32 %v6009, 0.0
  %v6440 = vmax.f32 %v6014, 0.0
  %v6441 = vmax.f32 %v6019, 0.0
  %v6442 = vmax.f32 %v6024, 0.0
  %v6443 = vmax.f32 %v6029, 0.0
  %v6444 = vmax.f32 %v6034, 0.0
  %v6445 = vmax.f32 %v6039, 0.0
  %v6446 = vmax.f32 %v6044, 0.0
  %v6447 = vmax.f32 %v6049, 0.0
  %v6448 = vmax.f32 %v6054, 0.0
  %v6449 = vmax.f32 %v6059, 0.0
  %v6450 = vmax.f32 %v6064, 0.0
  %v6451 = vmax.f32 %v6069, 0.0
  %v6452 = vmax.f32 %v6074, 0.0
  %v6453 = vmax.f32 %v6079, 0.0
  %v6454 = vmax.f32 %v6084, 0.0
  %v6455 = vmax.f32 %v6089, 0.0
  %v6456 = vmax.f32 %v6094, 0.0
  %v6457 = vmax.f32 %v6099, 0.0
  %v6458 = vmax.f32 %v6104, 0.0
  %v6459 = vmax.f32 %v6109, 0.0
  %v6460 = vmax.f32 %v6114, 0.0
  %v6461 = vmax.f32 %v6119, 0.0
  %v6462 = vmax.f32 %v6124, 0.0
  %v6463 = vmax.f32 %v6129, 0.0
  %v6464 = vmax.f32 %v6134, 0.0
  %v6465 = vmax.f32 %v6139, 0.0
  %v6466 = vmax.f32 %v6144, 0.0
  %v6467 = vmax.f32 %v6149, 0.0
  %v6468 = vmax.f32 %v6154, 0.0
  %v6469 = vmax.f32 %v6159, 0.0
  %v6470 = vmax.f32 %v6164, 0.0
  %v6471 = vmax.f32 %v6169, 0.0
  %v6472 = vmax.f32 %v6174, 0.0
  %v6473 = vmax.f32 %v6179, 0.0
  %v6474 = vmax.f32 %v6184, 0.0
  %v6475 = vmax.f32 %v6189, 0.0
  %v6476 = vmax.f32 %v6194, 0.0
  %v6477 = vmax.f32 %v6199, 0.0
  %v6478 = vmax.f32 %v6204, 0.0
  %v6479 = vmax.f32 %v6209, 0.0
  %v6480 = vmax.f32 %v6214, 0.0
  %v6481 = vmax.f32 %v6219, 0.0
  %v6482 = vmax.f32 %v6224, 0.0
  %v6483 = vmax.f32 %v6229, 0.0
  %v6484 = vmax.f32 %v6234, 0.0
  %v6485 = vmax.f32 %v6239, 0.0
  %v6486 = vmax.f32 %v6244, 0.0
  %v6487 = vmax.f32 %v6249, 0.0
  %v6488 = vmax.f32 %v6254, 0.0
  %v6489 = vmax.f32 %v6259, 0.0
  %v6490 = vmax.f32 %v6264, 0.0
  %v6491 = vmax.f32 %v6269, 0.0
  %v6492 = vmax.f32 %v6274, 0.0
  %v6493 = vmax.f32 %v6279, 0.0
  %v6494 = vmax.f32 %v6284, 0.0
  %v6495 = vmax.f32 %v6289, 0.0
  %v6496 = vmax.f32 %v6294, 0.0
  %v6497 = vmax.f32 %v6299, 0.0
  %v6498 = vmax.f32 %v6304, 0.0
  %v6499 = vmax.f32 %v6309, 0.0
  %v6500 = vmax.f32 %v6314, 0.0
  %v6501 = vmax.f32 %v6319, 0.0
  %v6502 = vmax.f32 %v6324, 0.0
  %v6503 = vmax.f32 %v6329, 0.0
  %v6504 = vmax.f32 %v6334, 0.0
  %v6505 = vmax.f32 %v6339, 0.0
  %v6506 = vmax.f32 %v6344, 0.0
  %v6507 = vmax.f32 %v6349, 0.0
  %v6508 = vmax.f32 %v6354, 0.0
  %v6509 = vmax.f32 %v6359, 0.0
  %v6510 = vmax.f32 %v6364, 0.0
  %v6511 = vmax.f32 %v6369, 0.0
  %v6512 = vmax.f32 %v6374, 0.0
  %v6513 = vmax.f32 %v6379, 0.0
  %v6514 = vmax.f32 %v6384, 0.0
  %v6515 = vsel %vm4378, %v6387, 0.0
  %v6516 = vsel %vm4378, %v6388, 0.0
  %v6517 = vadd.f32 %v6515, %v6516
  %v6518 = vsel %vm4378, %v6389, 0.0
  %v6519 = vadd.f32 %v6517, %v6518
  %v6520 = vsel %vm4378, %v6390, 0.0
  %v6521 = vadd.f32 %v6519, %v6520
  %v6522 = vsel %vm4378, %v6391, 0.0
  %v6523 = vadd.f32 %v6521, %v6522
  %v6524 = vsel %vm4378, %v6392, 0.0
  %v6525 = vadd.f32 %v6523, %v6524
  %v6526 = vsel %vm4378, %v6393, 0.0
  %v6527 = vadd.f32 %v6525, %v6526
  %v6528 = vsel %vm4378, %v6394, 0.0
  %v6529 = vadd.f32 %v6527, %v6528
  %v6530 = vsel %vm4378, %v6395, 0.0
  %v6531 = vadd.f32 %v6529, %v6530
  %v6532 = vsel %vm4378, %v6396, 0.0
  %v6533 = vadd.f32 %v6531, %v6532
  %v6534 = vsel %vm4378, %v6397, 0.0
  %v6535 = vadd.f32 %v6533, %v6534
  %v6536 = vsel %vm4378, %v6398, 0.0
  %v6537 = vadd.f32 %v6535, %v6536
  %v6538 = vsel %vm4378, %v6399, 0.0
  %v6539 = vadd.f32 %v6537, %v6538
  %v6540 = vsel %vm4378, %v6400, 0.0
  %v6541 = vadd.f32 %v6539, %v6540
  %v6542 = vsel %vm4378, %v6401, 0.0
  %v6543 = vadd.f32 %v6541, %v6542
  %v6544 = vsel %vm4378, %v6402, 0.0
  %v6545 = vadd.f32 %v6543, %v6544
  %v6546 = vsel %vm4378, %v6403, 0.0
  %v6547 = vadd.f32 %v6545, %v6546
  %v6548 = vsel %vm4378, %v6404, 0.0
  %v6549 = vadd.f32 %v6547, %v6548
  %v6550 = vsel %vm4378, %v6405, 0.0
  %v6551 = vadd.f32 %v6549, %v6550
  %v6552 = vsel %vm4378, %v6406, 0.0
  %v6553 = vadd.f32 %v6551, %v6552
  %v6554 = vsel %vm4378, %v6407, 0.0
  %v6555 = vadd.f32 %v6553, %v6554
  %v6556 = vsel %vm4378, %v6408, 0.0
  %v6557 = vadd.f32 %v6555, %v6556
  %v6558 = vsel %vm4378, %v6409, 0.0
  %v6559 = vadd.f32 %v6557, %v6558
  %v6560 = vsel %vm4378, %v6410, 0.0
  %v6561 = vadd.f32 %v6559, %v6560
  %v6562 = vsel %vm4378, %v6411, 0.0
  %v6563 = vadd.f32 %v6561, %v6562
  %v6564 = vsel %vm4378, %v6412, 0.0
  %v6565 = vadd.f32 %v6563, %v6564
  %v6566 = vsel %vm4378, %v6413, 0.0
  %v6567 = vadd.f32 %v6565, %v6566
  %v6568 = vsel %vm4378, %v6414, 0.0
  %v6569 = vadd.f32 %v6567, %v6568
  %v6570 = vsel %vm4378, %v6415, 0.0
  %v6571 = vadd.f32 %v6569, %v6570
  %v6572 = vsel %vm4378, %v6416, 0.0
  %v6573 = vadd.f32 %v6571, %v6572
  %v6574 = vsel %vm4378, %v6417, 0.0
  %v6575 = vadd.f32 %v6573, %v6574
  %v6576 = vsel %vm4378, %v6418, 0.0
  %v6577 = vadd.f32 %v6575, %v6576
  %v6578 = vrot.slane %v6577, 4
  %v6579 = vadd.f32 %v6577, %v6578
  %v6580 = vrot.slane %v6579, 2
  %v6581 = vadd.f32 %v6579, %v6580
  %v6582 = vrot.slane %v6581, 1
  %v6583 = vadd.f32 %v6581, %v6582
  %v6584 = vsel %vm4378, %v6419, 0.0
  %v6585 = vsel %vm4378, %v6420, 0.0
  %v6586 = vadd.f32 %v6584, %v6585
  %v6587 = vsel %vm4378, %v6421, 0.0
  %v6588 = vadd.f32 %v6586, %v6587
  %v6589 = vsel %vm4378, %v6422, 0.0
  %v6590 = vadd.f32 %v6588, %v6589
  %v6591 = vsel %vm4378, %v6423, 0.0
  %v6592 = vadd.f32 %v6590, %v6591
  %v6593 = vsel %vm4378, %v6424, 0.0
  %v6594 = vadd.f32 %v6592, %v6593
  %v6595 = vsel %vm4378, %v6425, 0.0
  %v6596 = vadd.f32 %v6594, %v6595
  %v6597 = vsel %vm4378, %v6426, 0.0
  %v6598 = vadd.f32 %v6596, %v6597
  %v6599 = vsel %vm4378, %v6427, 0.0
  %v6600 = vadd.f32 %v6598, %v6599
  %v6601 = vsel %vm4378, %v6428, 0.0
  %v6602 = vadd.f32 %v6600, %v6601
  %v6603 = vsel %vm4378, %v6429, 0.0
  %v6604 = vadd.f32 %v6602, %v6603
  %v6605 = vsel %vm4378, %v6430, 0.0
  %v6606 = vadd.f32 %v6604, %v6605
  %v6607 = vsel %vm4378, %v6431, 0.0
  %v6608 = vadd.f32 %v6606, %v6607
  %v6609 = vsel %vm4378, %v6432, 0.0
  %v6610 = vadd.f32 %v6608, %v6609
  %v6611 = vsel %vm4378, %v6433, 0.0
  %v6612 = vadd.f32 %v6610, %v6611
  %v6613 = vsel %vm4378, %v6434, 0.0
  %v6614 = vadd.f32 %v6612, %v6613
  %v6615 = vsel %vm4378, %v6435, 0.0
  %v6616 = vadd.f32 %v6614, %v6615
  %v6617 = vsel %vm4378, %v6436, 0.0
  %v6618 = vadd.f32 %v6616, %v6617
  %v6619 = vsel %vm4378, %v6437, 0.0
  %v6620 = vadd.f32 %v6618, %v6619
  %v6621 = vsel %vm4378, %v6438, 0.0
  %v6622 = vadd.f32 %v6620, %v6621
  %v6623 = vsel %vm4378, %v6439, 0.0
  %v6624 = vadd.f32 %v6622, %v6623
  %v6625 = vsel %vm4378, %v6440, 0.0
  %v6626 = vadd.f32 %v6624, %v6625
  %v6627 = vsel %vm4378, %v6441, 0.0
  %v6628 = vadd.f32 %v6626, %v6627
  %v6629 = vsel %vm4378, %v6442, 0.0
  %v6630 = vadd.f32 %v6628, %v6629
  %v6631 = vsel %vm4378, %v6443, 0.0
  %v6632 = vadd.f32 %v6630, %v6631
  %v6633 = vsel %vm4378, %v6444, 0.0
  %v6634 = vadd.f32 %v6632, %v6633
  %v6635 = vsel %vm4378, %v6445, 0.0
  %v6636 = vadd.f32 %v6634, %v6635
  %v6637 = vsel %vm4378, %v6446, 0.0
  %v6638 = vadd.f32 %v6636, %v6637
  %v6639 = vsel %vm4378, %v6447, 0.0
  %v6640 = vadd.f32 %v6638, %v6639
  %v6641 = vsel %vm4378, %v6448, 0.0
  %v6642 = vadd.f32 %v6640, %v6641
  %v6643 = vsel %vm4378, %v6449, 0.0
  %v6644 = vadd.f32 %v6642, %v6643
  %v6645 = vsel %vm4378, %v6450, 0.0
  %v6646 = vadd.f32 %v6644, %v6645
  %v6647 = vrot.slane %v6646, 4
  %v6648 = vadd.f32 %v6646, %v6647
  %v6649 = vrot.slane %v6648, 2
  %v6650 = vadd.f32 %v6648, %v6649
  %v6651 = vrot.slane %v6650, 1
  %v6652 = vadd.f32 %v6650, %v6651
  %v6653 = vsel %vm4378, %v6451, 0.0
  %v6654 = vsel %vm4378, %v6452, 0.0
  %v6655 = vadd.f32 %v6653, %v6654
  %v6656 = vsel %vm4378, %v6453, 0.0
  %v6657 = vadd.f32 %v6655, %v6656
  %v6658 = vsel %vm4378, %v6454, 0.0
  %v6659 = vadd.f32 %v6657, %v6658
  %v6660 = vsel %vm4378, %v6455, 0.0
  %v6661 = vadd.f32 %v6659, %v6660
  %v6662 = vsel %vm4378, %v6456, 0.0
  %v6663 = vadd.f32 %v6661, %v6662
  %v6664 = vsel %vm4378, %v6457, 0.0
  %v6665 = vadd.f32 %v6663, %v6664
  %v6666 = vsel %vm4378, %v6458, 0.0
  %v6667 = vadd.f32 %v6665, %v6666
  %v6668 = vsel %vm4378, %v6459, 0.0
  %v6669 = vadd.f32 %v6667, %v6668
  %v6670 = vsel %vm4378, %v6460, 0.0
  %v6671 = vadd.f32 %v6669, %v6670
  %v6672 = vsel %vm4378, %v6461, 0.0
  %v6673 = vadd.f32 %v6671, %v6672
  %v6674 = vsel %vm4378, %v6462, 0.0
  %v6675 = vadd.f32 %v6673, %v6674
  %v6676 = vsel %vm4378, %v6463, 0.0
  %v6677 = vadd.f32 %v6675, %v6676
  %v6678 = vsel %vm4378, %v6464, 0.0
  %v6679 = vadd.f32 %v6677, %v6678
  %v6680 = vsel %vm4378, %v6465, 0.0
  %v6681 = vadd.f32 %v6679, %v6680
  %v6682 = vsel %vm4378, %v6466, 0.0
  %v6683 = vadd.f32 %v6681, %v6682
  %v6684 = vsel %vm4378, %v6467, 0.0
  %v6685 = vadd.f32 %v6683, %v6684
  %v6686 = vsel %vm4378, %v6468, 0.0
  %v6687 = vadd.f32 %v6685, %v6686
  %v6688 = vsel %vm4378, %v6469, 0.0
  %v6689 = vadd.f32 %v6687, %v6688
  %v6690 = vsel %vm4378, %v6470, 0.0
  %v6691 = vadd.f32 %v6689, %v6690
  %v6692 = vsel %vm4378, %v6471, 0.0
  %v6693 = vadd.f32 %v6691, %v6692
  %v6694 = vsel %vm4378, %v6472, 0.0
  %v6695 = vadd.f32 %v6693, %v6694
  %v6696 = vsel %vm4378, %v6473, 0.0
  %v6697 = vadd.f32 %v6695, %v6696
  %v6698 = vsel %vm4378, %v6474, 0.0
  %v6699 = vadd.f32 %v6697, %v6698
  %v6700 = vsel %vm4378, %v6475, 0.0
  %v6701 = vadd.f32 %v6699, %v6700
  %v6702 = vsel %vm4378, %v6476, 0.0
  %v6703 = vadd.f32 %v6701, %v6702
  %v6704 = vsel %vm4378, %v6477, 0.0
  %v6705 = vadd.f32 %v6703, %v6704
  %v6706 = vsel %vm4378, %v6478, 0.0
  %v6707 = vadd.f32 %v6705, %v6706
  %v6708 = vsel %vm4378, %v6479, 0.0
  %v6709 = vadd.f32 %v6707, %v6708
  %v6710 = vsel %vm4378, %v6480, 0.0
  %v6711 = vadd.f32 %v6709, %v6710
  %v6712 = vsel %vm4378, %v6481, 0.0
  %v6713 = vadd.f32 %v6711, %v6712
  %v6714 = vsel %vm4378, %v6482, 0.0
  %v6715 = vadd.f32 %v6713, %v6714
  %v6716 = vrot.slane %v6715, 4
  %v6717 = vadd.f32 %v6715, %v6716
  %v6718 = vrot.slane %v6717, 2
  %v6719 = vadd.f32 %v6717, %v6718
  %v6720 = vrot.slane %v6719, 1
  %v6721 = vadd.f32 %v6719, %v6720
  %v6722 = vsel %vm4378, %v6483, 0.0
  %v6723 = vsel %vm4378, %v6484, 0.0
  %v6724 = vadd.f32 %v6722, %v6723
  %v6725 = vsel %vm4378, %v6485, 0.0
  %v6726 = vadd.f32 %v6724, %v6725
  %v6727 = vsel %vm4378, %v6486, 0.0
  %v6728 = vadd.f32 %v6726, %v6727
  %v6729 = vsel %vm4378, %v6487, 0.0
  %v6730 = vadd.f32 %v6728, %v6729
  %v6731 = vsel %vm4378, %v6488, 0.0
  %v6732 = vadd.f32 %v6730, %v6731
  %v6733 = vsel %vm4378, %v6489, 0.0
  %v6734 = vadd.f32 %v6732, %v6733
  %v6735 = vsel %vm4378, %v6490, 0.0
  %v6736 = vadd.f32 %v6734, %v6735
  %v6737 = vsel %vm4378, %v6491, 0.0
  %v6738 = vadd.f32 %v6736, %v6737
  %v6739 = vsel %vm4378, %v6492, 0.0
  %v6740 = vadd.f32 %v6738, %v6739
  %v6741 = vsel %vm4378, %v6493, 0.0
  %v6742 = vadd.f32 %v6740, %v6741
  %v6743 = vsel %vm4378, %v6494, 0.0
  %v6744 = vadd.f32 %v6742, %v6743
  %v6745 = vsel %vm4378, %v6495, 0.0
  %v6746 = vadd.f32 %v6744, %v6745
  %v6747 = vsel %vm4378, %v6496, 0.0
  %v6748 = vadd.f32 %v6746, %v6747
  %v6749 = vsel %vm4378, %v6497, 0.0
  %v6750 = vadd.f32 %v6748, %v6749
  %v6751 = vsel %vm4378, %v6498, 0.0
  %v6752 = vadd.f32 %v6750, %v6751
  %v6753 = vsel %vm4378, %v6499, 0.0
  %v6754 = vadd.f32 %v6752, %v6753
  %v6755 = vsel %vm4378, %v6500, 0.0
  %v6756 = vadd.f32 %v6754, %v6755
  %v6757 = vsel %vm4378, %v6501, 0.0
  %v6758 = vadd.f32 %v6756, %v6757
  %v6759 = vsel %vm4378, %v6502, 0.0
  %v6760 = vadd.f32 %v6758, %v6759
  %v6761 = vsel %vm4378, %v6503, 0.0
  %v6762 = vadd.f32 %v6760, %v6761
  %v6763 = vsel %vm4378, %v6504, 0.0
  %v6764 = vadd.f32 %v6762, %v6763
  %v6765 = vsel %vm4378, %v6505, 0.0
  %v6766 = vadd.f32 %v6764, %v6765
  %v6767 = vsel %vm4378, %v6506, 0.0
  %v6768 = vadd.f32 %v6766, %v6767
  %v6769 = vsel %vm4378, %v6507, 0.0
  %v6770 = vadd.f32 %v6768, %v6769
  %v6771 = vsel %vm4378, %v6508, 0.0
  %v6772 = vadd.f32 %v6770, %v6771
  %v6773 = vsel %vm4378, %v6509, 0.0
  %v6774 = vadd.f32 %v6772, %v6773
  %v6775 = vsel %vm4378, %v6510, 0.0
  %v6776 = vadd.f32 %v6774, %v6775
  %v6777 = vsel %vm4378, %v6511, 0.0
  %v6778 = vadd.f32 %v6776, %v6777
  %v6779 = vsel %vm4378, %v6512, 0.0
  %v6780 = vadd.f32 %v6778, %v6779
  %v6781 = vsel %vm4378, %v6513, 0.0
  %v6782 = vadd.f32 %v6780, %v6781
  %v6783 = vsel %vm4378, %v6514, 0.0
  %v6784 = vadd.f32 %v6782, %v6783
  %v6785 = vrot.slane %v6784, 4
  %v6786 = vadd.f32 %v6784, %v6785
  %v6787 = vrot.slane %v6786, 2
  %v6788 = vadd.f32 %v6786, %v6787
  %v6789 = vrot.slane %v6788, 1
  %v6790 = vadd.f32 %v6788, %v6789
  %v6791 = vrcp.pop 256.0
  %v6792 = vmul.f32 %v6583, %v6791
  %v6793 = vmul.f32 %v6652, %v6791
  %v6794 = vmul.f32 %v6721, %v6791
  %v6795 = vmul.f32 %v6790, %v6791
  %vm6798 = vcmask 1041409
  %v6799 = vsel %vm6798, %v6793, %v6792
  %v6803 = vsel %vm6798, %v6795, %v6794
  %6804 = vrot.lane.b32.xlu0 %v6803, 8
  %v6805 = vpop.permute.xlu0 %6804
  %v6807 = vsel %vm4378, %v6799, %v6805
  %v6808 = vld [vmem:[%s3] sm:$0xff]
  %v6809 = vld [vmem:[%s3 + $0x8] sm:$0xff]
  %v6810 = vld [vmem:[%s4] sm:$0x1]
  %v6812 = vlaneseq
  %v6813 = vshrl.u32 %v6812, 7
  %v6814 = vsub.s32 0, %v6813
  %v6815 = vrot.slane %v6810, %v6814
  %v6818 = vsel %vm4636, %v6807, 0
  %6820 = vmatprep.subr.mxu0 0.0
  %6821 = vmatpush1.msra.mxu0 0.0
  %6822 = vmatprep.subr.mxu0 0.0
  %6823 = vmatpush1.msra.mxu0 0.0
  %6824 = vmatprep.subr.mxu0 0.0
  %6825 = vmatpush1.msra.mxu0 0.0
  %6826 = vmatprep.subr.mxu0 0.0
  %6827 = vmatpush1.msra.mxu0 0.0
  %6828 = vmatprep.subr.mxu0 0.0
  %6829 = vmatpush1.msra.mxu0 0.0
  %6830 = vmatprep.subr.mxu0 0.0
  %6831 = vmatpush1.msra.mxu0 0.0
  %6832 = vmatprep.subr.mxu0 0.0
  %6833 = vmatpush1.msra.mxu0 0.0
  %6834 = vmatprep.subr.mxu0 0.0
  %6835 = vmatpush1.msra.mxu0 0.0
  %6836 = vmatprep.subr.mxu0 0.0
  %6837 = vmatpush1.msra.mxu0 0.0
  %6838 = vmatprep.subr.mxu0 0.0
  %6839 = vmatpush1.msra.mxu0 0.0
  %6840 = vmatprep.subr.mxu0 0.0
  %6841 = vmatpush1.msra.mxu0 0.0
  %6842 = vmatprep.subr.mxu0 0.0
  %6843 = vmatpush1.msra.mxu0 0.0
  %6844 = vmatprep.subr.mxu0 0.0
  %6845 = vmatpush1.msra.mxu0 0.0
  %6846 = vmatprep.subr.mxu0 0.0
  %6847 = vmatpush1.msra.mxu0 0.0
  %6848 = vmatprep.subr.mxu0 0.0
  %6849 = vmatpush1.msra.mxu0 %v6809
  %6850 = vmatprep.subr.mxu0 0.0
  %6851 = vmatpush1.msra.mxu0 %v6808
  %6852 = vmatprep.subr.mxu0 0.0
  %6853 = vmatpush2.msra.mxu0 0.0
  %6854 = vmatprep.subr.mxu0 0.0
  %6855 = vmatpush2.msra.mxu0 0.0
  %6856 = vmatprep.subr.mxu0 0.0
  %6857 = vmatpush2.msra.mxu0 0.0
  %6858 = vmatprep.subr.mxu0 0.0
  %6859 = vmatpush2.msra.mxu0 0.0
  %6860 = vmatprep.subr.mxu0 0.0
  %6861 = vmatpush2.msra.mxu0 0.0
  %6862 = vmatprep.subr.mxu0 0.0
  %6863 = vmatpush2.msra.mxu0 0.0
  %6864 = vmatprep.subr.mxu0 0.0
  %6865 = vmatpush2.msra.mxu0 0.0
  %6866 = vmatprep.subr.mxu0 0.0
  %6867 = vmatpush2.msra.mxu0 0.0
  %6868 = vmatprep.subr.mxu0 0.0
  %6869 = vmatpush2.msra.mxu0 0.0
  %6870 = vmatprep.subr.mxu0 0.0
  %6871 = vmatpush2.msra.mxu0 0.0
  %6872 = vmatprep.subr.mxu0 0.0
  %6873 = vmatpush2.msra.mxu0 0.0
  %6874 = vmatprep.subr.mxu0 0.0
  %6875 = vmatpush2.msra.mxu0 0.0
  %6876 = vmatprep.subr.mxu0 0.0
  %6877 = vmatpush2.msra.mxu0 0.0
  %6878 = vmatprep.subr.mxu0 0.0
  %6879 = vmatpush2.msra.mxu0 0.0
  %6880 = vmatprep.subr.mxu0 0.0
  %6881 = vmatpush2.msra.mxu0 0.0
  %6882 = vmatprep.subr.mxu0 0.0
  %6883 = vmatpush2.msra.mxu0 0.0
  %6884 = vmatprep.mubr.f32.mxu0 0.0
  %6885 = vmatmul.mubr.f32.gmra.mxu0 %v6818
  %v6886 = vpop.f32.mrf.mxu0
  %v6887 = vadd.f32 %v6815, %v6886
  %v6888 = vpop.f32.mrf.mxu0
  %6889 = vdwg.mxu0
  %v6890 = vld [vmem:[%s5] sm:$0xff]
  %6891 = vxpose.xlu0.b32.start [1/16] %v6887, 128
  %6892 = vxpose.xlu0.b32.cont [2/16] 0.0, 128
  %6893 = vxpose.xlu0.b32.cont [3/16] 0.0, 128
  %6894 = vxpose.xlu0.b32.cont [4/16] 0.0, 128
  %6895 = vxpose.xlu0.b32.cont [5/16] 0.0, 128
  %6896 = vxpose.xlu0.b32.cont [6/16] 0.0, 128
  %6897 = vxpose.xlu0.b32.cont [7/16] 0.0, 128
  %6898 = vxpose.xlu0.b32.cont [8/16] 0.0, 128
  %6899 = vxpose.xlu0.b32.cont [9/16] 0.0, 128
  %6900 = vxpose.xlu0.b32.cont [10/16] 0.0, 128
  %6901 = vxpose.xlu0.b32.cont [11/16] 0.0, 128
  %6902 = vxpose.xlu0.b32.cont [12/16] 0.0, 128
  %6903 = vxpose.xlu0.b32.cont [13/16] 0.0, 128
  %6904 = vxpose.xlu0.b32.cont [14/16] 0.0, 128
  %6905 = vxpose.xlu0.b32.cont [15/16] 0.0, 128
  %6906 = vxpose.xlu0.b32.end [16/16] 0.0, 128
  %v6907 = vpop.trf.xlu0
  %v6908 = vpop.trf.xlu0
  %v6909 = vpop.trf.xlu0
  %v6910 = vpop.trf.xlu0
  %v6911 = vpop.trf.xlu0
  %v6912 = vpop.trf.xlu0
  %v6913 = vpop.trf.xlu0
  %v6914 = vpop.trf.xlu0
  %v6915 = vpop.trf.xlu0
  %v6916 = vpop.trf.xlu0
  %v6917 = vpop.trf.xlu0
  %v6918 = vpop.trf.xlu0
  %v6919 = vpop.trf.xlu0
  %v6920 = vpop.trf.xlu0
  %v6921 = vpop.trf.xlu0
  %v6922 = vpop.trf.xlu0
  %v6924 = vsel %vm5152, %v6890, 0
  %6926 = vmatprep.subr.mxu0 0.0
  %6927 = vmatpush1.msra.mxu0 0.0
  %6928 = vmatprep.subr.mxu0 0.0
  %6929 = vmatpush1.msra.mxu0 0.0
  %6930 = vmatprep.subr.mxu0 0.0
  %6931 = vmatpush1.msra.mxu0 0.0
  %6932 = vmatprep.subr.mxu0 0.0
  %6933 = vmatpush1.msra.mxu0 0.0
  %6934 = vmatprep.subr.mxu0 0.0
  %6935 = vmatpush1.msra.mxu0 0.0
  %6936 = vmatprep.subr.mxu0 0.0
  %6937 = vmatpush1.msra.mxu0 0.0
  %6938 = vmatprep.subr.mxu0 0.0
  %6939 = vmatpush1.msra.mxu0 0.0
  %6940 = vmatprep.subr.mxu0 0.0
  %6941 = vmatpush1.msra.mxu0 0.0
  %6942 = vmatprep.subr.mxu0 0.0
  %6943 = vmatpush1.msra.mxu0 0.0
  %6944 = vmatprep.subr.mxu0 0.0
  %6945 = vmatpush1.msra.mxu0 0.0
  %6946 = vmatprep.subr.mxu0 0.0
  %6947 = vmatpush1.msra.mxu0 0.0
  %6948 = vmatprep.subr.mxu0 0.0
  %6949 = vmatpush1.msra.mxu0 0.0
  %6950 = vmatprep.subr.mxu0 0.0
  %6951 = vmatpush1.msra.mxu0 %v6910
  %6952 = vmatprep.subr.mxu0 0.0
  %6953 = vmatpush1.msra.mxu0 %v6909
  %6954 = vmatprep.subr.mxu0 0.0
  %6955 = vmatpush1.msra.mxu0 %v6908
  %6956 = vmatprep.subr.mxu0 0.0
  %6957 = vmatpush1.msra.mxu0 %v6907
  %6958 = vmatprep.subr.mxu0 0.0
  %6959 = vmatpush2.msra.mxu0 0.0
  %6960 = vmatprep.subr.mxu0 0.0
  %6961 = vmatpush2.msra.mxu0 0.0
  %6962 = vmatprep.subr.mxu0 0.0
  %6963 = vmatpush2.msra.mxu0 0.0
  %6964 = vmatprep.subr.mxu0 0.0
  %6965 = vmatpush2.msra.mxu0 0.0
  %6966 = vmatprep.subr.mxu0 0.0
  %6967 = vmatpush2.msra.mxu0 0.0
  %6968 = vmatprep.subr.mxu0 0.0
  %6969 = vmatpush2.msra.mxu0 0.0
  %6970 = vmatprep.subr.mxu0 0.0
  %6971 = vmatpush2.msra.mxu0 0.0
  %6972 = vmatprep.subr.mxu0 0.0
  %6973 = vmatpush2.msra.mxu0 0.0
  %6974 = vmatprep.subr.mxu0 0.0
  %6975 = vmatpush2.msra.mxu0 0.0
  %6976 = vmatprep.subr.mxu0 0.0
  %6977 = vmatpush2.msra.mxu0 0.0
  %6978 = vmatprep.subr.mxu0 0.0
  %6979 = vmatpush2.msra.mxu0 0.0
  %6980 = vmatprep.subr.mxu0 0.0
  %6981 = vmatpush2.msra.mxu0 0.0
  %6982 = vmatprep.subr.mxu0 0.0
  %6983 = vmatpush2.msra.mxu0 0.0
  %6984 = vmatprep.subr.mxu0 0.0
  %6985 = vmatpush2.msra.mxu0 0.0
  %6986 = vmatprep.subr.mxu0 0.0
  %6987 = vmatpush2.msra.mxu0 0.0
  %6988 = vmatprep.subr.mxu0 0.0
  %6989 = vmatpush2.msra.mxu0 0.0
  %6990 = vmatprep.mubr.f32.mxu0 0.0
  %6991 = vmatmul.mubr.f32.gmra.mxu0 %v6924
  %v6992 = vpop.f32.mrf.mxu0
  %v6993 = vadd.f32 0.0, %v6992
  %v6994 = vpop.f32.mrf.mxu0
  %6995 = vdwg.mxu0
  %v6996 = vmul.f32 %v6890, %v6890
  %v6997 = vsel %vm5152, %v6996, 0.0
  %6998 = vadd.xlane.f32.xlu0 %v6997
  %v6999 = vpop.xlane.xlu0 %6998
  %v7000 = vmul.f32 %v6907, %v6907
  %v7001 = vmul.f32 %v6908, %v6908
  %v7002 = vmul.f32 %v6909, %v6909
  %v7003 = vmul.f32 %v6910, %v6910
  %vm7004 = vcmask 15360
  %v7005 = vsel %vm7004, %v7000, 0.0
  %v7006 = vsel %vm7004, %v7001, 0.0
  %v7007 = vadd.f32 %v7005, %v7006
  %v7008 = vsel %vm7004, %v7002, 0.0
  %v7009 = vadd.f32 %v7007, %v7008
  %v7010 = vsel %vm7004, %v7003, 0.0
  %v7011 = vadd.f32 %v7009, %v7010
  %v7012 = vrot.slane %v7011, 4
  %v7013 = vadd.f32 %v7011, %v7012
  %v7014 = vrot.slane %v7013, 2
  %v7015 = vadd.f32 %v7013, %v7014
  %v7016 = vrot.slane %v7015, 1
  %v7017 = vadd.f32 %v7015, %v7016
  %v7018 = vmul.f32 %v6993, 2.0
  %v7019 = vsub.f32 %v6999, %v7018
  %v7020 = vadd.f32 %v7019, %v7017
  %v7021 = vmax.f32 %v7020, 0.0
  %v7022 = vrsqrt.pop %v7021
  %v7023 = vmul.f32 %v7021, %v7022
  %vm7024 = vcmp.eq.f32.partialorder %v7021, inf
  %v7025 = vsel %vm7024, %v7021, %v7023
  %vm7026 = vcmp.eq.f32.partialorder %v7021, 0.0
  %v7027 = vand.u32 %v7021, 2147483648
  %v7028 = vsel %vm7026, %v7027, %v7025
  %v7029 = vsub.f32 0.0, %v7028
  %7030 = vst.msk [vmem:[%s6] sm:$0xff] %vm7004, %v7029
  // Predicated region
  $region26: #{tpu_custom_call.1} parent=0 // pred_check
    _
  $region27: #{tpu_custom_call.1} parent=0 // pred_check_branch
    %7032 = sbr.rel (0) target = $region29
  $region28: #{tpu_custom_call.1} parent=0 // pred_region
    _
  $region29: #{tpu_custom_call.1} parent=0 // pred_fallthru
    _
  // Predicated region
  $region30: #{tpu_custom_call.1} parent=0 // pred_check
    _
  $region31: #{tpu_custom_call.1} parent=0 // pred_check_branch
    %7034 = sbr.rel (0) target = $region33
  $region32: #{tpu_custom_call.1} parent=0 // pred_region
    _
  $region33: #{tpu_custom_call.1} parent=0 // pred_fallthru
    _

</llo_original>
